<compile_context>
chip_gen: v7x
topology: tpu7x:2x2x1
jax: 0.10.0
libtpu: 0.0.40
codegen_flags: <defaults>
</compile_context>

<pallas_src>
import functools
import math

import jax
import jax.numpy as jnp
from jax.experimental import pallas as pl
from jax.experimental.pallas import tpu as pltpu


# ---------------------------------------------------------------------------
# kernels
# ---------------------------------------------------------------------------

def _mul_lane_dense_kernel(x_ref, s_ref, o_ref, *, hw):
    # x_ref/o_ref: (R, G*hw) lane-dense data block; s_ref: (R, G) scales.
    # Expand each channel's scale across its `hw` consecutive lanes, then a
    # plain VPU multiply.  The expansion is small and hidden under the DMA.
    s_full = jnp.repeat(s_ref[...], hw, axis=-1)      # (R, G) -> (R, G*hw)
    o_ref[...] = x_ref[...] * s_full


def _mul_channel_block_kernel(x_ref, s_ref, o_ref):
    # x_ref/o_ref: (1, ct, HW); s_ref: (1, ct, 1) broadcasts along HW.
    o_ref[...] = x_ref[...] * s_ref[...]


# ---------------------------------------------------------------------------
# helpers
# ---------------------------------------------------------------------------

def _round_up(x, m):
    return (x + m - 1) // m * m


def _cost_estimate(x, scale):
    itemsize = jnp.dtype(x.dtype).itemsize
    return pl.CostEstimate(
        flops=int(x.size),
        transcendentals=0,
        bytes_accessed=int(2 * x.size * itemsize + scale.size * itemsize),
    )


def _vmem_limit(block_bytes):
    # Explicit scoped-VMEM budget: generous floor for Mosaic internals, well
    # under v7x's 32 MiB scoped / 64 MiB physical per TC.
    return int(min(32 << 20, max(16 << 20, 4 * block_bytes)))


def _pick_num_blocks(rows, row_bytes, *, target_block_bytes=288 * 1024,
                     min_block_bytes=64 * 1024):
    """Split `rows` into nb blocks (nb | rows), each ~64-288 KB, preferring
    >=2 blocks so the output writeback overlaps the next input fetch."""
    divisors = [d for d in range(1, rows + 1) if rows % d == 0]
    nb = next((d for d in divisors
               if (rows // d) * row_bytes <= target_block_bytes), rows)
    if nb == 1 and rows > 1 and rows * row_bytes >= 2 * min_block_bytes:
        for d in divisors:
            if d >= 2 and (rows // d) * row_bytes >= min_block_bytes:
                nb = d
                break
    return nb


def _pick_channel_blocks(c, row_bytes, sub, *, target_block_bytes=288 * 1024,
                         min_block_bytes=64 * 1024):
    divisors = [d for d in range(1, c + 1) if c % d == 0]
    ok = [d for d in divisors if (c // d) == c or (c // d) % sub == 0]
    nb = next((d for d in ok if (c // d) * row_bytes <= target_block_bytes), 1)
    if nb == 1 and c * row_bytes >= 2 * min_block_bytes:
        for d in ok:
            if d >= 2 and (c // d) * row_bytes >= min_block_bytes:
                nb = d
                break
    return nb


# ---------------------------------------------------------------------------
# paths
# ---------------------------------------------------------------------------

def _se_gate_mul_lane_dense(x, scale, *, donate_x):
    N, C, H, W = x.shape
    HW = H * W
    dtype = x.dtype
    itemsize = jnp.dtype(dtype).itemsize
    sub = 8 * max(1, 4 // itemsize)

    G = 128 // math.gcd(HW, 128)          # channels glued into one lane row
    assert (G * HW) % 128 == 0 and C % G == 0
    GHW = G * HW
    Cg = C // G                           # number of 128-channel groups
    row_bytes = GHW * itemsize
    B = _pick_num_blocks(Cg, row_bytes)   # pipelined blocks along groups
    R = Cg // B                           # group rows per block

    # Contiguity-preserving regroup: last dim is lane-dense (multiple of 128).
    x4 = x.reshape(N, B, R, GHW)
    s4 = scale.reshape(N, B, R, G)

    x_spec = pl.BlockSpec((None, None, R, GHW), lambda n, b: (n, b, 0, 0))
    s_spec = pl.BlockSpec((None, None, R, G), lambda n, b: (n, b, 0, 0))
    o_spec = pl.BlockSpec((None, None, R, GHW), lambda n, b: (n, b, 0, 0))

    # Double-buffered in + out + scale footprint (lane-dense, so ~unpadded).
    data_blk = _round_up(R, sub) * GHW * itemsize
    scale_blk = _round_up(R, sub) * _round_up(G, 128) * itemsize
    footprint = 2 * (2 * data_blk + scale_blk)

    kwargs = {}
    if donate_x:
        # Aliasing is WAR-safe: x and out use identical block shape/index map.
        assert x_spec.block_shape == o_spec.block_shape
        kwargs["input_output_aliases"] = {0: 0}

    out = pl.pallas_call(
        functools.partial(_mul_lane_dense_kernel, hw=HW),
        out_shape=jax.ShapeDtypeStruct((N, B, R, GHW), dtype),
        grid=(N, B),
        in_specs=[x_spec, s_spec],
        out_specs=o_spec,
        compiler_params=pltpu.CompilerParams(
            dimension_semantics=("parallel", "parallel"),
            vmem_limit_bytes=_vmem_limit(footprint),
        ),
        cost_estimate=_cost_estimate(x, scale),
        **kwargs,
    )(x4, s4)
    return out.reshape(N, C, H, W)


def _se_gate_mul_channel_blocks(x, scale, *, donate_x):
    # Fallback layout (HW on lanes): always lowers; split into a few channel
    # blocks so the write DMA of block i overlaps the read of block i+1.
    N, C, H, W = x.shape
    HW = H * W
    dtype = x.dtype
    itemsize = jnp.dtype(dtype).itemsize
    sub = 8 * max(1, 4 // itemsize)

    cb = _pick_channel_blocks(C, HW * itemsize, sub)
    ct = C // cb

    x3 = x.reshape(N, C, HW)
    s3 = scale.reshape(N, C, 1)

    x_spec = pl.BlockSpec((1, ct, HW), lambda n, c: (n, c, 0))
    s_spec = pl.BlockSpec((1, ct, 1), lambda n, c: (n, c, 0))
    o_spec = pl.BlockSpec((1, ct, HW), lambda n, c: (n, c, 0))

    data_blk = _round_up(ct, sub) * _round_up(HW, 128) * itemsize
    scale_blk = _round_up(ct, sub) * 128 * itemsize
    footprint = 2 * (2 * data_blk + scale_blk)

    kwargs = {}
    if donate_x:
        assert x_spec.block_shape == o_spec.block_shape
        kwargs["input_output_aliases"] = {0: 0}

    out = pl.pallas_call(
        _mul_channel_block_kernel,
        out_shape=jax.ShapeDtypeStruct((N, C, HW), dtype),
        grid=(N, cb),
        in_specs=[x_spec, s_spec],
        out_specs=o_spec,
        compiler_params=pltpu.CompilerParams(
            dimension_semantics=("parallel", "parallel"),
            vmem_limit_bytes=_vmem_limit(footprint),
        ),
        cost_estimate=_cost_estimate(x, scale),
        **kwargs,
    )(x3, s3)
    return out.reshape(N, C, H, W)


def se_gate_mul(x, scale, *, donate_x: bool = False,
                force_fallback: bool = False):
    """out = x * scale for x: [N, C, H, W], scale: [N, C, 1, 1]."""
    N, C, H, W = x.shape
    assert scale.shape == (N, C, 1, 1), scale.shape
    HW = H * W
    G = 128 // math.gcd(HW, 128)
    if (not force_fallback) and C % G == 0:
        try:
            return _se_gate_mul_lane_dense(x, scale, donate_x=donate_x)
        except Exception:
            # Mosaic support for the in-kernel (G, HW)->(G*HW) lane-merge
            # relayout behind jnp.repeat varies across releases; fall back to
            # the always-supported channel-block layout.
            pass
    return _se_gate_mul_channel_blocks(x, scale, donate_x=donate_x)


# ---------------------------------------------------------------------------
# self-test
# ---------------------------------------------------------------------------

if __name__ == "__main__":
    key = jax.random.PRNGKey(0)
    k1, k2 = jax.random.split(key)

    # Shapes implied by the module: [1, 2688, 7, 7] * [1, 2688, 1, 1] (~527 KB).
    N, C, H, W = 1, 2688, 7, 7
    x463 = jax.random.normal(k1, (N, C, H, W), dtype=jnp.float32)
    x468 = jax.random.normal(k2, (N, C, 1, 1), dtype=jnp.float32)

    ref = x463 * x468

    # Default (lane-dense, 3 pipelined ~176 KB blocks).
    out = jax.block_until_ready(se_gate_mul(x463, x468))
    assert out.shape == (N, C, H, W)
    assert jnp.allclose(out, ref, atol=1e-6, rtol=1e-6)

    # Channel-block fallback path (also used when C % 128 != 0).
    xs = jax.random.normal(k1, (2, 96, 7, 7), dtype=jnp.float32)
    ss = jax.random.normal(k2, (2, 96, 1, 1), dtype=jnp.float32)
    outs = jax.block_until_ready(se_gate_mul(xs, ss, force_fallback=True))
    assert jnp.allclose(outs, xs * ss, atol=1e-6, rtol=1e-6)

    print("KERNEL_OK")
</pallas_src>

<mosaic_0001>
module attributes {stable_mosaic.version = 11 : i64} {
  func.func @_mul_lane_dense_kernel(%arg0: i32, %arg1: i32, %arg2: memref<1x1x7x6272xf32, #tpu.memory_space<vmem>>, %arg3: memref<1x1x7x128xf32, #tpu.memory_space<vmem>>, %arg4: memref<1x1x7x6272xf32, #tpu.memory_space<vmem>>) attributes {dimension_semantics = [#tpu.dimension_semantics<parallel>, #tpu.dimension_semantics<parallel>], iteration_bounds = array<i64: 1, 3>, scalar_prefetch = 0 : i64, scratch_operands = 0 : i64, tpu.core_type = #tpu.core_type<tc>, window_params = [{transform_indices = @transform_0, window_bounds = array<i64: 1, 1, 7, 6272>}, {transform_indices = @transform_1, window_bounds = array<i64: 1, 1, 7, 128>}, {transform_indices = @transform_2, window_bounds = array<i64: 1, 1, 7, 6272>}]} {
    %c0 = arith.constant 0 : index
    %c0_0 = arith.constant 0 : index
    %c0_1 = arith.constant 0 : index
    %c0_2 = arith.constant 0 : index
    %0 = vector.load %arg3[%c0, %c0_0, %c0_1, %c0_2] : memref<1x1x7x128xf32, #tpu.memory_space<vmem>>, vector<1x1x7x128xf32>
    %1 = vector.shape_cast %0 : vector<1x1x7x128xf32> to vector<7x128xf32>
    %2 = vector.shape_cast %1 : vector<7x128xf32> to vector<7x128x1xf32>
    %3 = vector.broadcast %2 : vector<7x128x1xf32> to vector<7x128x49xf32>
    %4 = vector.shape_cast %3 : vector<7x128x49xf32> to vector<7x6272xf32>
    %c0_3 = arith.constant 0 : index
    %c0_4 = arith.constant 0 : index
    %c0_5 = arith.constant 0 : index
    %c0_6 = arith.constant 0 : index
    %5 = vector.load %arg2[%c0_3, %c0_4, %c0_5, %c0_6] : memref<1x1x7x6272xf32, #tpu.memory_space<vmem>>, vector<1x1x7x6272xf32>
    %6 = vector.shape_cast %5 : vector<1x1x7x6272xf32> to vector<7x6272xf32>
    %7 = arith.mulf %6, %4 : vector<7x6272xf32>
    %c0_7 = arith.constant 0 : index
    %c0_8 = arith.constant 0 : index
    %c0_9 = arith.constant 0 : index
    %c0_10 = arith.constant 0 : index
    %8 = vector.load %arg4[%c0_7, %c0_8, %c0_9, %c0_10] : memref<1x1x7x6272xf32, #tpu.memory_space<vmem>>, vector<1x1x7x6272xf32>
    %9 = vector.shape_cast %8 : vector<1x1x7x6272xf32> to vector<7x6272xf32>
    %10 = vector.shape_cast %7 : vector<7x6272xf32> to vector<1x1x7x6272xf32>
    tpu.vector_store %arg4[%c0_7, %c0_8, %c0_9, %c0_10], %10 {strides = array<i32>} : memref<1x1x7x6272xf32, #tpu.memory_space<vmem>>, vector<1x1x7x6272xf32>,
    return
  }
  func.func @transform_0(%arg0: i32, %arg1: i32) -> (i32, i32, i32, i32) {
    %c0_i32 = arith.constant 0 : i32
    %c0_i32_0 = arith.constant 0 : i32
    %c0_i32_1 = arith.constant 0 : i32
    return %arg0, %arg1, %c0_i32, %c0_i32_0 : i32, i32, i32, i32
  }
  func.func @transform_1(%arg0: i32, %arg1: i32) -> (i32, i32, i32, i32) {
    %c0_i32 = arith.constant 0 : i32
    %c0_i32_0 = arith.constant 0 : i32
    %c0_i32_1 = arith.constant 0 : i32
    return %arg0, %arg1, %c0_i32, %c0_i32_0 : i32, i32, i32, i32
  }
  func.func @transform_2(%arg0: i32, %arg1: i32) -> (i32, i32, i32, i32) {
    %c0_i32 = arith.constant 0 : i32
    %c0_i32_0 = arith.constant 0 : i32
    %c0_i32_1 = arith.constant 0 : i32
    return %arg0, %arg1, %c0_i32, %c0_i32_0 : i32, i32, i32, i32
  }
}

module attributes {stable_mosaic.version = 11 : i64} {
  func.func @_mul_channel_block_kernel(%arg0: i32, %arg1: i32, %arg2: memref<1x1344x49xf32, #tpu.memory_space<vmem>>, %arg3: memref<1x1344x1xf32, #tpu.memory_space<vmem>>, %arg4: memref<1x1344x49xf32, #tpu.memory_space<vmem>>) attributes {dimension_semantics = [#tpu.dimension_semantics<parallel>, #tpu.dimension_semantics<parallel>], iteration_bounds = array<i64: 1, 2>, scalar_prefetch = 0 : i64, scratch_operands = 0 : i64, tpu.core_type = #tpu.core_type<tc>, window_params = [{transform_indices = @transform_0, window_bounds = array<i64: 1, 1344, 49>}, {transform_indices = @transform_1, window_bounds = array<i64: 1, 1344, 1>}, {transform_indices = @transform_2, window_bounds = array<i64: 1, 1344, 49>}]} {
    %c0 = arith.constant 0 : index
    %c0_0 = arith.constant 0 : index
    %c0_1 = arith.constant 0 : index
    %0 = vector.load %arg2[%c0, %c0_0, %c0_1] : memref<1x1344x49xf32, #tpu.memory_space<vmem>>, vector<1x1344x49xf32>
    %c0_2 = arith.constant 0 : index
    %c0_3 = arith.constant 0 : index
    %c0_4 = arith.constant 0 : index
    %1 = vector.load %arg3[%c0_2, %c0_3, %c0_4] : memref<1x1344x1xf32, #tpu.memory_space<vmem>>, vector<1x1344x1xf32>
    %2 = vector.broadcast %1 : vector<1x1344x1xf32> to vector<1x1344x49xf32>
    %3 = arith.mulf %0, %2 : vector<1x1344x49xf32>
    %c0_5 = arith.constant 0 : index
    %c0_6 = arith.constant 0 : index
    %c0_7 = arith.constant 0 : index
    %4 = vector.load %arg4[%c0_5, %c0_6, %c0_7] : memref<1x1344x49xf32, #tpu.memory_space<vmem>>, vector<1x1344x49xf32>
    tpu.vector_store %arg4[%c0_5, %c0_6, %c0_7], %3 {strides = array<i32>} : memref<1x1344x49xf32, #tpu.memory_space<vmem>>, vector<1x1344x49xf32>,
    return
  }
  func.func @transform_0(%arg0: i32, %arg1: i32) -> (i32, i32, i32) {
    %c0_i32 = arith.constant 0 : i32
    %c0_i32_0 = arith.constant 0 : i32
    return %arg0, %arg1, %c0_i32 : i32, i32, i32
  }
  func.func @transform_1(%arg0: i32, %arg1: i32) -> (i32, i32, i32) {
    %c0_i32 = arith.constant 0 : i32
    %c0_i32_0 = arith.constant 0 : i32
    return %arg0, %arg1, %c0_i32 : i32, i32, i32
  }
  func.func @transform_2(%arg0: i32, %arg1: i32) -> (i32, i32, i32) {
    %c0_i32 = arith.constant 0 : i32
    %c0_i32_0 = arith.constant 0 : i32
    return %arg0, %arg1, %c0_i32 : i32, i32, i32
  }
}

</mosaic_0001>

<llo_original>
// kernel: tpu_custom_call.1
$region0: #{tpu_custom_call.1}
  #allocation0 [shape = 'u32[]', space=smem, size = 0x4, offset = 0x4, fixed_abs, tag = 'smem constant byte address 0x4 - core index']
  #allocation1 [shape = 'u32[144,128]{1,0:T(1,128)}', space=vmem, size = 0x12000, scoped, tag = 'internal scratch']
  %s0 = inlined_call_operand.vmem [shape: f32[1,3,7,6272], index: 0, kind: input, shape index: {}]
  %s1 = inlined_call_operand.vmem [shape: f32[1,3,7,128], index: 1, kind: input, shape index: {}]
  %s2 = inlined_call_operand.vmem [shape: f32[1,3,7,6272], index: 2, kind: output, shape index: {}]
  %s3 = sld [smem:[#allocation0]]
  $region41: #{tpu_custom_call.1} parent=0
    _
  %s5 = ssub.s32 1, %s3
  %s6 = scalar_select 0, %s5, %s3
  loop: start=0, step=1, limit=5
  $region2: #{tpu_custom_call.1} parent=0 // loop_pre_header
    _
  $region3: #{tpu_custom_call.1} parent=0 // loop_header
    %s8 = sphi 0, %s12
    %p9 = scmp.ge.s32.totalorder %s8, 5
    %s15 = sphi 0, %s27
    %s16 = sphi 0, %s23
    %s17 = sphi 0, %s15
    %s18 = sphi 0, %s16
    %s19 = sphi 0, %s17
    %s20 = sphi 0, %s18
    %s32 = sphi 0, %s34
    %s35 = sphi 0, %s32
    %s36 = sphi 0, %s35
    %s52 = sphi 0, %s36
    %s60 = sphi 0, %s62
    %s63 = sphi 0, %s60
    %s64 = sphi 0, %s63
    %s80 = sphi 0, %s64
    %s88 = sphi 0, %s90
    %s91 = sphi 0, %s88
    %s92 = sphi 0, %s91
    %s108 = sphi 0, %s92
  $region4: #{tpu_custom_call.1} parent=0 // loop_header_branch
    %11 = sbr.rel (%p9) target = $region8
  $region5: #{tpu_custom_call.1} parent=0 // loop_body
    %s13 = ssub.s32 %s8, 1
    %s14 = ssub.s32 %s8, 2
    %s21 = sadd.s32 1, %s16
    %p22 = scmp.ge.s32.totalorder %s21, 3
    %s23 = scalar_select %p22, 0, %s21
    %s24 = sadd.s32 1, %s15
    %s25 = scalar_select %p22, %s24, %s15
    %p26 = scmp.ge.s32.totalorder %s25, 1
    %s27 = scalar_select %p26, 0, %s25
    %s28 = ssub.s32 %s15, %s27
    %s29 = ssub.s32 %s16, %s23
    %s30 = sor.u32 %s28, %s29
    %p31 = scmp.eq.s32.totalorder %s30, 0
    %s33 = sadd.s32 %s32, 1
    %s34 = scalar_select %p31, %s32, %s33
    %p37 = pneg %p31
    %p38 = scmp.eq.s32.totalorder %s8, 2
    %p39 = por %p37, %p38
    %p40 = scmp.ne.s32.totalorder %s32, %s35
    %p41 = scmp.eq.s32.totalorder %s8, 0
    %p42 = por %p40, %p41
    %p43 = scmp.ne.s32.totalorder %s32, %s35
    %p44 = scmp.eq.s32.totalorder %s13, 2
    %p45 = por %p43, %p44
    %p46 = scmp.ne.s32.totalorder %s35, %s36
    %p47 = scmp.eq.s32.totalorder %s13, 0
    %p48 = por %p46, %p47
    %p49 = scmp.ne.s32.totalorder %s35, %s36
    %p50 = scmp.eq.s32.totalorder %s14, 2
    %p51 = por %p49, %p50
    %p53 = scmp.ne.s32.totalorder %s36, %s52
    %p54 = scmp.eq.s32.totalorder %s14, 0
    %p55 = por %p53, %p54
    %s56 = ssub.s32 %s15, %s27
    %s57 = ssub.s32 %s16, %s23
    %s58 = sor.u32 %s56, %s57
    %p59 = scmp.eq.s32.totalorder %s58, 0
    %s61 = sadd.s32 %s60, 1
    %s62 = scalar_select %p59, %s60, %s61
    %p65 = pneg %p59
    %p66 = scmp.eq.s32.totalorder %s8, 2
    %p67 = por %p65, %p66
    %p68 = scmp.ne.s32.totalorder %s60, %s63
    %p69 = scmp.eq.s32.totalorder %s8, 0
    %p70 = por %p68, %p69
    %p71 = scmp.ne.s32.totalorder %s60, %s63
    %p72 = scmp.eq.s32.totalorder %s13, 2
    %p73 = por %p71, %p72
    %p74 = scmp.ne.s32.totalorder %s63, %s64
    %p75 = scmp.eq.s32.totalorder %s13, 0
    %p76 = por %p74, %p75
    %p77 = scmp.ne.s32.totalorder %s63, %s64
    %p78 = scmp.eq.s32.totalorder %s14, 2
    %p79 = por %p77, %p78
    %p81 = scmp.ne.s32.totalorder %s64, %s80
    %p82 = scmp.eq.s32.totalorder %s14, 0
    %p83 = por %p81, %p82
    %s84 = ssub.s32 %s15, %s27
    %s85 = ssub.s32 %s16, %s23
    %s86 = sor.u32 %s84, %s85
    %p87 = scmp.eq.s32.totalorder %s86, 0
    %s89 = sadd.s32 %s88, 1
    %s90 = scalar_select %p87, %s88, %s89
    %p93 = pneg %p87
    %p94 = scmp.eq.s32.totalorder %s8, 2
    %p95 = por %p93, %p94
    %p96 = scmp.ne.s32.totalorder %s88, %s91
    %p97 = scmp.eq.s32.totalorder %s8, 0
    %p98 = por %p96, %p97
    %p99 = scmp.ne.s32.totalorder %s88, %s91
    %p100 = scmp.eq.s32.totalorder %s13, 2
    %p101 = por %p99, %p100
    %p102 = scmp.ne.s32.totalorder %s91, %s92
    %p103 = scmp.eq.s32.totalorder %s13, 0
    %p104 = por %p102, %p103
    %p105 = scmp.ne.s32.totalorder %s91, %s92
    %p106 = scmp.eq.s32.totalorder %s14, 2
    %p107 = por %p105, %p106
    %p109 = scmp.ne.s32.totalorder %s92, %s108
    %p110 = scmp.eq.s32.totalorder %s14, 0
    %p111 = por %p109, %p110
    %p112 = scmp.le.s32.totalorder 1, %s8
    %p113 = scmp.lt.s32.totalorder %s8, 4
    %p114 = pnand %p112, %p113
    %p115 = pneg %p114
    // Predicated region
    $region9: #{tpu_custom_call.1} parent=5 // pred_check
      _
    $region10: #{tpu_custom_call.1} parent=5 // pred_check_branch
      %117 = sbr.rel (%p114) target = $region12
    $region11: #{tpu_custom_call.1} parent=5 // pred_region
      %s118 = ssub.s32 %s8, 1
    $region12: #{tpu_custom_call.1} parent=5 // pred_fallthru
      _
    %p119 = scmp.lt.s32.totalorder %s8, 3
    // Predicated region
    $region13: #{tpu_custom_call.1} parent=5 // pred_check
      %p120 = pneg %p119
    $region14: #{tpu_custom_call.1} parent=5 // pred_check_branch
      %122 = sbr.rel (%p120) target = $region16
    $region15: #{tpu_custom_call.1} parent=5 // pred_region
      // Predicated region
      $region17: #{tpu_custom_call.1} parent=15 // pred_check
        %p123 = pneg %p42
      $region18: #{tpu_custom_call.1} parent=15 // pred_check_branch
        %125 = sbr.rel (%p123) target = $region20
      $region19: #{tpu_custom_call.1} parent=15 // pred_region
        %p126 = scmp.lt.s32.totalorder %s15, 0
        %s127 = scalar_select %p126, %s15, 0
        %p128 = scmp.lt.s32.totalorder %s16, 2
        %s129 = scalar_select %p128, %s16, 2
        %s130 = smul.addr %s129, 49
        %s131 = smul.addr %s127, 147
        %s132 = sadd.s32 %s130, %s131
        %s133 = smul.addr %s132, 8
        %s134 = scalar_lea.vmem %s0, %s133
      $region20: #{tpu_custom_call.1} parent=15 // pred_fallthru
        _
      // Predicated region
      $region21: #{tpu_custom_call.1} parent=15 // pred_check
        %p135 = pneg %p70
      $region22: #{tpu_custom_call.1} parent=15 // pred_check_branch
        %137 = sbr.rel (%p135) target = $region24
      $region23: #{tpu_custom_call.1} parent=15 // pred_region
        %p138 = scmp.lt.s32.totalorder %s15, 0
        %s139 = scalar_select %p138, %s15, 0
        %p140 = scmp.lt.s32.totalorder %s16, 2
        %s141 = scalar_select %p140, %s16, 2
        %s142 = smul.addr %s139, 3
        %s143 = sadd.s32 %s141, %s142
        %s144 = smul.addr %s143, 8
        %s145 = scalar_lea.vmem %s1, %s144
      $region24: #{tpu_custom_call.1} parent=15 // pred_fallthru
        _
    $region16: #{tpu_custom_call.1} parent=5 // pred_fallthru
      _
    %p146 = scmp.le.s32.totalorder 1, %s8
    %p147 = scmp.lt.s32.totalorder %s8, 4
    %p148 = pnand %p146, %p147
    %p149 = pneg %p148
    // Predicated region
    $region25: #{tpu_custom_call.1} parent=5 // pred_check
      _
    $region26: #{tpu_custom_call.1} parent=5 // pred_check_branch
      %151 = sbr.rel (%p148) target = $region28
    $region27: #{tpu_custom_call.1} parent=5 // pred_region
      %s152 = ssub.s32 %s8, 1
      %p153 = scmp.lt.s32.totalorder %s17, 0
      %s154 = scalar_select %p153, %s17, 0
      %p155 = scmp.lt.s32.totalorder %s18, 2
      %s156 = scalar_select %p155, %s18, 2
      %s157 = smul.addr %s156, 49
      %s158 = smul.addr %s154, 147
      %s159 = sadd.s32 %s157, %s158
      %s160 = smul.addr %s159, 8
      %s161 = scalar_lea.vmem %s0, %s160
      %p162 = pneg %p48
      %p163 = pneg %p45
      %p164 = scmp.lt.s32.totalorder %s17, 0
      %s165 = scalar_select %p164, %s17, 0
      %p166 = scmp.lt.s32.totalorder %s18, 2
      %s167 = scalar_select %p166, %s18, 2
      %s168 = smul.addr %s165, 3
      %s169 = sadd.s32 %s167, %s168
      %s170 = smul.addr %s169, 8
      %s171 = scalar_lea.vmem %s1, %s170
      %p172 = pneg %p76
      %p173 = pneg %p73
      %p174 = pneg %p104
      %p175 = pneg %p101
      %p176 = scmp.lt.s32.totalorder %s17, 0
      %s177 = scalar_select %p176, %s17, 0
      %p178 = scmp.lt.s32.totalorder %s18, 2
      %s179 = scalar_select %p178, %s18, 2
      %s180 = smul.addr %s179, 49
      %s181 = smul.addr %s177, 147
      %s182 = sadd.s32 %s180, %s181
      %s183 = smul.addr %s182, 8
      %s184 = scalar_lea.vmem %s2, %s183
      %p185 = scmp.lt.s32.totalorder %s17, 0
      %s186 = scalar_select %p185, %s17, 0
      %p187 = scmp.lt.s32.totalorder %s18, 2
      %s188 = scalar_select %p187, %s18, 2
      %s189 = smul.addr %s188, 49
      %s190 = smul.addr %s186, 147
      %s191 = sadd.s32 %s189, %s190
      %s192 = smul.addr %s191, 8
      %s193 = scalar_lea.vmem %s0, %s192
      %p194 = scmp.lt.s32.totalorder %s17, 0
      %s195 = scalar_select %p194, %s17, 0
      %p196 = scmp.lt.s32.totalorder %s18, 2
      %s197 = scalar_select %p196, %s18, 2
      %s198 = smul.addr %s195, 3
      %s199 = sadd.s32 %s197, %s198
      %s200 = smul.addr %s199, 8
      %s201 = scalar_lea.vmem %s1, %s200
      %p202 = scmp.lt.s32.totalorder %s17, 0
      %s203 = scalar_select %p202, %s17, 0
      %p204 = scmp.lt.s32.totalorder %s18, 2
      %s205 = scalar_select %p204, %s18, 2
      %s206 = smul.addr %s205, 49
      %s207 = smul.addr %s203, 147
      %s208 = sadd.s32 %s206, %s207
      %s209 = smul.addr %s208, 8
      %s210 = scalar_lea.vmem %s2, %s209
      %v211 = vld [vmem:[%s201] sm:$0x7f]
      %v212 = vlaneseq
      %v213 = vshrl.u32 %v212, 7
      %v214 = vsub.s32 0, %v213
      %v215 = vrot.slane %v211, %v214
      %217 = vbcast.lane.b32.xlu0 %v215, 256
      %v218 = vpop.permute.xlu0 %217
      %s220 = sor.u32 256, 8
      %221 = vbcast.lane.b32.xlu0 %v215, %s220
      %v222 = vpop.permute.xlu0 %221
      %s224 = sor.u32 256, 16
      %225 = vbcast.lane.b32.xlu0 %v215, %s224
      %v226 = vpop.permute.xlu0 %225
      %s228 = sor.u32 256, 24
      %229 = vbcast.lane.b32.xlu0 %v215, %s228
      %v230 = vpop.permute.xlu0 %229
      %s232 = sor.u32 256, 32
      %233 = vbcast.lane.b32.xlu0 %v215, %s232
      %v234 = vpop.permute.xlu0 %233
      %s236 = sor.u32 256, 40
      %237 = vbcast.lane.b32.xlu0 %v215, %s236
      %v238 = vpop.permute.xlu0 %237
      %s240 = sor.u32 256, 48
      %241 = vbcast.lane.b32.xlu0 %v215, %s240
      %v242 = vpop.permute.xlu0 %241
      %s244 = sor.u32 256, 56
      %245 = vbcast.lane.b32.xlu0 %v215, %s244
      %v246 = vpop.permute.xlu0 %245
      %s248 = sor.u32 256, 64
      %249 = vbcast.lane.b32.xlu0 %v215, %s248
      %v250 = vpop.permute.xlu0 %249
      %s252 = sor.u32 256, 72
      %253 = vbcast.lane.b32.xlu0 %v215, %s252
      %v254 = vpop.permute.xlu0 %253
      %s256 = sor.u32 256, 80
      %257 = vbcast.lane.b32.xlu0 %v215, %s256
      %v258 = vpop.permute.xlu0 %257
      %s260 = sor.u32 256, 88
      %261 = vbcast.lane.b32.xlu0 %v215, %s260
      %v262 = vpop.permute.xlu0 %261
      %s264 = sor.u32 256, 96
      %265 = vbcast.lane.b32.xlu0 %v215, %s264
      %v266 = vpop.permute.xlu0 %265
      %s268 = sor.u32 256, 104
      %269 = vbcast.lane.b32.xlu0 %v215, %s268
      %v270 = vpop.permute.xlu0 %269
      %s272 = sor.u32 256, 112
      %273 = vbcast.lane.b32.xlu0 %v215, %s272
      %v274 = vpop.permute.xlu0 %273
      %s276 = sor.u32 256, 120
      %277 = vbcast.lane.b32.xlu0 %v215, %s276
      %v278 = vpop.permute.xlu0 %277
      %v279 = vlaneseq
      %v280 = vshrl.u32 %v279, 7
      %v281 = vsub.s32 1, %v280
      %v282 = vrot.slane %v211, %v281
      %284 = vbcast.lane.b32.xlu0 %v282, 256
      %v285 = vpop.permute.xlu0 %284
      %s287 = sor.u32 256, 8
      %288 = vbcast.lane.b32.xlu0 %v282, %s287
      %v289 = vpop.permute.xlu0 %288
      %s291 = sor.u32 256, 16
      %292 = vbcast.lane.b32.xlu0 %v282, %s291
      %v293 = vpop.permute.xlu0 %292
      %s295 = sor.u32 256, 24
      %296 = vbcast.lane.b32.xlu0 %v282, %s295
      %v297 = vpop.permute.xlu0 %296
      %s299 = sor.u32 256, 32
      %300 = vbcast.lane.b32.xlu0 %v282, %s299
      %v301 = vpop.permute.xlu0 %300
      %s303 = sor.u32 256, 40
      %304 = vbcast.lane.b32.xlu0 %v282, %s303
      %v305 = vpop.permute.xlu0 %304
      %s307 = sor.u32 256, 48
      %308 = vbcast.lane.b32.xlu0 %v282, %s307
      %v309 = vpop.permute.xlu0 %308
      %s311 = sor.u32 256, 56
      %312 = vbcast.lane.b32.xlu0 %v282, %s311
      %v313 = vpop.permute.xlu0 %312
      %s315 = sor.u32 256, 64
      %316 = vbcast.lane.b32.xlu0 %v282, %s315
      %v317 = vpop.permute.xlu0 %316
      %s319 = sor.u32 256, 72
      %320 = vbcast.lane.b32.xlu0 %v282, %s319
      %v321 = vpop.permute.xlu0 %320
      %s323 = sor.u32 256, 80
      %324 = vbcast.lane.b32.xlu0 %v282, %s323
      %v325 = vpop.permute.xlu0 %324
      %s327 = sor.u32 256, 88
      %328 = vbcast.lane.b32.xlu0 %v282, %s327
      %v329 = vpop.permute.xlu0 %328
      %s331 = sor.u32 256, 96
      %332 = vbcast.lane.b32.xlu0 %v282, %s331
      %v333 = vpop.permute.xlu0 %332
      %s335 = sor.u32 256, 104
      %336 = vbcast.lane.b32.xlu0 %v282, %s335
      %v337 = vpop.permute.xlu0 %336
      %s339 = sor.u32 256, 112
      %340 = vbcast.lane.b32.xlu0 %v282, %s339
      %v341 = vpop.permute.xlu0 %340
      %s343 = sor.u32 256, 120
      %344 = vbcast.lane.b32.xlu0 %v282, %s343
      %v345 = vpop.permute.xlu0 %344
      %v346 = vlaneseq
      %v347 = vshrl.u32 %v346, 7
      %v348 = vsub.s32 2, %v347
      %v349 = vrot.slane %v211, %v348
      %351 = vbcast.lane.b32.xlu0 %v349, 256
      %v352 = vpop.permute.xlu0 %351
      %s354 = sor.u32 256, 8
      %355 = vbcast.lane.b32.xlu0 %v349, %s354
      %v356 = vpop.permute.xlu0 %355
      %s358 = sor.u32 256, 16
      %359 = vbcast.lane.b32.xlu0 %v349, %s358
      %v360 = vpop.permute.xlu0 %359
      %s362 = sor.u32 256, 24
      %363 = vbcast.lane.b32.xlu0 %v349, %s362
      %v364 = vpop.permute.xlu0 %363
      %s366 = sor.u32 256, 32
      %367 = vbcast.lane.b32.xlu0 %v349, %s366
      %v368 = vpop.permute.xlu0 %367
      %s370 = sor.u32 256, 40
      %371 = vbcast.lane.b32.xlu0 %v349, %s370
      %v372 = vpop.permute.xlu0 %371
      %s374 = sor.u32 256, 48
      %375 = vbcast.lane.b32.xlu0 %v349, %s374
      %v376 = vpop.permute.xlu0 %375
      %s378 = sor.u32 256, 56
      %379 = vbcast.lane.b32.xlu0 %v349, %s378
      %v380 = vpop.permute.xlu0 %379
      %s382 = sor.u32 256, 64
      %383 = vbcast.lane.b32.xlu0 %v349, %s382
      %v384 = vpop.permute.xlu0 %383
      %s386 = sor.u32 256, 72
      %387 = vbcast.lane.b32.xlu0 %v349, %s386
      %v388 = vpop.permute.xlu0 %387
      %s390 = sor.u32 256, 80
      %391 = vbcast.lane.b32.xlu0 %v349, %s390
      %v392 = vpop.permute.xlu0 %391
      %s394 = sor.u32 256, 88
      %395 = vbcast.lane.b32.xlu0 %v349, %s394
      %v396 = vpop.permute.xlu0 %395
      %s398 = sor.u32 256, 96
      %399 = vbcast.lane.b32.xlu0 %v349, %s398
      %v400 = vpop.permute.xlu0 %399
      %s402 = sor.u32 256, 104
      %403 = vbcast.lane.b32.xlu0 %v349, %s402
      %v404 = vpop.permute.xlu0 %403
      %s406 = sor.u32 256, 112
      %407 = vbcast.lane.b32.xlu0 %v349, %s406
      %v408 = vpop.permute.xlu0 %407
      %s410 = sor.u32 256, 120
      %411 = vbcast.lane.b32.xlu0 %v349, %s410
      %v412 = vpop.permute.xlu0 %411
      %v413 = vlaneseq
      %v414 = vshrl.u32 %v413, 7
      %v415 = vsub.s32 3, %v414
      %v416 = vrot.slane %v211, %v415
      %418 = vbcast.lane.b32.xlu0 %v416, 256
      %v419 = vpop.permute.xlu0 %418
      %s421 = sor.u32 256, 8
      %422 = vbcast.lane.b32.xlu0 %v416, %s421
      %v423 = vpop.permute.xlu0 %422
      %s425 = sor.u32 256, 16
      %426 = vbcast.lane.b32.xlu0 %v416, %s425
      %v427 = vpop.permute.xlu0 %426
      %s429 = sor.u32 256, 24
      %430 = vbcast.lane.b32.xlu0 %v416, %s429
      %v431 = vpop.permute.xlu0 %430
      %s433 = sor.u32 256, 32
      %434 = vbcast.lane.b32.xlu0 %v416, %s433
      %v435 = vpop.permute.xlu0 %434
      %s437 = sor.u32 256, 40
      %438 = vbcast.lane.b32.xlu0 %v416, %s437
      %v439 = vpop.permute.xlu0 %438
      %s441 = sor.u32 256, 48
      %442 = vbcast.lane.b32.xlu0 %v416, %s441
      %v443 = vpop.permute.xlu0 %442
      %s445 = sor.u32 256, 56
      %446 = vbcast.lane.b32.xlu0 %v416, %s445
      %v447 = vpop.permute.xlu0 %446
      %s449 = sor.u32 256, 64
      %450 = vbcast.lane.b32.xlu0 %v416, %s449
      %v451 = vpop.permute.xlu0 %450
      %s453 = sor.u32 256, 72
      %454 = vbcast.lane.b32.xlu0 %v416, %s453
      %v455 = vpop.permute.xlu0 %454
      %s457 = sor.u32 256, 80
      %458 = vbcast.lane.b32.xlu0 %v416, %s457
      %v459 = vpop.permute.xlu0 %458
      %s461 = sor.u32 256, 88
      %462 = vbcast.lane.b32.xlu0 %v416, %s461
      %v463 = vpop.permute.xlu0 %462
      %s465 = sor.u32 256, 96
      %466 = vbcast.lane.b32.xlu0 %v416, %s465
      %v467 = vpop.permute.xlu0 %466
      %s469 = sor.u32 256, 104
      %470 = vbcast.lane.b32.xlu0 %v416, %s469
      %v471 = vpop.permute.xlu0 %470
      %s473 = sor.u32 256, 112
      %474 = vbcast.lane.b32.xlu0 %v416, %s473
      %v475 = vpop.permute.xlu0 %474
      %s477 = sor.u32 256, 120
      %478 = vbcast.lane.b32.xlu0 %v416, %s477
      %v479 = vpop.permute.xlu0 %478
      %v480 = vlaneseq
      %v481 = vshrl.u32 %v480, 7
      %v482 = vsub.s32 4, %v481
      %v483 = vrot.slane %v211, %v482
      %485 = vbcast.lane.b32.xlu0 %v483, 256
      %v486 = vpop.permute.xlu0 %485
      %s488 = sor.u32 256, 8
      %489 = vbcast.lane.b32.xlu0 %v483, %s488
      %v490 = vpop.permute.xlu0 %489
      %s492 = sor.u32 256, 16
      %493 = vbcast.lane.b32.xlu0 %v483, %s492
      %v494 = vpop.permute.xlu0 %493
      %s496 = sor.u32 256, 24
      %497 = vbcast.lane.b32.xlu0 %v483, %s496
      %v498 = vpop.permute.xlu0 %497
      %s500 = sor.u32 256, 32
      %501 = vbcast.lane.b32.xlu0 %v483, %s500
      %v502 = vpop.permute.xlu0 %501
      %s504 = sor.u32 256, 40
      %505 = vbcast.lane.b32.xlu0 %v483, %s504
      %v506 = vpop.permute.xlu0 %505
      %s508 = sor.u32 256, 48
      %509 = vbcast.lane.b32.xlu0 %v483, %s508
      %v510 = vpop.permute.xlu0 %509
      %s512 = sor.u32 256, 56
      %513 = vbcast.lane.b32.xlu0 %v483, %s512
      %v514 = vpop.permute.xlu0 %513
      %s516 = sor.u32 256, 64
      %517 = vbcast.lane.b32.xlu0 %v483, %s516
      %v518 = vpop.permute.xlu0 %517
      %s520 = sor.u32 256, 72
      %521 = vbcast.lane.b32.xlu0 %v483, %s520
      %v522 = vpop.permute.xlu0 %521
      %s524 = sor.u32 256, 80
      %525 = vbcast.lane.b32.xlu0 %v483, %s524
      %v526 = vpop.permute.xlu0 %525
      %s528 = sor.u32 256, 88
      %529 = vbcast.lane.b32.xlu0 %v483, %s528
      %v530 = vpop.permute.xlu0 %529
      %s532 = sor.u32 256, 96
      %533 = vbcast.lane.b32.xlu0 %v483, %s532
      %v534 = vpop.permute.xlu0 %533
      %s536 = sor.u32 256, 104
      %537 = vbcast.lane.b32.xlu0 %v483, %s536
      %v538 = vpop.permute.xlu0 %537
      %s540 = sor.u32 256, 112
      %541 = vbcast.lane.b32.xlu0 %v483, %s540
      %v542 = vpop.permute.xlu0 %541
      %s544 = sor.u32 256, 120
      %545 = vbcast.lane.b32.xlu0 %v483, %s544
      %v546 = vpop.permute.xlu0 %545
      %v547 = vlaneseq
      %v548 = vshrl.u32 %v547, 7
      %v549 = vsub.s32 5, %v548
      %v550 = vrot.slane %v211, %v549
      %552 = vbcast.lane.b32.xlu0 %v550, 256
      %v553 = vpop.permute.xlu0 %552
      %s555 = sor.u32 256, 8
      %556 = vbcast.lane.b32.xlu0 %v550, %s555
      %v557 = vpop.permute.xlu0 %556
      %s559 = sor.u32 256, 16
      %560 = vbcast.lane.b32.xlu0 %v550, %s559
      %v561 = vpop.permute.xlu0 %560
      %s563 = sor.u32 256, 24
      %564 = vbcast.lane.b32.xlu0 %v550, %s563
      %v565 = vpop.permute.xlu0 %564
      %s567 = sor.u32 256, 32
      %568 = vbcast.lane.b32.xlu0 %v550, %s567
      %v569 = vpop.permute.xlu0 %568
      %s571 = sor.u32 256, 40
      %572 = vbcast.lane.b32.xlu0 %v550, %s571
      %v573 = vpop.permute.xlu0 %572
      %s575 = sor.u32 256, 48
      %576 = vbcast.lane.b32.xlu0 %v550, %s575
      %v577 = vpop.permute.xlu0 %576
      %s579 = sor.u32 256, 56
      %580 = vbcast.lane.b32.xlu0 %v550, %s579
      %v581 = vpop.permute.xlu0 %580
      %s583 = sor.u32 256, 64
      %584 = vbcast.lane.b32.xlu0 %v550, %s583
      %v585 = vpop.permute.xlu0 %584
      %s587 = sor.u32 256, 72
      %588 = vbcast.lane.b32.xlu0 %v550, %s587
      %v589 = vpop.permute.xlu0 %588
      %s591 = sor.u32 256, 80
      %592 = vbcast.lane.b32.xlu0 %v550, %s591
      %v593 = vpop.permute.xlu0 %592
      %s595 = sor.u32 256, 88
      %596 = vbcast.lane.b32.xlu0 %v550, %s595
      %v597 = vpop.permute.xlu0 %596
      %s599 = sor.u32 256, 96
      %600 = vbcast.lane.b32.xlu0 %v550, %s599
      %v601 = vpop.permute.xlu0 %600
      %s603 = sor.u32 256, 104
      %604 = vbcast.lane.b32.xlu0 %v550, %s603
      %v605 = vpop.permute.xlu0 %604
      %s607 = sor.u32 256, 112
      %608 = vbcast.lane.b32.xlu0 %v550, %s607
      %v609 = vpop.permute.xlu0 %608
      %s611 = sor.u32 256, 120
      %612 = vbcast.lane.b32.xlu0 %v550, %s611
      %v613 = vpop.permute.xlu0 %612
      %v614 = vlaneseq
      %v615 = vshrl.u32 %v614, 7
      %v616 = vsub.s32 6, %v615
      %v617 = vrot.slane %v211, %v616
      %619 = vbcast.lane.b32.xlu0 %v617, 256
      %v620 = vpop.permute.xlu0 %619
      %s622 = sor.u32 256, 8
      %623 = vbcast.lane.b32.xlu0 %v617, %s622
      %v624 = vpop.permute.xlu0 %623
      %s626 = sor.u32 256, 16
      %627 = vbcast.lane.b32.xlu0 %v617, %s626
      %v628 = vpop.permute.xlu0 %627
      %s630 = sor.u32 256, 24
      %631 = vbcast.lane.b32.xlu0 %v617, %s630
      %v632 = vpop.permute.xlu0 %631
      %s634 = sor.u32 256, 32
      %635 = vbcast.lane.b32.xlu0 %v617, %s634
      %v636 = vpop.permute.xlu0 %635
      %s638 = sor.u32 256, 40
      %639 = vbcast.lane.b32.xlu0 %v617, %s638
      %v640 = vpop.permute.xlu0 %639
      %s642 = sor.u32 256, 48
      %643 = vbcast.lane.b32.xlu0 %v617, %s642
      %v644 = vpop.permute.xlu0 %643
      %s646 = sor.u32 256, 56
      %647 = vbcast.lane.b32.xlu0 %v617, %s646
      %v648 = vpop.permute.xlu0 %647
      %s650 = sor.u32 256, 64
      %651 = vbcast.lane.b32.xlu0 %v617, %s650
      %v652 = vpop.permute.xlu0 %651
      %s654 = sor.u32 256, 72
      %655 = vbcast.lane.b32.xlu0 %v617, %s654
      %v656 = vpop.permute.xlu0 %655
      %s658 = sor.u32 256, 80
      %659 = vbcast.lane.b32.xlu0 %v617, %s658
      %v660 = vpop.permute.xlu0 %659
      %s662 = sor.u32 256, 88
      %663 = vbcast.lane.b32.xlu0 %v617, %s662
      %v664 = vpop.permute.xlu0 %663
      %s666 = sor.u32 256, 96
      %667 = vbcast.lane.b32.xlu0 %v617, %s666
      %v668 = vpop.permute.xlu0 %667
      %s670 = sor.u32 256, 104
      %671 = vbcast.lane.b32.xlu0 %v617, %s670
      %v672 = vpop.permute.xlu0 %671
      %s674 = sor.u32 256, 112
      %675 = vbcast.lane.b32.xlu0 %v617, %s674
      %v676 = vpop.permute.xlu0 %675
      %s678 = sor.u32 256, 120
      %679 = vbcast.lane.b32.xlu0 %v617, %s678
      %v680 = vpop.permute.xlu0 %679
      %v681 = vcombine.low %v218, %v352
      %v682 = vcombine.high %v218, %v352
      %v684 = vunpack.c.l.s4 1983009808
      %v685 = vunpack.c.0.s8 %v684
      %v686 = vlaneseq
      %v687 = vshrl.u32 %v686, 7
      %v688 = vsub.s32 %v685, %v687
      %v689 = vrot.slane %v681, %v688
      %v691 = vunpack.c.l.s4 1983009808
      %v692 = vunpack.c.0.s8 %v691
      %v693 = vlaneseq
      %v694 = vshrl.u32 %v693, 7
      %v695 = vsub.s32 %v692, %v694
      %v696 = vrot.slane %v682, %v695
      %v697 = vcombine.low %v285, %v419
      %v698 = vcombine.high %v285, %v419
      %v700 = vunpack.c.l.s4 1983009808
      %v701 = vunpack.c.0.s8 %v700
      %v702 = vlaneseq
      %v703 = vshrl.u32 %v702, 7
      %v704 = vsub.s32 %v701, %v703
      %v705 = vrot.slane %v697, %v704
      %v707 = vunpack.c.l.s4 1983009808
      %v708 = vunpack.c.0.s8 %v707
      %v709 = vlaneseq
      %v710 = vshrl.u32 %v709, 7
      %v711 = vsub.s32 %v708, %v710
      %v712 = vrot.slane %v698, %v711
      %v713 = vcombine.low %v486, %v620
      %v714 = vcombine.high %v486, %v620
      %v716 = vunpack.c.l.s4 1983009808
      %v717 = vunpack.c.0.s8 %v716
      %v718 = vlaneseq
      %v719 = vshrl.u32 %v718, 7
      %v720 = vsub.s32 %v717, %v719
      %v721 = vrot.slane %v713, %v720
      %v723 = vunpack.c.l.s4 1983009808
      %v724 = vunpack.c.0.s8 %v723
      %v725 = vlaneseq
      %v726 = vshrl.u32 %v725, 7
      %v727 = vsub.s32 %v724, %v726
      %v728 = vrot.slane %v714, %v727
      %v729 = vcombine.high %v553, 0.0
      %v731 = vunpack.c.l.s4 1983009808
      %v732 = vunpack.c.0.s8 %v731
      %v733 = vlaneseq
      %v734 = vshrl.u32 %v733, 7
      %v735 = vsub.s32 %v732, %v734
      %v736 = vrot.slane %v553, %v735
      %v738 = vunpack.c.l.s4 1983009808
      %v739 = vunpack.c.0.s8 %v738
      %v740 = vlaneseq
      %v741 = vshrl.u32 %v740, 7
      %v742 = vsub.s32 %v739, %v741
      %v743 = vrot.slane %v729, %v742
      %v744 = vcombine.low %v689, %v705
      %v745 = vcombine.high %v689, %v705
      %v747 = vunpack.c.l.s4 1934713408
      %v748 = vunpack.c.0.s8 %v747
      %v749 = vlaneseq
      %v750 = vshrl.u32 %v749, 7
      %v751 = vsub.s32 %v748, %v750
      %v752 = vrot.slane %v744, %v751
      %v754 = vunpack.c.l.s4 1934713408
      %v755 = vunpack.c.0.s8 %v754
      %v756 = vlaneseq
      %v757 = vshrl.u32 %v756, 7
      %v758 = vsub.s32 %v755, %v757
      %v759 = vrot.slane %v745, %v758
      %v760 = vcombine.low %v696, %v712
      %v761 = vcombine.high %v696, %v712
      %v763 = vunpack.c.l.s4 1934713408
      %v764 = vunpack.c.0.s8 %v763
      %v765 = vlaneseq
      %v766 = vshrl.u32 %v765, 7
      %v767 = vsub.s32 %v764, %v766
      %v768 = vrot.slane %v760, %v767
      %v770 = vunpack.c.l.s4 1934713408
      %v771 = vunpack.c.0.s8 %v770
      %v772 = vlaneseq
      %v773 = vshrl.u32 %v772, 7
      %v774 = vsub.s32 %v771, %v773
      %v775 = vrot.slane %v761, %v774
      %v776 = vcombine.low %v721, %v736
      %v777 = vcombine.high %v721, %v736
      %v779 = vunpack.c.l.s4 1934713408
      %v780 = vunpack.c.0.s8 %v779
      %v781 = vlaneseq
      %v782 = vshrl.u32 %v781, 7
      %v783 = vsub.s32 %v780, %v782
      %v784 = vrot.slane %v776, %v783
      %v786 = vunpack.c.l.s4 1934713408
      %v787 = vunpack.c.0.s8 %v786
      %v788 = vlaneseq
      %v789 = vshrl.u32 %v788, 7
      %v790 = vsub.s32 %v787, %v789
      %v791 = vrot.slane %v777, %v790
      %v792 = vcombine.low %v728, %v743
      %v793 = vcombine.high %v728, %v743
      %v795 = vunpack.c.l.s4 1934713408
      %v796 = vunpack.c.0.s8 %v795
      %v797 = vlaneseq
      %v798 = vshrl.u32 %v797, 7
      %v799 = vsub.s32 %v796, %v798
      %v800 = vrot.slane %v792, %v799
      %v802 = vunpack.c.l.s4 1934713408
      %v803 = vunpack.c.0.s8 %v802
      %v804 = vlaneseq
      %v805 = vshrl.u32 %v804, 7
      %v806 = vsub.s32 %v803, %v805
      %v807 = vrot.slane %v793, %v806
      %v808 = vcombine.low %v752, %v784
      %v809 = vcombine.high %v752, %v784
      %v810 = vcombine.low %v759, %v791
      %v811 = vcombine.high %v759, %v791
      %v812 = vcombine.low %v768, %v800
      %v813 = vcombine.high %v768, %v800
      %v814 = vcombine.low %v775, %v807
      %v815 = vcombine.high %v775, %v807
      %v816 = vcombine.low %v222, %v356
      %v817 = vcombine.high %v222, %v356
      %v819 = vunpack.c.l.s4 1983009808
      %v820 = vunpack.c.0.s8 %v819
      %v821 = vlaneseq
      %v822 = vshrl.u32 %v821, 7
      %v823 = vsub.s32 %v820, %v822
      %v824 = vrot.slane %v816, %v823
      %v826 = vunpack.c.l.s4 1983009808
      %v827 = vunpack.c.0.s8 %v826
      %v828 = vlaneseq
      %v829 = vshrl.u32 %v828, 7
      %v830 = vsub.s32 %v827, %v829
      %v831 = vrot.slane %v817, %v830
      %v832 = vcombine.low %v289, %v423
      %v833 = vcombine.high %v289, %v423
      %v835 = vunpack.c.l.s4 1983009808
      %v836 = vunpack.c.0.s8 %v835
      %v837 = vlaneseq
      %v838 = vshrl.u32 %v837, 7
      %v839 = vsub.s32 %v836, %v838
      %v840 = vrot.slane %v832, %v839
      %v842 = vunpack.c.l.s4 1983009808
      %v843 = vunpack.c.0.s8 %v842
      %v844 = vlaneseq
      %v845 = vshrl.u32 %v844, 7
      %v846 = vsub.s32 %v843, %v845
      %v847 = vrot.slane %v833, %v846
      %v848 = vcombine.low %v490, %v624
      %v849 = vcombine.high %v490, %v624
      %v851 = vunpack.c.l.s4 1983009808
      %v852 = vunpack.c.0.s8 %v851
      %v853 = vlaneseq
      %v854 = vshrl.u32 %v853, 7
      %v855 = vsub.s32 %v852, %v854
      %v856 = vrot.slane %v848, %v855
      %v858 = vunpack.c.l.s4 1983009808
      %v859 = vunpack.c.0.s8 %v858
      %v860 = vlaneseq
      %v861 = vshrl.u32 %v860, 7
      %v862 = vsub.s32 %v859, %v861
      %v863 = vrot.slane %v849, %v862
      %v864 = vcombine.high %v557, 0.0
      %v866 = vunpack.c.l.s4 1983009808
      %v867 = vunpack.c.0.s8 %v866
      %v868 = vlaneseq
      %v869 = vshrl.u32 %v868, 7
      %v870 = vsub.s32 %v867, %v869
      %v871 = vrot.slane %v557, %v870
      %v873 = vunpack.c.l.s4 1983009808
      %v874 = vunpack.c.0.s8 %v873
      %v875 = vlaneseq
      %v876 = vshrl.u32 %v875, 7
      %v877 = vsub.s32 %v874, %v876
      %v878 = vrot.slane %v864, %v877
      %v879 = vcombine.low %v824, %v840
      %v880 = vcombine.high %v824, %v840
      %v882 = vunpack.c.l.s4 1934713408
      %v883 = vunpack.c.0.s8 %v882
      %v884 = vlaneseq
      %v885 = vshrl.u32 %v884, 7
      %v886 = vsub.s32 %v883, %v885
      %v887 = vrot.slane %v879, %v886
      %v889 = vunpack.c.l.s4 1934713408
      %v890 = vunpack.c.0.s8 %v889
      %v891 = vlaneseq
      %v892 = vshrl.u32 %v891, 7
      %v893 = vsub.s32 %v890, %v892
      %v894 = vrot.slane %v880, %v893
      %v895 = vcombine.low %v831, %v847
      %v896 = vcombine.high %v831, %v847
      %v898 = vunpack.c.l.s4 1934713408
      %v899 = vunpack.c.0.s8 %v898
      %v900 = vlaneseq
      %v901 = vshrl.u32 %v900, 7
      %v902 = vsub.s32 %v899, %v901
      %v903 = vrot.slane %v895, %v902
      %v905 = vunpack.c.l.s4 1934713408
      %v906 = vunpack.c.0.s8 %v905
      %v907 = vlaneseq
      %v908 = vshrl.u32 %v907, 7
      %v909 = vsub.s32 %v906, %v908
      %v910 = vrot.slane %v896, %v909
      %v911 = vcombine.low %v856, %v871
      %v912 = vcombine.high %v856, %v871
      %v914 = vunpack.c.l.s4 1934713408
      %v915 = vunpack.c.0.s8 %v914
      %v916 = vlaneseq
      %v917 = vshrl.u32 %v916, 7
      %v918 = vsub.s32 %v915, %v917
      %v919 = vrot.slane %v911, %v918
      %v921 = vunpack.c.l.s4 1934713408
      %v922 = vunpack.c.0.s8 %v921
      %v923 = vlaneseq
      %v924 = vshrl.u32 %v923, 7
      %v925 = vsub.s32 %v922, %v924
      %v926 = vrot.slane %v912, %v925
      %v927 = vcombine.low %v863, %v878
      %v928 = vcombine.high %v863, %v878
      %v930 = vunpack.c.l.s4 1934713408
      %v931 = vunpack.c.0.s8 %v930
      %v932 = vlaneseq
      %v933 = vshrl.u32 %v932, 7
      %v934 = vsub.s32 %v931, %v933
      %v935 = vrot.slane %v927, %v934
      %v937 = vunpack.c.l.s4 1934713408
      %v938 = vunpack.c.0.s8 %v937
      %v939 = vlaneseq
      %v940 = vshrl.u32 %v939, 7
      %v941 = vsub.s32 %v938, %v940
      %v942 = vrot.slane %v928, %v941
      %v943 = vcombine.low %v887, %v919
      %v944 = vcombine.high %v887, %v919
      %v945 = vcombine.low %v894, %v926
      %v946 = vcombine.high %v894, %v926
      %v947 = vcombine.low %v903, %v935
      %v948 = vcombine.high %v903, %v935
      %v949 = vcombine.low %v910, %v942
      %v950 = vcombine.high %v910, %v942
      %v951 = vcombine.low %v226, %v360
      %v952 = vcombine.high %v226, %v360
      %v954 = vunpack.c.l.s4 1983009808
      %v955 = vunpack.c.0.s8 %v954
      %v956 = vlaneseq
      %v957 = vshrl.u32 %v956, 7
      %v958 = vsub.s32 %v955, %v957
      %v959 = vrot.slane %v951, %v958
      %v961 = vunpack.c.l.s4 1983009808
      %v962 = vunpack.c.0.s8 %v961
      %v963 = vlaneseq
      %v964 = vshrl.u32 %v963, 7
      %v965 = vsub.s32 %v962, %v964
      %v966 = vrot.slane %v952, %v965
      %v967 = vcombine.low %v293, %v427
      %v968 = vcombine.high %v293, %v427
      %v970 = vunpack.c.l.s4 1983009808
      %v971 = vunpack.c.0.s8 %v970
      %v972 = vlaneseq
      %v973 = vshrl.u32 %v972, 7
      %v974 = vsub.s32 %v971, %v973
      %v975 = vrot.slane %v967, %v974
      %v977 = vunpack.c.l.s4 1983009808
      %v978 = vunpack.c.0.s8 %v977
      %v979 = vlaneseq
      %v980 = vshrl.u32 %v979, 7
      %v981 = vsub.s32 %v978, %v980
      %v982 = vrot.slane %v968, %v981
      %v983 = vcombine.low %v494, %v628
      %v984 = vcombine.high %v494, %v628
      %v986 = vunpack.c.l.s4 1983009808
      %v987 = vunpack.c.0.s8 %v986
      %v988 = vlaneseq
      %v989 = vshrl.u32 %v988, 7
      %v990 = vsub.s32 %v987, %v989
      %v991 = vrot.slane %v983, %v990
      %v993 = vunpack.c.l.s4 1983009808
      %v994 = vunpack.c.0.s8 %v993
      %v995 = vlaneseq
      %v996 = vshrl.u32 %v995, 7
      %v997 = vsub.s32 %v994, %v996
      %v998 = vrot.slane %v984, %v997
      %v999 = vcombine.high %v561, 0.0
      %v1001 = vunpack.c.l.s4 1983009808
      %v1002 = vunpack.c.0.s8 %v1001
      %v1003 = vlaneseq
      %v1004 = vshrl.u32 %v1003, 7
      %v1005 = vsub.s32 %v1002, %v1004
      %v1006 = vrot.slane %v561, %v1005
      %v1008 = vunpack.c.l.s4 1983009808
      %v1009 = vunpack.c.0.s8 %v1008
      %v1010 = vlaneseq
      %v1011 = vshrl.u32 %v1010, 7
      %v1012 = vsub.s32 %v1009, %v1011
      %v1013 = vrot.slane %v999, %v1012
      %v1014 = vcombine.low %v959, %v975
      %v1015 = vcombine.high %v959, %v975
      %v1017 = vunpack.c.l.s4 1934713408
      %v1018 = vunpack.c.0.s8 %v1017
      %v1019 = vlaneseq
      %v1020 = vshrl.u32 %v1019, 7
      %v1021 = vsub.s32 %v1018, %v1020
      %v1022 = vrot.slane %v1014, %v1021
      %v1024 = vunpack.c.l.s4 1934713408
      %v1025 = vunpack.c.0.s8 %v1024
      %v1026 = vlaneseq
      %v1027 = vshrl.u32 %v1026, 7
      %v1028 = vsub.s32 %v1025, %v1027
      %v1029 = vrot.slane %v1015, %v1028
      %v1030 = vcombine.low %v966, %v982
      %v1031 = vcombine.high %v966, %v982
      %v1033 = vunpack.c.l.s4 1934713408
      %v1034 = vunpack.c.0.s8 %v1033
      %v1035 = vlaneseq
      %v1036 = vshrl.u32 %v1035, 7
      %v1037 = vsub.s32 %v1034, %v1036
      %v1038 = vrot.slane %v1030, %v1037
      %v1040 = vunpack.c.l.s4 1934713408
      %v1041 = vunpack.c.0.s8 %v1040
      %v1042 = vlaneseq
      %v1043 = vshrl.u32 %v1042, 7
      %v1044 = vsub.s32 %v1041, %v1043
      %v1045 = vrot.slane %v1031, %v1044
      %v1046 = vcombine.low %v991, %v1006
      %v1047 = vcombine.high %v991, %v1006
      %v1049 = vunpack.c.l.s4 1934713408
      %v1050 = vunpack.c.0.s8 %v1049
      %v1051 = vlaneseq
      %v1052 = vshrl.u32 %v1051, 7
      %v1053 = vsub.s32 %v1050, %v1052
      %v1054 = vrot.slane %v1046, %v1053
      %v1056 = vunpack.c.l.s4 1934713408
      %v1057 = vunpack.c.0.s8 %v1056
      %v1058 = vlaneseq
      %v1059 = vshrl.u32 %v1058, 7
      %v1060 = vsub.s32 %v1057, %v1059
      %v1061 = vrot.slane %v1047, %v1060
      %v1062 = vcombine.low %v998, %v1013
      %v1063 = vcombine.high %v998, %v1013
      %v1065 = vunpack.c.l.s4 1934713408
      %v1066 = vunpack.c.0.s8 %v1065
      %v1067 = vlaneseq
      %v1068 = vshrl.u32 %v1067, 7
      %v1069 = vsub.s32 %v1066, %v1068
      %v1070 = vrot.slane %v1062, %v1069
      %v1072 = vunpack.c.l.s4 1934713408
      %v1073 = vunpack.c.0.s8 %v1072
      %v1074 = vlaneseq
      %v1075 = vshrl.u32 %v1074, 7
      %v1076 = vsub.s32 %v1073, %v1075
      %v1077 = vrot.slane %v1063, %v1076
      %v1078 = vcombine.low %v1022, %v1054
      %v1079 = vcombine.high %v1022, %v1054
      %v1080 = vcombine.low %v1029, %v1061
      %v1081 = vcombine.high %v1029, %v1061
      %v1082 = vcombine.low %v1038, %v1070
      %v1083 = vcombine.high %v1038, %v1070
      %v1084 = vcombine.low %v1045, %v1077
      %v1085 = vcombine.high %v1045, %v1077
      %v1086 = vcombine.low %v230, %v364
      %v1087 = vcombine.high %v230, %v364
      %v1089 = vunpack.c.l.s4 1983009808
      %v1090 = vunpack.c.0.s8 %v1089
      %v1091 = vlaneseq
      %v1092 = vshrl.u32 %v1091, 7
      %v1093 = vsub.s32 %v1090, %v1092
      %v1094 = vrot.slane %v1086, %v1093
      %v1096 = vunpack.c.l.s4 1983009808
      %v1097 = vunpack.c.0.s8 %v1096
      %v1098 = vlaneseq
      %v1099 = vshrl.u32 %v1098, 7
      %v1100 = vsub.s32 %v1097, %v1099
      %v1101 = vrot.slane %v1087, %v1100
      %v1102 = vcombine.low %v297, %v431
      %v1103 = vcombine.high %v297, %v431
      %v1105 = vunpack.c.l.s4 1983009808
      %v1106 = vunpack.c.0.s8 %v1105
      %v1107 = vlaneseq
      %v1108 = vshrl.u32 %v1107, 7
      %v1109 = vsub.s32 %v1106, %v1108
      %v1110 = vrot.slane %v1102, %v1109
      %v1112 = vunpack.c.l.s4 1983009808
      %v1113 = vunpack.c.0.s8 %v1112
      %v1114 = vlaneseq
      %v1115 = vshrl.u32 %v1114, 7
      %v1116 = vsub.s32 %v1113, %v1115
      %v1117 = vrot.slane %v1103, %v1116
      %v1118 = vcombine.low %v498, %v632
      %v1119 = vcombine.high %v498, %v632
      %v1121 = vunpack.c.l.s4 1983009808
      %v1122 = vunpack.c.0.s8 %v1121
      %v1123 = vlaneseq
      %v1124 = vshrl.u32 %v1123, 7
      %v1125 = vsub.s32 %v1122, %v1124
      %v1126 = vrot.slane %v1118, %v1125
      %v1128 = vunpack.c.l.s4 1983009808
      %v1129 = vunpack.c.0.s8 %v1128
      %v1130 = vlaneseq
      %v1131 = vshrl.u32 %v1130, 7
      %v1132 = vsub.s32 %v1129, %v1131
      %v1133 = vrot.slane %v1119, %v1132
      %v1134 = vcombine.high %v565, 0.0
      %v1136 = vunpack.c.l.s4 1983009808
      %v1137 = vunpack.c.0.s8 %v1136
      %v1138 = vlaneseq
      %v1139 = vshrl.u32 %v1138, 7
      %v1140 = vsub.s32 %v1137, %v1139
      %v1141 = vrot.slane %v565, %v1140
      %v1143 = vunpack.c.l.s4 1983009808
      %v1144 = vunpack.c.0.s8 %v1143
      %v1145 = vlaneseq
      %v1146 = vshrl.u32 %v1145, 7
      %v1147 = vsub.s32 %v1144, %v1146
      %v1148 = vrot.slane %v1134, %v1147
      %v1149 = vcombine.low %v1094, %v1110
      %v1150 = vcombine.high %v1094, %v1110
      %v1152 = vunpack.c.l.s4 1934713408
      %v1153 = vunpack.c.0.s8 %v1152
      %v1154 = vlaneseq
      %v1155 = vshrl.u32 %v1154, 7
      %v1156 = vsub.s32 %v1153, %v1155
      %v1157 = vrot.slane %v1149, %v1156
      %v1159 = vunpack.c.l.s4 1934713408
      %v1160 = vunpack.c.0.s8 %v1159
      %v1161 = vlaneseq
      %v1162 = vshrl.u32 %v1161, 7
      %v1163 = vsub.s32 %v1160, %v1162
      %v1164 = vrot.slane %v1150, %v1163
      %v1165 = vcombine.low %v1101, %v1117
      %v1166 = vcombine.high %v1101, %v1117
      %v1168 = vunpack.c.l.s4 1934713408
      %v1169 = vunpack.c.0.s8 %v1168
      %v1170 = vlaneseq
      %v1171 = vshrl.u32 %v1170, 7
      %v1172 = vsub.s32 %v1169, %v1171
      %v1173 = vrot.slane %v1165, %v1172
      %v1175 = vunpack.c.l.s4 1934713408
      %v1176 = vunpack.c.0.s8 %v1175
      %v1177 = vlaneseq
      %v1178 = vshrl.u32 %v1177, 7
      %v1179 = vsub.s32 %v1176, %v1178
      %v1180 = vrot.slane %v1166, %v1179
      %v1181 = vcombine.low %v1126, %v1141
      %v1182 = vcombine.high %v1126, %v1141
      %v1184 = vunpack.c.l.s4 1934713408
      %v1185 = vunpack.c.0.s8 %v1184
      %v1186 = vlaneseq
      %v1187 = vshrl.u32 %v1186, 7
      %v1188 = vsub.s32 %v1185, %v1187
      %v1189 = vrot.slane %v1181, %v1188
      %v1191 = vunpack.c.l.s4 1934713408
      %v1192 = vunpack.c.0.s8 %v1191
      %v1193 = vlaneseq
      %v1194 = vshrl.u32 %v1193, 7
      %v1195 = vsub.s32 %v1192, %v1194
      %v1196 = vrot.slane %v1182, %v1195
      %v1197 = vcombine.low %v1133, %v1148
      %v1198 = vcombine.high %v1133, %v1148
      %v1200 = vunpack.c.l.s4 1934713408
      %v1201 = vunpack.c.0.s8 %v1200
      %v1202 = vlaneseq
      %v1203 = vshrl.u32 %v1202, 7
      %v1204 = vsub.s32 %v1201, %v1203
      %v1205 = vrot.slane %v1197, %v1204
      %v1207 = vunpack.c.l.s4 1934713408
      %v1208 = vunpack.c.0.s8 %v1207
      %v1209 = vlaneseq
      %v1210 = vshrl.u32 %v1209, 7
      %v1211 = vsub.s32 %v1208, %v1210
      %v1212 = vrot.slane %v1198, %v1211
      %v1213 = vcombine.low %v1157, %v1189
      %v1214 = vcombine.high %v1157, %v1189
      %v1215 = vcombine.low %v1164, %v1196
      %v1216 = vcombine.high %v1164, %v1196
      %v1217 = vcombine.low %v1173, %v1205
      %v1218 = vcombine.high %v1173, %v1205
      %v1219 = vcombine.low %v1180, %v1212
      %v1220 = vcombine.high %v1180, %v1212
      %v1221 = vcombine.low %v234, %v368
      %v1222 = vcombine.high %v234, %v368
      %v1224 = vunpack.c.l.s4 1983009808
      %v1225 = vunpack.c.0.s8 %v1224
      %v1226 = vlaneseq
      %v1227 = vshrl.u32 %v1226, 7
      %v1228 = vsub.s32 %v1225, %v1227
      %v1229 = vrot.slane %v1221, %v1228
      %v1231 = vunpack.c.l.s4 1983009808
      %v1232 = vunpack.c.0.s8 %v1231
      %v1233 = vlaneseq
      %v1234 = vshrl.u32 %v1233, 7
      %v1235 = vsub.s32 %v1232, %v1234
      %v1236 = vrot.slane %v1222, %v1235
      %v1237 = vcombine.low %v301, %v435
      %v1238 = vcombine.high %v301, %v435
      %v1240 = vunpack.c.l.s4 1983009808
      %v1241 = vunpack.c.0.s8 %v1240
      %v1242 = vlaneseq
      %v1243 = vshrl.u32 %v1242, 7
      %v1244 = vsub.s32 %v1241, %v1243
      %v1245 = vrot.slane %v1237, %v1244
      %v1247 = vunpack.c.l.s4 1983009808
      %v1248 = vunpack.c.0.s8 %v1247
      %v1249 = vlaneseq
      %v1250 = vshrl.u32 %v1249, 7
      %v1251 = vsub.s32 %v1248, %v1250
      %v1252 = vrot.slane %v1238, %v1251
      %v1253 = vcombine.low %v502, %v636
      %v1254 = vcombine.high %v502, %v636
      %v1256 = vunpack.c.l.s4 1983009808
      %v1257 = vunpack.c.0.s8 %v1256
      %v1258 = vlaneseq
      %v1259 = vshrl.u32 %v1258, 7
      %v1260 = vsub.s32 %v1257, %v1259
      %v1261 = vrot.slane %v1253, %v1260
      %v1263 = vunpack.c.l.s4 1983009808
      %v1264 = vunpack.c.0.s8 %v1263
      %v1265 = vlaneseq
      %v1266 = vshrl.u32 %v1265, 7
      %v1267 = vsub.s32 %v1264, %v1266
      %v1268 = vrot.slane %v1254, %v1267
      %v1269 = vcombine.high %v569, 0.0
      %v1271 = vunpack.c.l.s4 1983009808
      %v1272 = vunpack.c.0.s8 %v1271
      %v1273 = vlaneseq
      %v1274 = vshrl.u32 %v1273, 7
      %v1275 = vsub.s32 %v1272, %v1274
      %v1276 = vrot.slane %v569, %v1275
      %v1278 = vunpack.c.l.s4 1983009808
      %v1279 = vunpack.c.0.s8 %v1278
      %v1280 = vlaneseq
      %v1281 = vshrl.u32 %v1280, 7
      %v1282 = vsub.s32 %v1279, %v1281
      %v1283 = vrot.slane %v1269, %v1282
      %v1284 = vcombine.low %v1229, %v1245
      %v1285 = vcombine.high %v1229, %v1245
      %v1287 = vunpack.c.l.s4 1934713408
      %v1288 = vunpack.c.0.s8 %v1287
      %v1289 = vlaneseq
      %v1290 = vshrl.u32 %v1289, 7
      %v1291 = vsub.s32 %v1288, %v1290
      %v1292 = vrot.slane %v1284, %v1291
      %v1294 = vunpack.c.l.s4 1934713408
      %v1295 = vunpack.c.0.s8 %v1294
      %v1296 = vlaneseq
      %v1297 = vshrl.u32 %v1296, 7
      %v1298 = vsub.s32 %v1295, %v1297
      %v1299 = vrot.slane %v1285, %v1298
      %v1300 = vcombine.low %v1236, %v1252
      %v1301 = vcombine.high %v1236, %v1252
      %v1303 = vunpack.c.l.s4 1934713408
      %v1304 = vunpack.c.0.s8 %v1303
      %v1305 = vlaneseq
      %v1306 = vshrl.u32 %v1305, 7
      %v1307 = vsub.s32 %v1304, %v1306
      %v1308 = vrot.slane %v1300, %v1307
      %v1310 = vunpack.c.l.s4 1934713408
      %v1311 = vunpack.c.0.s8 %v1310
      %v1312 = vlaneseq
      %v1313 = vshrl.u32 %v1312, 7
      %v1314 = vsub.s32 %v1311, %v1313
      %v1315 = vrot.slane %v1301, %v1314
      %v1316 = vcombine.low %v1261, %v1276
      %v1317 = vcombine.high %v1261, %v1276
      %v1319 = vunpack.c.l.s4 1934713408
      %v1320 = vunpack.c.0.s8 %v1319
      %v1321 = vlaneseq
      %v1322 = vshrl.u32 %v1321, 7
      %v1323 = vsub.s32 %v1320, %v1322
      %v1324 = vrot.slane %v1316, %v1323
      %v1326 = vunpack.c.l.s4 1934713408
      %v1327 = vunpack.c.0.s8 %v1326
      %v1328 = vlaneseq
      %v1329 = vshrl.u32 %v1328, 7
      %v1330 = vsub.s32 %v1327, %v1329
      %v1331 = vrot.slane %v1317, %v1330
      %v1332 = vcombine.low %v1268, %v1283
      %v1333 = vcombine.high %v1268, %v1283
      %v1335 = vunpack.c.l.s4 1934713408
      %v1336 = vunpack.c.0.s8 %v1335
      %v1337 = vlaneseq
      %v1338 = vshrl.u32 %v1337, 7
      %v1339 = vsub.s32 %v1336, %v1338
      %v1340 = vrot.slane %v1332, %v1339
      %v1342 = vunpack.c.l.s4 1934713408
      %v1343 = vunpack.c.0.s8 %v1342
      %v1344 = vlaneseq
      %v1345 = vshrl.u32 %v1344, 7
      %v1346 = vsub.s32 %v1343, %v1345
      %v1347 = vrot.slane %v1333, %v1346
      %v1348 = vcombine.low %v1292, %v1324
      %v1349 = vcombine.high %v1292, %v1324
      %v1350 = vcombine.low %v1299, %v1331
      %v1351 = vcombine.high %v1299, %v1331
      %v1352 = vcombine.low %v1308, %v1340
      %v1353 = vcombine.high %v1308, %v1340
      %v1354 = vcombine.low %v1315, %v1347
      %v1355 = vcombine.high %v1315, %v1347
      %v1356 = vcombine.low %v238, %v372
      %v1357 = vcombine.high %v238, %v372
      %v1359 = vunpack.c.l.s4 1983009808
      %v1360 = vunpack.c.0.s8 %v1359
      %v1361 = vlaneseq
      %v1362 = vshrl.u32 %v1361, 7
      %v1363 = vsub.s32 %v1360, %v1362
      %v1364 = vrot.slane %v1356, %v1363
      %v1366 = vunpack.c.l.s4 1983009808
      %v1367 = vunpack.c.0.s8 %v1366
      %v1368 = vlaneseq
      %v1369 = vshrl.u32 %v1368, 7
      %v1370 = vsub.s32 %v1367, %v1369
      %v1371 = vrot.slane %v1357, %v1370
      %v1372 = vcombine.low %v305, %v439
      %v1373 = vcombine.high %v305, %v439
      %v1375 = vunpack.c.l.s4 1983009808
      %v1376 = vunpack.c.0.s8 %v1375
      %v1377 = vlaneseq
      %v1378 = vshrl.u32 %v1377, 7
      %v1379 = vsub.s32 %v1376, %v1378
      %v1380 = vrot.slane %v1372, %v1379
      %v1382 = vunpack.c.l.s4 1983009808
      %v1383 = vunpack.c.0.s8 %v1382
      %v1384 = vlaneseq
      %v1385 = vshrl.u32 %v1384, 7
      %v1386 = vsub.s32 %v1383, %v1385
      %v1387 = vrot.slane %v1373, %v1386
      %v1388 = vcombine.low %v506, %v640
      %v1389 = vcombine.high %v506, %v640
      %v1391 = vunpack.c.l.s4 1983009808
      %v1392 = vunpack.c.0.s8 %v1391
      %v1393 = vlaneseq
      %v1394 = vshrl.u32 %v1393, 7
      %v1395 = vsub.s32 %v1392, %v1394
      %v1396 = vrot.slane %v1388, %v1395
      %v1398 = vunpack.c.l.s4 1983009808
      %v1399 = vunpack.c.0.s8 %v1398
      %v1400 = vlaneseq
      %v1401 = vshrl.u32 %v1400, 7
      %v1402 = vsub.s32 %v1399, %v1401
      %v1403 = vrot.slane %v1389, %v1402
      %v1404 = vcombine.high %v573, 0.0
      %v1406 = vunpack.c.l.s4 1983009808
      %v1407 = vunpack.c.0.s8 %v1406
      %v1408 = vlaneseq
      %v1409 = vshrl.u32 %v1408, 7
      %v1410 = vsub.s32 %v1407, %v1409
      %v1411 = vrot.slane %v573, %v1410
      %v1413 = vunpack.c.l.s4 1983009808
      %v1414 = vunpack.c.0.s8 %v1413
      %v1415 = vlaneseq
      %v1416 = vshrl.u32 %v1415, 7
      %v1417 = vsub.s32 %v1414, %v1416
      %v1418 = vrot.slane %v1404, %v1417
      %v1419 = vcombine.low %v1364, %v1380
      %v1420 = vcombine.high %v1364, %v1380
      %v1422 = vunpack.c.l.s4 1934713408
      %v1423 = vunpack.c.0.s8 %v1422
      %v1424 = vlaneseq
      %v1425 = vshrl.u32 %v1424, 7
      %v1426 = vsub.s32 %v1423, %v1425
      %v1427 = vrot.slane %v1419, %v1426
      %v1429 = vunpack.c.l.s4 1934713408
      %v1430 = vunpack.c.0.s8 %v1429
      %v1431 = vlaneseq
      %v1432 = vshrl.u32 %v1431, 7
      %v1433 = vsub.s32 %v1430, %v1432
      %v1434 = vrot.slane %v1420, %v1433
      %v1435 = vcombine.low %v1371, %v1387
      %v1436 = vcombine.high %v1371, %v1387
      %v1438 = vunpack.c.l.s4 1934713408
      %v1439 = vunpack.c.0.s8 %v1438
      %v1440 = vlaneseq
      %v1441 = vshrl.u32 %v1440, 7
      %v1442 = vsub.s32 %v1439, %v1441
      %v1443 = vrot.slane %v1435, %v1442
      %v1445 = vunpack.c.l.s4 1934713408
      %v1446 = vunpack.c.0.s8 %v1445
      %v1447 = vlaneseq
      %v1448 = vshrl.u32 %v1447, 7
      %v1449 = vsub.s32 %v1446, %v1448
      %v1450 = vrot.slane %v1436, %v1449
      %v1451 = vcombine.low %v1396, %v1411
      %v1452 = vcombine.high %v1396, %v1411
      %v1454 = vunpack.c.l.s4 1934713408
      %v1455 = vunpack.c.0.s8 %v1454
      %v1456 = vlaneseq
      %v1457 = vshrl.u32 %v1456, 7
      %v1458 = vsub.s32 %v1455, %v1457
      %v1459 = vrot.slane %v1451, %v1458
      %v1461 = vunpack.c.l.s4 1934713408
      %v1462 = vunpack.c.0.s8 %v1461
      %v1463 = vlaneseq
      %v1464 = vshrl.u32 %v1463, 7
      %v1465 = vsub.s32 %v1462, %v1464
      %v1466 = vrot.slane %v1452, %v1465
      %v1467 = vcombine.low %v1403, %v1418
      %v1468 = vcombine.high %v1403, %v1418
      %v1470 = vunpack.c.l.s4 1934713408
      %v1471 = vunpack.c.0.s8 %v1470
      %v1472 = vlaneseq
      %v1473 = vshrl.u32 %v1472, 7
      %v1474 = vsub.s32 %v1471, %v1473
      %v1475 = vrot.slane %v1467, %v1474
      %v1477 = vunpack.c.l.s4 1934713408
      %v1478 = vunpack.c.0.s8 %v1477
      %v1479 = vlaneseq
      %v1480 = vshrl.u32 %v1479, 7
      %v1481 = vsub.s32 %v1478, %v1480
      %v1482 = vrot.slane %v1468, %v1481
      %v1483 = vcombine.low %v1427, %v1459
      %v1484 = vcombine.high %v1427, %v1459
      %v1485 = vcombine.low %v1434, %v1466
      %v1486 = vcombine.high %v1434, %v1466
      %v1487 = vcombine.low %v1443, %v1475
      %v1488 = vcombine.high %v1443, %v1475
      %v1489 = vcombine.low %v1450, %v1482
      %v1490 = vcombine.high %v1450, %v1482
      %v1491 = vcombine.low %v242, %v376
      %v1492 = vcombine.high %v242, %v376
      %v1494 = vunpack.c.l.s4 1983009808
      %v1495 = vunpack.c.0.s8 %v1494
      %v1496 = vlaneseq
      %v1497 = vshrl.u32 %v1496, 7
      %v1498 = vsub.s32 %v1495, %v1497
      %v1499 = vrot.slane %v1491, %v1498
      %v1501 = vunpack.c.l.s4 1983009808
      %v1502 = vunpack.c.0.s8 %v1501
      %v1503 = vlaneseq
      %v1504 = vshrl.u32 %v1503, 7
      %v1505 = vsub.s32 %v1502, %v1504
      %v1506 = vrot.slane %v1492, %v1505
      %v1507 = vcombine.low %v309, %v443
      %v1508 = vcombine.high %v309, %v443
      %v1510 = vunpack.c.l.s4 1983009808
      %v1511 = vunpack.c.0.s8 %v1510
      %v1512 = vlaneseq
      %v1513 = vshrl.u32 %v1512, 7
      %v1514 = vsub.s32 %v1511, %v1513
      %v1515 = vrot.slane %v1507, %v1514
      %v1517 = vunpack.c.l.s4 1983009808
      %v1518 = vunpack.c.0.s8 %v1517
      %v1519 = vlaneseq
      %v1520 = vshrl.u32 %v1519, 7
      %v1521 = vsub.s32 %v1518, %v1520
      %v1522 = vrot.slane %v1508, %v1521
      %v1523 = vcombine.low %v510, %v644
      %v1524 = vcombine.high %v510, %v644
      %v1526 = vunpack.c.l.s4 1983009808
      %v1527 = vunpack.c.0.s8 %v1526
      %v1528 = vlaneseq
      %v1529 = vshrl.u32 %v1528, 7
      %v1530 = vsub.s32 %v1527, %v1529
      %v1531 = vrot.slane %v1523, %v1530
      %v1533 = vunpack.c.l.s4 1983009808
      %v1534 = vunpack.c.0.s8 %v1533
      %v1535 = vlaneseq
      %v1536 = vshrl.u32 %v1535, 7
      %v1537 = vsub.s32 %v1534, %v1536
      %v1538 = vrot.slane %v1524, %v1537
      %v1539 = vcombine.high %v577, 0.0
      %v1541 = vunpack.c.l.s4 1983009808
      %v1542 = vunpack.c.0.s8 %v1541
      %v1543 = vlaneseq
      %v1544 = vshrl.u32 %v1543, 7
      %v1545 = vsub.s32 %v1542, %v1544
      %v1546 = vrot.slane %v577, %v1545
      %v1548 = vunpack.c.l.s4 1983009808
      %v1549 = vunpack.c.0.s8 %v1548
      %v1550 = vlaneseq
      %v1551 = vshrl.u32 %v1550, 7
      %v1552 = vsub.s32 %v1549, %v1551
      %v1553 = vrot.slane %v1539, %v1552
      %v1554 = vcombine.low %v1499, %v1515
      %v1555 = vcombine.high %v1499, %v1515
      %v1557 = vunpack.c.l.s4 1934713408
      %v1558 = vunpack.c.0.s8 %v1557
      %v1559 = vlaneseq
      %v1560 = vshrl.u32 %v1559, 7
      %v1561 = vsub.s32 %v1558, %v1560
      %v1562 = vrot.slane %v1554, %v1561
      %v1564 = vunpack.c.l.s4 1934713408
      %v1565 = vunpack.c.0.s8 %v1564
      %v1566 = vlaneseq
      %v1567 = vshrl.u32 %v1566, 7
      %v1568 = vsub.s32 %v1565, %v1567
      %v1569 = vrot.slane %v1555, %v1568
      %v1570 = vcombine.low %v1506, %v1522
      %v1571 = vcombine.high %v1506, %v1522
      %v1573 = vunpack.c.l.s4 1934713408
      %v1574 = vunpack.c.0.s8 %v1573
      %v1575 = vlaneseq
      %v1576 = vshrl.u32 %v1575, 7
      %v1577 = vsub.s32 %v1574, %v1576
      %v1578 = vrot.slane %v1570, %v1577
      %v1580 = vunpack.c.l.s4 1934713408
      %v1581 = vunpack.c.0.s8 %v1580
      %v1582 = vlaneseq
      %v1583 = vshrl.u32 %v1582, 7
      %v1584 = vsub.s32 %v1581, %v1583
      %v1585 = vrot.slane %v1571, %v1584
      %v1586 = vcombine.low %v1531, %v1546
      %v1587 = vcombine.high %v1531, %v1546
      %v1589 = vunpack.c.l.s4 1934713408
      %v1590 = vunpack.c.0.s8 %v1589
      %v1591 = vlaneseq
      %v1592 = vshrl.u32 %v1591, 7
      %v1593 = vsub.s32 %v1590, %v1592
      %v1594 = vrot.slane %v1586, %v1593
      %v1596 = vunpack.c.l.s4 1934713408
      %v1597 = vunpack.c.0.s8 %v1596
      %v1598 = vlaneseq
      %v1599 = vshrl.u32 %v1598, 7
      %v1600 = vsub.s32 %v1597, %v1599
      %v1601 = vrot.slane %v1587, %v1600
      %v1602 = vcombine.low %v1538, %v1553
      %v1603 = vcombine.high %v1538, %v1553
      %v1605 = vunpack.c.l.s4 1934713408
      %v1606 = vunpack.c.0.s8 %v1605
      %v1607 = vlaneseq
      %v1608 = vshrl.u32 %v1607, 7
      %v1609 = vsub.s32 %v1606, %v1608
      %v1610 = vrot.slane %v1602, %v1609
      %v1612 = vunpack.c.l.s4 1934713408
      %v1613 = vunpack.c.0.s8 %v1612
      %v1614 = vlaneseq
      %v1615 = vshrl.u32 %v1614, 7
      %v1616 = vsub.s32 %v1613, %v1615
      %v1617 = vrot.slane %v1603, %v1616
      %v1618 = vcombine.low %v1562, %v1594
      %v1619 = vcombine.high %v1562, %v1594
      %v1620 = vcombine.low %v1569, %v1601
      %v1621 = vcombine.high %v1569, %v1601
      %v1622 = vcombine.low %v1578, %v1610
      %v1623 = vcombine.high %v1578, %v1610
      %v1624 = vcombine.low %v1585, %v1617
      %v1625 = vcombine.high %v1585, %v1617
      %v1626 = vcombine.low %v246, %v380
      %v1627 = vcombine.high %v246, %v380
      %v1629 = vunpack.c.l.s4 1983009808
      %v1630 = vunpack.c.0.s8 %v1629
      %v1631 = vlaneseq
      %v1632 = vshrl.u32 %v1631, 7
      %v1633 = vsub.s32 %v1630, %v1632
      %v1634 = vrot.slane %v1626, %v1633
      %v1636 = vunpack.c.l.s4 1983009808
      %v1637 = vunpack.c.0.s8 %v1636
      %v1638 = vlaneseq
      %v1639 = vshrl.u32 %v1638, 7
      %v1640 = vsub.s32 %v1637, %v1639
      %v1641 = vrot.slane %v1627, %v1640
      %v1642 = vcombine.low %v313, %v447
      %v1643 = vcombine.high %v313, %v447
      %v1645 = vunpack.c.l.s4 1983009808
      %v1646 = vunpack.c.0.s8 %v1645
      %v1647 = vlaneseq
      %v1648 = vshrl.u32 %v1647, 7
      %v1649 = vsub.s32 %v1646, %v1648
      %v1650 = vrot.slane %v1642, %v1649
      %v1652 = vunpack.c.l.s4 1983009808
      %v1653 = vunpack.c.0.s8 %v1652
      %v1654 = vlaneseq
      %v1655 = vshrl.u32 %v1654, 7
      %v1656 = vsub.s32 %v1653, %v1655
      %v1657 = vrot.slane %v1643, %v1656
      %v1658 = vcombine.low %v514, %v648
      %v1659 = vcombine.high %v514, %v648
      %v1661 = vunpack.c.l.s4 1983009808
      %v1662 = vunpack.c.0.s8 %v1661
      %v1663 = vlaneseq
      %v1664 = vshrl.u32 %v1663, 7
      %v1665 = vsub.s32 %v1662, %v1664
      %v1666 = vrot.slane %v1658, %v1665
      %v1668 = vunpack.c.l.s4 1983009808
      %v1669 = vunpack.c.0.s8 %v1668
      %v1670 = vlaneseq
      %v1671 = vshrl.u32 %v1670, 7
      %v1672 = vsub.s32 %v1669, %v1671
      %v1673 = vrot.slane %v1659, %v1672
      %v1674 = vcombine.high %v581, 0.0
      %v1676 = vunpack.c.l.s4 1983009808
      %v1677 = vunpack.c.0.s8 %v1676
      %v1678 = vlaneseq
      %v1679 = vshrl.u32 %v1678, 7
      %v1680 = vsub.s32 %v1677, %v1679
      %v1681 = vrot.slane %v581, %v1680
      %v1683 = vunpack.c.l.s4 1983009808
      %v1684 = vunpack.c.0.s8 %v1683
      %v1685 = vlaneseq
      %v1686 = vshrl.u32 %v1685, 7
      %v1687 = vsub.s32 %v1684, %v1686
      %v1688 = vrot.slane %v1674, %v1687
      %v1689 = vcombine.low %v1634, %v1650
      %v1690 = vcombine.high %v1634, %v1650
      %v1692 = vunpack.c.l.s4 1934713408
      %v1693 = vunpack.c.0.s8 %v1692
      %v1694 = vlaneseq
      %v1695 = vshrl.u32 %v1694, 7
      %v1696 = vsub.s32 %v1693, %v1695
      %v1697 = vrot.slane %v1689, %v1696
      %v1699 = vunpack.c.l.s4 1934713408
      %v1700 = vunpack.c.0.s8 %v1699
      %v1701 = vlaneseq
      %v1702 = vshrl.u32 %v1701, 7
      %v1703 = vsub.s32 %v1700, %v1702
      %v1704 = vrot.slane %v1690, %v1703
      %v1705 = vcombine.low %v1641, %v1657
      %v1706 = vcombine.high %v1641, %v1657
      %v1708 = vunpack.c.l.s4 1934713408
      %v1709 = vunpack.c.0.s8 %v1708
      %v1710 = vlaneseq
      %v1711 = vshrl.u32 %v1710, 7
      %v1712 = vsub.s32 %v1709, %v1711
      %v1713 = vrot.slane %v1705, %v1712
      %v1715 = vunpack.c.l.s4 1934713408
      %v1716 = vunpack.c.0.s8 %v1715
      %v1717 = vlaneseq
      %v1718 = vshrl.u32 %v1717, 7
      %v1719 = vsub.s32 %v1716, %v1718
      %v1720 = vrot.slane %v1706, %v1719
      %v1721 = vcombine.low %v1666, %v1681
      %v1722 = vcombine.high %v1666, %v1681
      %v1724 = vunpack.c.l.s4 1934713408
      %v1725 = vunpack.c.0.s8 %v1724
      %v1726 = vlaneseq
      %v1727 = vshrl.u32 %v1726, 7
      %v1728 = vsub.s32 %v1725, %v1727
      %v1729 = vrot.slane %v1721, %v1728
      %v1731 = vunpack.c.l.s4 1934713408
      %v1732 = vunpack.c.0.s8 %v1731
      %v1733 = vlaneseq
      %v1734 = vshrl.u32 %v1733, 7
      %v1735 = vsub.s32 %v1732, %v1734
      %v1736 = vrot.slane %v1722, %v1735
      %v1737 = vcombine.low %v1673, %v1688
      %v1738 = vcombine.high %v1673, %v1688
      %v1740 = vunpack.c.l.s4 1934713408
      %v1741 = vunpack.c.0.s8 %v1740
      %v1742 = vlaneseq
      %v1743 = vshrl.u32 %v1742, 7
      %v1744 = vsub.s32 %v1741, %v1743
      %v1745 = vrot.slane %v1737, %v1744
      %v1747 = vunpack.c.l.s4 1934713408
      %v1748 = vunpack.c.0.s8 %v1747
      %v1749 = vlaneseq
      %v1750 = vshrl.u32 %v1749, 7
      %v1751 = vsub.s32 %v1748, %v1750
      %v1752 = vrot.slane %v1738, %v1751
      %v1753 = vcombine.low %v1697, %v1729
      %v1754 = vcombine.high %v1697, %v1729
      %v1755 = vcombine.low %v1704, %v1736
      %v1756 = vcombine.high %v1704, %v1736
      %v1757 = vcombine.low %v1713, %v1745
      %v1758 = vcombine.high %v1713, %v1745
      %v1759 = vcombine.low %v1720, %v1752
      %v1760 = vcombine.high %v1720, %v1752
      %v1761 = vcombine.low %v250, %v384
      %v1762 = vcombine.high %v250, %v384
      %v1764 = vunpack.c.l.s4 1983009808
      %v1765 = vunpack.c.0.s8 %v1764
      %v1766 = vlaneseq
      %v1767 = vshrl.u32 %v1766, 7
      %v1768 = vsub.s32 %v1765, %v1767
      %v1769 = vrot.slane %v1761, %v1768
      %v1771 = vunpack.c.l.s4 1983009808
      %v1772 = vunpack.c.0.s8 %v1771
      %v1773 = vlaneseq
      %v1774 = vshrl.u32 %v1773, 7
      %v1775 = vsub.s32 %v1772, %v1774
      %v1776 = vrot.slane %v1762, %v1775
      %v1777 = vcombine.low %v317, %v451
      %v1778 = vcombine.high %v317, %v451
      %v1780 = vunpack.c.l.s4 1983009808
      %v1781 = vunpack.c.0.s8 %v1780
      %v1782 = vlaneseq
      %v1783 = vshrl.u32 %v1782, 7
      %v1784 = vsub.s32 %v1781, %v1783
      %v1785 = vrot.slane %v1777, %v1784
      %v1787 = vunpack.c.l.s4 1983009808
      %v1788 = vunpack.c.0.s8 %v1787
      %v1789 = vlaneseq
      %v1790 = vshrl.u32 %v1789, 7
      %v1791 = vsub.s32 %v1788, %v1790
      %v1792 = vrot.slane %v1778, %v1791
      %v1793 = vcombine.low %v518, %v652
      %v1794 = vcombine.high %v518, %v652
      %v1796 = vunpack.c.l.s4 1983009808
      %v1797 = vunpack.c.0.s8 %v1796
      %v1798 = vlaneseq
      %v1799 = vshrl.u32 %v1798, 7
      %v1800 = vsub.s32 %v1797, %v1799
      %v1801 = vrot.slane %v1793, %v1800
      %v1803 = vunpack.c.l.s4 1983009808
      %v1804 = vunpack.c.0.s8 %v1803
      %v1805 = vlaneseq
      %v1806 = vshrl.u32 %v1805, 7
      %v1807 = vsub.s32 %v1804, %v1806
      %v1808 = vrot.slane %v1794, %v1807
      %v1809 = vcombine.high %v585, 0.0
      %v1811 = vunpack.c.l.s4 1983009808
      %v1812 = vunpack.c.0.s8 %v1811
      %v1813 = vlaneseq
      %v1814 = vshrl.u32 %v1813, 7
      %v1815 = vsub.s32 %v1812, %v1814
      %v1816 = vrot.slane %v585, %v1815
      %v1818 = vunpack.c.l.s4 1983009808
      %v1819 = vunpack.c.0.s8 %v1818
      %v1820 = vlaneseq
      %v1821 = vshrl.u32 %v1820, 7
      %v1822 = vsub.s32 %v1819, %v1821
      %v1823 = vrot.slane %v1809, %v1822
      %v1824 = vcombine.low %v1769, %v1785
      %v1825 = vcombine.high %v1769, %v1785
      %v1827 = vunpack.c.l.s4 1934713408
      %v1828 = vunpack.c.0.s8 %v1827
      %v1829 = vlaneseq
      %v1830 = vshrl.u32 %v1829, 7
      %v1831 = vsub.s32 %v1828, %v1830
      %v1832 = vrot.slane %v1824, %v1831
      %v1834 = vunpack.c.l.s4 1934713408
      %v1835 = vunpack.c.0.s8 %v1834
      %v1836 = vlaneseq
      %v1837 = vshrl.u32 %v1836, 7
      %v1838 = vsub.s32 %v1835, %v1837
      %v1839 = vrot.slane %v1825, %v1838
      %v1840 = vcombine.low %v1776, %v1792
      %v1841 = vcombine.high %v1776, %v1792
      %v1843 = vunpack.c.l.s4 1934713408
      %v1844 = vunpack.c.0.s8 %v1843
      %v1845 = vlaneseq
      %v1846 = vshrl.u32 %v1845, 7
      %v1847 = vsub.s32 %v1844, %v1846
      %v1848 = vrot.slane %v1840, %v1847
      %v1850 = vunpack.c.l.s4 1934713408
      %v1851 = vunpack.c.0.s8 %v1850
      %v1852 = vlaneseq
      %v1853 = vshrl.u32 %v1852, 7
      %v1854 = vsub.s32 %v1851, %v1853
      %v1855 = vrot.slane %v1841, %v1854
      %v1856 = vcombine.low %v1801, %v1816
      %v1857 = vcombine.high %v1801, %v1816
      %v1859 = vunpack.c.l.s4 1934713408
      %v1860 = vunpack.c.0.s8 %v1859
      %v1861 = vlaneseq
      %v1862 = vshrl.u32 %v1861, 7
      %v1863 = vsub.s32 %v1860, %v1862
      %v1864 = vrot.slane %v1856, %v1863
      %v1866 = vunpack.c.l.s4 1934713408
      %v1867 = vunpack.c.0.s8 %v1866
      %v1868 = vlaneseq
      %v1869 = vshrl.u32 %v1868, 7
      %v1870 = vsub.s32 %v1867, %v1869
      %v1871 = vrot.slane %v1857, %v1870
      %v1872 = vcombine.low %v1808, %v1823
      %v1873 = vcombine.high %v1808, %v1823
      %v1875 = vunpack.c.l.s4 1934713408
      %v1876 = vunpack.c.0.s8 %v1875
      %v1877 = vlaneseq
      %v1878 = vshrl.u32 %v1877, 7
      %v1879 = vsub.s32 %v1876, %v1878
      %v1880 = vrot.slane %v1872, %v1879
      %v1882 = vunpack.c.l.s4 1934713408
      %v1883 = vunpack.c.0.s8 %v1882
      %v1884 = vlaneseq
      %v1885 = vshrl.u32 %v1884, 7
      %v1886 = vsub.s32 %v1883, %v1885
      %v1887 = vrot.slane %v1873, %v1886
      %v1888 = vcombine.low %v1832, %v1864
      %v1889 = vcombine.high %v1832, %v1864
      %v1890 = vcombine.low %v1839, %v1871
      %v1891 = vcombine.high %v1839, %v1871
      %v1892 = vcombine.low %v1848, %v1880
      %v1893 = vcombine.high %v1848, %v1880
      %v1894 = vcombine.low %v1855, %v1887
      %v1895 = vcombine.high %v1855, %v1887
      %v1896 = vcombine.low %v254, %v388
      %v1897 = vcombine.high %v254, %v388
      %v1899 = vunpack.c.l.s4 1983009808
      %v1900 = vunpack.c.0.s8 %v1899
      %v1901 = vlaneseq
      %v1902 = vshrl.u32 %v1901, 7
      %v1903 = vsub.s32 %v1900, %v1902
      %v1904 = vrot.slane %v1896, %v1903
      %v1906 = vunpack.c.l.s4 1983009808
      %v1907 = vunpack.c.0.s8 %v1906
      %v1908 = vlaneseq
      %v1909 = vshrl.u32 %v1908, 7
      %v1910 = vsub.s32 %v1907, %v1909
      %v1911 = vrot.slane %v1897, %v1910
      %v1912 = vcombine.low %v321, %v455
      %v1913 = vcombine.high %v321, %v455
      %v1915 = vunpack.c.l.s4 1983009808
      %v1916 = vunpack.c.0.s8 %v1915
      %v1917 = vlaneseq
      %v1918 = vshrl.u32 %v1917, 7
      %v1919 = vsub.s32 %v1916, %v1918
      %v1920 = vrot.slane %v1912, %v1919
      %v1922 = vunpack.c.l.s4 1983009808
      %v1923 = vunpack.c.0.s8 %v1922
      %v1924 = vlaneseq
      %v1925 = vshrl.u32 %v1924, 7
      %v1926 = vsub.s32 %v1923, %v1925
      %v1927 = vrot.slane %v1913, %v1926
      %v1928 = vcombine.low %v522, %v656
      %v1929 = vcombine.high %v522, %v656
      %v1931 = vunpack.c.l.s4 1983009808
      %v1932 = vunpack.c.0.s8 %v1931
      %v1933 = vlaneseq
      %v1934 = vshrl.u32 %v1933, 7
      %v1935 = vsub.s32 %v1932, %v1934
      %v1936 = vrot.slane %v1928, %v1935
      %v1938 = vunpack.c.l.s4 1983009808
      %v1939 = vunpack.c.0.s8 %v1938
      %v1940 = vlaneseq
      %v1941 = vshrl.u32 %v1940, 7
      %v1942 = vsub.s32 %v1939, %v1941
      %v1943 = vrot.slane %v1929, %v1942
      %v1944 = vcombine.high %v589, 0.0
      %v1946 = vunpack.c.l.s4 1983009808
      %v1947 = vunpack.c.0.s8 %v1946
      %v1948 = vlaneseq
      %v1949 = vshrl.u32 %v1948, 7
      %v1950 = vsub.s32 %v1947, %v1949
      %v1951 = vrot.slane %v589, %v1950
      %v1953 = vunpack.c.l.s4 1983009808
      %v1954 = vunpack.c.0.s8 %v1953
      %v1955 = vlaneseq
      %v1956 = vshrl.u32 %v1955, 7
      %v1957 = vsub.s32 %v1954, %v1956
      %v1958 = vrot.slane %v1944, %v1957
      %v1959 = vcombine.low %v1904, %v1920
      %v1960 = vcombine.high %v1904, %v1920
      %v1962 = vunpack.c.l.s4 1934713408
      %v1963 = vunpack.c.0.s8 %v1962
      %v1964 = vlaneseq
      %v1965 = vshrl.u32 %v1964, 7
      %v1966 = vsub.s32 %v1963, %v1965
      %v1967 = vrot.slane %v1959, %v1966
      %v1969 = vunpack.c.l.s4 1934713408
      %v1970 = vunpack.c.0.s8 %v1969
      %v1971 = vlaneseq
      %v1972 = vshrl.u32 %v1971, 7
      %v1973 = vsub.s32 %v1970, %v1972
      %v1974 = vrot.slane %v1960, %v1973
      %v1975 = vcombine.low %v1911, %v1927
      %v1976 = vcombine.high %v1911, %v1927
      %v1978 = vunpack.c.l.s4 1934713408
      %v1979 = vunpack.c.0.s8 %v1978
      %v1980 = vlaneseq
      %v1981 = vshrl.u32 %v1980, 7
      %v1982 = vsub.s32 %v1979, %v1981
      %v1983 = vrot.slane %v1975, %v1982
      %v1985 = vunpack.c.l.s4 1934713408
      %v1986 = vunpack.c.0.s8 %v1985
      %v1987 = vlaneseq
      %v1988 = vshrl.u32 %v1987, 7
      %v1989 = vsub.s32 %v1986, %v1988
      %v1990 = vrot.slane %v1976, %v1989
      %v1991 = vcombine.low %v1936, %v1951
      %v1992 = vcombine.high %v1936, %v1951
      %v1994 = vunpack.c.l.s4 1934713408
      %v1995 = vunpack.c.0.s8 %v1994
      %v1996 = vlaneseq
      %v1997 = vshrl.u32 %v1996, 7
      %v1998 = vsub.s32 %v1995, %v1997
      %v1999 = vrot.slane %v1991, %v1998
      %v2001 = vunpack.c.l.s4 1934713408
      %v2002 = vunpack.c.0.s8 %v2001
      %v2003 = vlaneseq
      %v2004 = vshrl.u32 %v2003, 7
      %v2005 = vsub.s32 %v2002, %v2004
      %v2006 = vrot.slane %v1992, %v2005
      %v2007 = vcombine.low %v1943, %v1958
      %v2008 = vcombine.high %v1943, %v1958
      %v2010 = vunpack.c.l.s4 1934713408
      %v2011 = vunpack.c.0.s8 %v2010
      %v2012 = vlaneseq
      %v2013 = vshrl.u32 %v2012, 7
      %v2014 = vsub.s32 %v2011, %v2013
      %v2015 = vrot.slane %v2007, %v2014
      %v2017 = vunpack.c.l.s4 1934713408
      %v2018 = vunpack.c.0.s8 %v2017
      %v2019 = vlaneseq
      %v2020 = vshrl.u32 %v2019, 7
      %v2021 = vsub.s32 %v2018, %v2020
      %v2022 = vrot.slane %v2008, %v2021
      %v2023 = vcombine.low %v1967, %v1999
      %v2024 = vcombine.high %v1967, %v1999
      %v2025 = vcombine.low %v1974, %v2006
      %v2026 = vcombine.high %v1974, %v2006
      %v2027 = vcombine.low %v1983, %v2015
      %v2028 = vcombine.high %v1983, %v2015
      %v2029 = vcombine.low %v1990, %v2022
      %v2030 = vcombine.high %v1990, %v2022
      %v2031 = vcombine.low %v258, %v392
      %v2032 = vcombine.high %v258, %v392
      %v2034 = vunpack.c.l.s4 1983009808
      %v2035 = vunpack.c.0.s8 %v2034
      %v2036 = vlaneseq
      %v2037 = vshrl.u32 %v2036, 7
      %v2038 = vsub.s32 %v2035, %v2037
      %v2039 = vrot.slane %v2031, %v2038
      %v2041 = vunpack.c.l.s4 1983009808
      %v2042 = vunpack.c.0.s8 %v2041
      %v2043 = vlaneseq
      %v2044 = vshrl.u32 %v2043, 7
      %v2045 = vsub.s32 %v2042, %v2044
      %v2046 = vrot.slane %v2032, %v2045
      %v2047 = vcombine.low %v325, %v459
      %v2048 = vcombine.high %v325, %v459
      %v2050 = vunpack.c.l.s4 1983009808
      %v2051 = vunpack.c.0.s8 %v2050
      %v2052 = vlaneseq
      %v2053 = vshrl.u32 %v2052, 7
      %v2054 = vsub.s32 %v2051, %v2053
      %v2055 = vrot.slane %v2047, %v2054
      %v2057 = vunpack.c.l.s4 1983009808
      %v2058 = vunpack.c.0.s8 %v2057
      %v2059 = vlaneseq
      %v2060 = vshrl.u32 %v2059, 7
      %v2061 = vsub.s32 %v2058, %v2060
      %v2062 = vrot.slane %v2048, %v2061
      %v2063 = vcombine.low %v526, %v660
      %v2064 = vcombine.high %v526, %v660
      %v2066 = vunpack.c.l.s4 1983009808
      %v2067 = vunpack.c.0.s8 %v2066
      %v2068 = vlaneseq
      %v2069 = vshrl.u32 %v2068, 7
      %v2070 = vsub.s32 %v2067, %v2069
      %v2071 = vrot.slane %v2063, %v2070
      %v2073 = vunpack.c.l.s4 1983009808
      %v2074 = vunpack.c.0.s8 %v2073
      %v2075 = vlaneseq
      %v2076 = vshrl.u32 %v2075, 7
      %v2077 = vsub.s32 %v2074, %v2076
      %v2078 = vrot.slane %v2064, %v2077
      %v2079 = vcombine.high %v593, 0.0
      %v2081 = vunpack.c.l.s4 1983009808
      %v2082 = vunpack.c.0.s8 %v2081
      %v2083 = vlaneseq
      %v2084 = vshrl.u32 %v2083, 7
      %v2085 = vsub.s32 %v2082, %v2084
      %v2086 = vrot.slane %v593, %v2085
      %v2088 = vunpack.c.l.s4 1983009808
      %v2089 = vunpack.c.0.s8 %v2088
      %v2090 = vlaneseq
      %v2091 = vshrl.u32 %v2090, 7
      %v2092 = vsub.s32 %v2089, %v2091
      %v2093 = vrot.slane %v2079, %v2092
      %v2094 = vcombine.low %v2039, %v2055
      %v2095 = vcombine.high %v2039, %v2055
      %v2097 = vunpack.c.l.s4 1934713408
      %v2098 = vunpack.c.0.s8 %v2097
      %v2099 = vlaneseq
      %v2100 = vshrl.u32 %v2099, 7
      %v2101 = vsub.s32 %v2098, %v2100
      %v2102 = vrot.slane %v2094, %v2101
      %v2104 = vunpack.c.l.s4 1934713408
      %v2105 = vunpack.c.0.s8 %v2104
      %v2106 = vlaneseq
      %v2107 = vshrl.u32 %v2106, 7
      %v2108 = vsub.s32 %v2105, %v2107
      %v2109 = vrot.slane %v2095, %v2108
      %v2110 = vcombine.low %v2046, %v2062
      %v2111 = vcombine.high %v2046, %v2062
      %v2113 = vunpack.c.l.s4 1934713408
      %v2114 = vunpack.c.0.s8 %v2113
      %v2115 = vlaneseq
      %v2116 = vshrl.u32 %v2115, 7
      %v2117 = vsub.s32 %v2114, %v2116
      %v2118 = vrot.slane %v2110, %v2117
      %v2120 = vunpack.c.l.s4 1934713408
      %v2121 = vunpack.c.0.s8 %v2120
      %v2122 = vlaneseq
      %v2123 = vshrl.u32 %v2122, 7
      %v2124 = vsub.s32 %v2121, %v2123
      %v2125 = vrot.slane %v2111, %v2124
      %v2126 = vcombine.low %v2071, %v2086
      %v2127 = vcombine.high %v2071, %v2086
      %v2129 = vunpack.c.l.s4 1934713408
      %v2130 = vunpack.c.0.s8 %v2129
      %v2131 = vlaneseq
      %v2132 = vshrl.u32 %v2131, 7
      %v2133 = vsub.s32 %v2130, %v2132
      %v2134 = vrot.slane %v2126, %v2133
      %v2136 = vunpack.c.l.s4 1934713408
      %v2137 = vunpack.c.0.s8 %v2136
      %v2138 = vlaneseq
      %v2139 = vshrl.u32 %v2138, 7
      %v2140 = vsub.s32 %v2137, %v2139
      %v2141 = vrot.slane %v2127, %v2140
      %v2142 = vcombine.low %v2078, %v2093
      %v2143 = vcombine.high %v2078, %v2093
      %v2145 = vunpack.c.l.s4 1934713408
      %v2146 = vunpack.c.0.s8 %v2145
      %v2147 = vlaneseq
      %v2148 = vshrl.u32 %v2147, 7
      %v2149 = vsub.s32 %v2146, %v2148
      %v2150 = vrot.slane %v2142, %v2149
      %v2152 = vunpack.c.l.s4 1934713408
      %v2153 = vunpack.c.0.s8 %v2152
      %v2154 = vlaneseq
      %v2155 = vshrl.u32 %v2154, 7
      %v2156 = vsub.s32 %v2153, %v2155
      %v2157 = vrot.slane %v2143, %v2156
      %v2158 = vcombine.low %v2102, %v2134
      %v2159 = vcombine.high %v2102, %v2134
      %v2160 = vcombine.low %v2109, %v2141
      %v2161 = vcombine.high %v2109, %v2141
      %v2162 = vcombine.low %v2118, %v2150
      %v2163 = vcombine.high %v2118, %v2150
      %v2164 = vcombine.low %v2125, %v2157
      %v2165 = vcombine.high %v2125, %v2157
      %v2166 = vcombine.low %v262, %v396
      %v2167 = vcombine.high %v262, %v396
      %v2169 = vunpack.c.l.s4 1983009808
      %v2170 = vunpack.c.0.s8 %v2169
      %v2171 = vlaneseq
      %v2172 = vshrl.u32 %v2171, 7
      %v2173 = vsub.s32 %v2170, %v2172
      %v2174 = vrot.slane %v2166, %v2173
      %v2176 = vunpack.c.l.s4 1983009808
      %v2177 = vunpack.c.0.s8 %v2176
      %v2178 = vlaneseq
      %v2179 = vshrl.u32 %v2178, 7
      %v2180 = vsub.s32 %v2177, %v2179
      %v2181 = vrot.slane %v2167, %v2180
      %v2182 = vcombine.low %v329, %v463
      %v2183 = vcombine.high %v329, %v463
      %v2185 = vunpack.c.l.s4 1983009808
      %v2186 = vunpack.c.0.s8 %v2185
      %v2187 = vlaneseq
      %v2188 = vshrl.u32 %v2187, 7
      %v2189 = vsub.s32 %v2186, %v2188
      %v2190 = vrot.slane %v2182, %v2189
      %v2192 = vunpack.c.l.s4 1983009808
      %v2193 = vunpack.c.0.s8 %v2192
      %v2194 = vlaneseq
      %v2195 = vshrl.u32 %v2194, 7
      %v2196 = vsub.s32 %v2193, %v2195
      %v2197 = vrot.slane %v2183, %v2196
      %v2198 = vcombine.low %v530, %v664
      %v2199 = vcombine.high %v530, %v664
      %v2201 = vunpack.c.l.s4 1983009808
      %v2202 = vunpack.c.0.s8 %v2201
      %v2203 = vlaneseq
      %v2204 = vshrl.u32 %v2203, 7
      %v2205 = vsub.s32 %v2202, %v2204
      %v2206 = vrot.slane %v2198, %v2205
      %v2208 = vunpack.c.l.s4 1983009808
      %v2209 = vunpack.c.0.s8 %v2208
      %v2210 = vlaneseq
      %v2211 = vshrl.u32 %v2210, 7
      %v2212 = vsub.s32 %v2209, %v2211
      %v2213 = vrot.slane %v2199, %v2212
      %v2214 = vcombine.high %v597, 0.0
      %v2216 = vunpack.c.l.s4 1983009808
      %v2217 = vunpack.c.0.s8 %v2216
      %v2218 = vlaneseq
      %v2219 = vshrl.u32 %v2218, 7
      %v2220 = vsub.s32 %v2217, %v2219
      %v2221 = vrot.slane %v597, %v2220
      %v2223 = vunpack.c.l.s4 1983009808
      %v2224 = vunpack.c.0.s8 %v2223
      %v2225 = vlaneseq
      %v2226 = vshrl.u32 %v2225, 7
      %v2227 = vsub.s32 %v2224, %v2226
      %v2228 = vrot.slane %v2214, %v2227
      %v2229 = vcombine.low %v2174, %v2190
      %v2230 = vcombine.high %v2174, %v2190
      %v2232 = vunpack.c.l.s4 1934713408
      %v2233 = vunpack.c.0.s8 %v2232
      %v2234 = vlaneseq
      %v2235 = vshrl.u32 %v2234, 7
      %v2236 = vsub.s32 %v2233, %v2235
      %v2237 = vrot.slane %v2229, %v2236
      %v2239 = vunpack.c.l.s4 1934713408
      %v2240 = vunpack.c.0.s8 %v2239
      %v2241 = vlaneseq
      %v2242 = vshrl.u32 %v2241, 7
      %v2243 = vsub.s32 %v2240, %v2242
      %v2244 = vrot.slane %v2230, %v2243
      %v2245 = vcombine.low %v2181, %v2197
      %v2246 = vcombine.high %v2181, %v2197
      %v2248 = vunpack.c.l.s4 1934713408
      %v2249 = vunpack.c.0.s8 %v2248
      %v2250 = vlaneseq
      %v2251 = vshrl.u32 %v2250, 7
      %v2252 = vsub.s32 %v2249, %v2251
      %v2253 = vrot.slane %v2245, %v2252
      %v2255 = vunpack.c.l.s4 1934713408
      %v2256 = vunpack.c.0.s8 %v2255
      %v2257 = vlaneseq
      %v2258 = vshrl.u32 %v2257, 7
      %v2259 = vsub.s32 %v2256, %v2258
      %v2260 = vrot.slane %v2246, %v2259
      %v2261 = vcombine.low %v2206, %v2221
      %v2262 = vcombine.high %v2206, %v2221
      %v2264 = vunpack.c.l.s4 1934713408
      %v2265 = vunpack.c.0.s8 %v2264
      %v2266 = vlaneseq
      %v2267 = vshrl.u32 %v2266, 7
      %v2268 = vsub.s32 %v2265, %v2267
      %v2269 = vrot.slane %v2261, %v2268
      %v2271 = vunpack.c.l.s4 1934713408
      %v2272 = vunpack.c.0.s8 %v2271
      %v2273 = vlaneseq
      %v2274 = vshrl.u32 %v2273, 7
      %v2275 = vsub.s32 %v2272, %v2274
      %v2276 = vrot.slane %v2262, %v2275
      %v2277 = vcombine.low %v2213, %v2228
      %v2278 = vcombine.high %v2213, %v2228
      %v2280 = vunpack.c.l.s4 1934713408
      %v2281 = vunpack.c.0.s8 %v2280
      %v2282 = vlaneseq
      %v2283 = vshrl.u32 %v2282, 7
      %v2284 = vsub.s32 %v2281, %v2283
      %v2285 = vrot.slane %v2277, %v2284
      %v2287 = vunpack.c.l.s4 1934713408
      %v2288 = vunpack.c.0.s8 %v2287
      %v2289 = vlaneseq
      %v2290 = vshrl.u32 %v2289, 7
      %v2291 = vsub.s32 %v2288, %v2290
      %v2292 = vrot.slane %v2278, %v2291
      %v2293 = vcombine.low %v2237, %v2269
      %v2294 = vcombine.high %v2237, %v2269
      %v2295 = vcombine.low %v2244, %v2276
      %v2296 = vcombine.high %v2244, %v2276
      %v2297 = vcombine.low %v2253, %v2285
      %v2298 = vcombine.high %v2253, %v2285
      %v2299 = vcombine.low %v2260, %v2292
      %v2300 = vcombine.high %v2260, %v2292
      %v2301 = vcombine.low %v266, %v400
      %v2302 = vcombine.high %v266, %v400
      %v2304 = vunpack.c.l.s4 1983009808
      %v2305 = vunpack.c.0.s8 %v2304
      %v2306 = vlaneseq
      %v2307 = vshrl.u32 %v2306, 7
      %v2308 = vsub.s32 %v2305, %v2307
      %v2309 = vrot.slane %v2301, %v2308
      %v2311 = vunpack.c.l.s4 1983009808
      %v2312 = vunpack.c.0.s8 %v2311
      %v2313 = vlaneseq
      %v2314 = vshrl.u32 %v2313, 7
      %v2315 = vsub.s32 %v2312, %v2314
      %v2316 = vrot.slane %v2302, %v2315
      %v2317 = vcombine.low %v333, %v467
      %v2318 = vcombine.high %v333, %v467
      %v2320 = vunpack.c.l.s4 1983009808
      %v2321 = vunpack.c.0.s8 %v2320
      %v2322 = vlaneseq
      %v2323 = vshrl.u32 %v2322, 7
      %v2324 = vsub.s32 %v2321, %v2323
      %v2325 = vrot.slane %v2317, %v2324
      %v2327 = vunpack.c.l.s4 1983009808
      %v2328 = vunpack.c.0.s8 %v2327
      %v2329 = vlaneseq
      %v2330 = vshrl.u32 %v2329, 7
      %v2331 = vsub.s32 %v2328, %v2330
      %v2332 = vrot.slane %v2318, %v2331
      %v2333 = vcombine.low %v534, %v668
      %v2334 = vcombine.high %v534, %v668
      %v2336 = vunpack.c.l.s4 1983009808
      %v2337 = vunpack.c.0.s8 %v2336
      %v2338 = vlaneseq
      %v2339 = vshrl.u32 %v2338, 7
      %v2340 = vsub.s32 %v2337, %v2339
      %v2341 = vrot.slane %v2333, %v2340
      %v2343 = vunpack.c.l.s4 1983009808
      %v2344 = vunpack.c.0.s8 %v2343
      %v2345 = vlaneseq
      %v2346 = vshrl.u32 %v2345, 7
      %v2347 = vsub.s32 %v2344, %v2346
      %v2348 = vrot.slane %v2334, %v2347
      %v2349 = vcombine.high %v601, 0.0
      %v2351 = vunpack.c.l.s4 1983009808
      %v2352 = vunpack.c.0.s8 %v2351
      %v2353 = vlaneseq
      %v2354 = vshrl.u32 %v2353, 7
      %v2355 = vsub.s32 %v2352, %v2354
      %v2356 = vrot.slane %v601, %v2355
      %v2358 = vunpack.c.l.s4 1983009808
      %v2359 = vunpack.c.0.s8 %v2358
      %v2360 = vlaneseq
      %v2361 = vshrl.u32 %v2360, 7
      %v2362 = vsub.s32 %v2359, %v2361
      %v2363 = vrot.slane %v2349, %v2362
      %v2364 = vcombine.low %v2309, %v2325
      %v2365 = vcombine.high %v2309, %v2325
      %v2367 = vunpack.c.l.s4 1934713408
      %v2368 = vunpack.c.0.s8 %v2367
      %v2369 = vlaneseq
      %v2370 = vshrl.u32 %v2369, 7
      %v2371 = vsub.s32 %v2368, %v2370
      %v2372 = vrot.slane %v2364, %v2371
      %v2374 = vunpack.c.l.s4 1934713408
      %v2375 = vunpack.c.0.s8 %v2374
      %v2376 = vlaneseq
      %v2377 = vshrl.u32 %v2376, 7
      %v2378 = vsub.s32 %v2375, %v2377
      %v2379 = vrot.slane %v2365, %v2378
      %v2380 = vcombine.low %v2316, %v2332
      %v2381 = vcombine.high %v2316, %v2332
      %v2383 = vunpack.c.l.s4 1934713408
      %v2384 = vunpack.c.0.s8 %v2383
      %v2385 = vlaneseq
      %v2386 = vshrl.u32 %v2385, 7
      %v2387 = vsub.s32 %v2384, %v2386
      %v2388 = vrot.slane %v2380, %v2387
      %v2390 = vunpack.c.l.s4 1934713408
      %v2391 = vunpack.c.0.s8 %v2390
      %v2392 = vlaneseq
      %v2393 = vshrl.u32 %v2392, 7
      %v2394 = vsub.s32 %v2391, %v2393
      %v2395 = vrot.slane %v2381, %v2394
      %v2396 = vcombine.low %v2341, %v2356
      %v2397 = vcombine.high %v2341, %v2356
      %v2399 = vunpack.c.l.s4 1934713408
      %v2400 = vunpack.c.0.s8 %v2399
      %v2401 = vlaneseq
      %v2402 = vshrl.u32 %v2401, 7
      %v2403 = vsub.s32 %v2400, %v2402
      %v2404 = vrot.slane %v2396, %v2403
      %v2406 = vunpack.c.l.s4 1934713408
      %v2407 = vunpack.c.0.s8 %v2406
      %v2408 = vlaneseq
      %v2409 = vshrl.u32 %v2408, 7
      %v2410 = vsub.s32 %v2407, %v2409
      %v2411 = vrot.slane %v2397, %v2410
      %v2412 = vcombine.low %v2348, %v2363
      %v2413 = vcombine.high %v2348, %v2363
      %v2415 = vunpack.c.l.s4 1934713408
      %v2416 = vunpack.c.0.s8 %v2415
      %v2417 = vlaneseq
      %v2418 = vshrl.u32 %v2417, 7
      %v2419 = vsub.s32 %v2416, %v2418
      %v2420 = vrot.slane %v2412, %v2419
      %v2422 = vunpack.c.l.s4 1934713408
      %v2423 = vunpack.c.0.s8 %v2422
      %v2424 = vlaneseq
      %v2425 = vshrl.u32 %v2424, 7
      %v2426 = vsub.s32 %v2423, %v2425
      %v2427 = vrot.slane %v2413, %v2426
      %v2428 = vcombine.low %v2372, %v2404
      %v2429 = vcombine.high %v2372, %v2404
      %v2430 = vcombine.low %v2379, %v2411
      %v2431 = vcombine.high %v2379, %v2411
      %v2432 = vcombine.low %v2388, %v2420
      %v2433 = vcombine.high %v2388, %v2420
      %v2434 = vcombine.low %v2395, %v2427
      %v2435 = vcombine.high %v2395, %v2427
      %v2436 = vcombine.low %v270, %v404
      %v2437 = vcombine.high %v270, %v404
      %v2439 = vunpack.c.l.s4 1983009808
      %v2440 = vunpack.c.0.s8 %v2439
      %v2441 = vlaneseq
      %v2442 = vshrl.u32 %v2441, 7
      %v2443 = vsub.s32 %v2440, %v2442
      %v2444 = vrot.slane %v2436, %v2443
      %v2446 = vunpack.c.l.s4 1983009808
      %v2447 = vunpack.c.0.s8 %v2446
      %v2448 = vlaneseq
      %v2449 = vshrl.u32 %v2448, 7
      %v2450 = vsub.s32 %v2447, %v2449
      %v2451 = vrot.slane %v2437, %v2450
      %v2452 = vcombine.low %v337, %v471
      %v2453 = vcombine.high %v337, %v471
      %v2455 = vunpack.c.l.s4 1983009808
      %v2456 = vunpack.c.0.s8 %v2455
      %v2457 = vlaneseq
      %v2458 = vshrl.u32 %v2457, 7
      %v2459 = vsub.s32 %v2456, %v2458
      %v2460 = vrot.slane %v2452, %v2459
      %v2462 = vunpack.c.l.s4 1983009808
      %v2463 = vunpack.c.0.s8 %v2462
      %v2464 = vlaneseq
      %v2465 = vshrl.u32 %v2464, 7
      %v2466 = vsub.s32 %v2463, %v2465
      %v2467 = vrot.slane %v2453, %v2466
      %v2468 = vcombine.low %v538, %v672
      %v2469 = vcombine.high %v538, %v672
      %v2471 = vunpack.c.l.s4 1983009808
      %v2472 = vunpack.c.0.s8 %v2471
      %v2473 = vlaneseq
      %v2474 = vshrl.u32 %v2473, 7
      %v2475 = vsub.s32 %v2472, %v2474
      %v2476 = vrot.slane %v2468, %v2475
      %v2478 = vunpack.c.l.s4 1983009808
      %v2479 = vunpack.c.0.s8 %v2478
      %v2480 = vlaneseq
      %v2481 = vshrl.u32 %v2480, 7
      %v2482 = vsub.s32 %v2479, %v2481
      %v2483 = vrot.slane %v2469, %v2482
      %v2484 = vcombine.high %v605, 0.0
      %v2486 = vunpack.c.l.s4 1983009808
      %v2487 = vunpack.c.0.s8 %v2486
      %v2488 = vlaneseq
      %v2489 = vshrl.u32 %v2488, 7
      %v2490 = vsub.s32 %v2487, %v2489
      %v2491 = vrot.slane %v605, %v2490
      %v2493 = vunpack.c.l.s4 1983009808
      %v2494 = vunpack.c.0.s8 %v2493
      %v2495 = vlaneseq
      %v2496 = vshrl.u32 %v2495, 7
      %v2497 = vsub.s32 %v2494, %v2496
      %v2498 = vrot.slane %v2484, %v2497
      %v2499 = vcombine.low %v2444, %v2460
      %v2500 = vcombine.high %v2444, %v2460
      %v2502 = vunpack.c.l.s4 1934713408
      %v2503 = vunpack.c.0.s8 %v2502
      %v2504 = vlaneseq
      %v2505 = vshrl.u32 %v2504, 7
      %v2506 = vsub.s32 %v2503, %v2505
      %v2507 = vrot.slane %v2499, %v2506
      %v2509 = vunpack.c.l.s4 1934713408
      %v2510 = vunpack.c.0.s8 %v2509
      %v2511 = vlaneseq
      %v2512 = vshrl.u32 %v2511, 7
      %v2513 = vsub.s32 %v2510, %v2512
      %v2514 = vrot.slane %v2500, %v2513
      %v2515 = vcombine.low %v2451, %v2467
      %v2516 = vcombine.high %v2451, %v2467
      %v2518 = vunpack.c.l.s4 1934713408
      %v2519 = vunpack.c.0.s8 %v2518
      %v2520 = vlaneseq
      %v2521 = vshrl.u32 %v2520, 7
      %v2522 = vsub.s32 %v2519, %v2521
      %v2523 = vrot.slane %v2515, %v2522
      %v2525 = vunpack.c.l.s4 1934713408
      %v2526 = vunpack.c.0.s8 %v2525
      %v2527 = vlaneseq
      %v2528 = vshrl.u32 %v2527, 7
      %v2529 = vsub.s32 %v2526, %v2528
      %v2530 = vrot.slane %v2516, %v2529
      %v2531 = vcombine.low %v2476, %v2491
      %v2532 = vcombine.high %v2476, %v2491
      %v2534 = vunpack.c.l.s4 1934713408
      %v2535 = vunpack.c.0.s8 %v2534
      %v2536 = vlaneseq
      %v2537 = vshrl.u32 %v2536, 7
      %v2538 = vsub.s32 %v2535, %v2537
      %v2539 = vrot.slane %v2531, %v2538
      %v2541 = vunpack.c.l.s4 1934713408
      %v2542 = vunpack.c.0.s8 %v2541
      %v2543 = vlaneseq
      %v2544 = vshrl.u32 %v2543, 7
      %v2545 = vsub.s32 %v2542, %v2544
      %v2546 = vrot.slane %v2532, %v2545
      %v2547 = vcombine.low %v2483, %v2498
      %v2548 = vcombine.high %v2483, %v2498
      %v2550 = vunpack.c.l.s4 1934713408
      %v2551 = vunpack.c.0.s8 %v2550
      %v2552 = vlaneseq
      %v2553 = vshrl.u32 %v2552, 7
      %v2554 = vsub.s32 %v2551, %v2553
      %v2555 = vrot.slane %v2547, %v2554
      %v2557 = vunpack.c.l.s4 1934713408
      %v2558 = vunpack.c.0.s8 %v2557
      %v2559 = vlaneseq
      %v2560 = vshrl.u32 %v2559, 7
      %v2561 = vsub.s32 %v2558, %v2560
      %v2562 = vrot.slane %v2548, %v2561
      %v2563 = vcombine.low %v2507, %v2539
      %v2564 = vcombine.high %v2507, %v2539
      %v2565 = vcombine.low %v2514, %v2546
      %v2566 = vcombine.high %v2514, %v2546
      %v2567 = vcombine.low %v2523, %v2555
      %v2568 = vcombine.high %v2523, %v2555
      %v2569 = vcombine.low %v2530, %v2562
      %v2570 = vcombine.high %v2530, %v2562
      %v2571 = vcombine.low %v274, %v408
      %v2572 = vcombine.high %v274, %v408
      %v2574 = vunpack.c.l.s4 1983009808
      %v2575 = vunpack.c.0.s8 %v2574
      %v2576 = vlaneseq
      %v2577 = vshrl.u32 %v2576, 7
      %v2578 = vsub.s32 %v2575, %v2577
      %v2579 = vrot.slane %v2571, %v2578
      %v2581 = vunpack.c.l.s4 1983009808
      %v2582 = vunpack.c.0.s8 %v2581
      %v2583 = vlaneseq
      %v2584 = vshrl.u32 %v2583, 7
      %v2585 = vsub.s32 %v2582, %v2584
      %v2586 = vrot.slane %v2572, %v2585
      %v2587 = vcombine.low %v341, %v475
      %v2588 = vcombine.high %v341, %v475
      %v2590 = vunpack.c.l.s4 1983009808
      %v2591 = vunpack.c.0.s8 %v2590
      %v2592 = vlaneseq
      %v2593 = vshrl.u32 %v2592, 7
      %v2594 = vsub.s32 %v2591, %v2593
      %v2595 = vrot.slane %v2587, %v2594
      %v2597 = vunpack.c.l.s4 1983009808
      %v2598 = vunpack.c.0.s8 %v2597
      %v2599 = vlaneseq
      %v2600 = vshrl.u32 %v2599, 7
      %v2601 = vsub.s32 %v2598, %v2600
      %v2602 = vrot.slane %v2588, %v2601
      %v2603 = vcombine.low %v542, %v676
      %v2604 = vcombine.high %v542, %v676
      %v2606 = vunpack.c.l.s4 1983009808
      %v2607 = vunpack.c.0.s8 %v2606
      %v2608 = vlaneseq
      %v2609 = vshrl.u32 %v2608, 7
      %v2610 = vsub.s32 %v2607, %v2609
      %v2611 = vrot.slane %v2603, %v2610
      %v2613 = vunpack.c.l.s4 1983009808
      %v2614 = vunpack.c.0.s8 %v2613
      %v2615 = vlaneseq
      %v2616 = vshrl.u32 %v2615, 7
      %v2617 = vsub.s32 %v2614, %v2616
      %v2618 = vrot.slane %v2604, %v2617
      %v2619 = vcombine.high %v609, 0.0
      %v2621 = vunpack.c.l.s4 1983009808
      %v2622 = vunpack.c.0.s8 %v2621
      %v2623 = vlaneseq
      %v2624 = vshrl.u32 %v2623, 7
      %v2625 = vsub.s32 %v2622, %v2624
      %v2626 = vrot.slane %v609, %v2625
      %v2628 = vunpack.c.l.s4 1983009808
      %v2629 = vunpack.c.0.s8 %v2628
      %v2630 = vlaneseq
      %v2631 = vshrl.u32 %v2630, 7
      %v2632 = vsub.s32 %v2629, %v2631
      %v2633 = vrot.slane %v2619, %v2632
      %v2634 = vcombine.low %v2579, %v2595
      %v2635 = vcombine.high %v2579, %v2595
      %v2637 = vunpack.c.l.s4 1934713408
      %v2638 = vunpack.c.0.s8 %v2637
      %v2639 = vlaneseq
      %v2640 = vshrl.u32 %v2639, 7
      %v2641 = vsub.s32 %v2638, %v2640
      %v2642 = vrot.slane %v2634, %v2641
      %v2644 = vunpack.c.l.s4 1934713408
      %v2645 = vunpack.c.0.s8 %v2644
      %v2646 = vlaneseq
      %v2647 = vshrl.u32 %v2646, 7
      %v2648 = vsub.s32 %v2645, %v2647
      %v2649 = vrot.slane %v2635, %v2648
      %v2650 = vcombine.low %v2586, %v2602
      %v2651 = vcombine.high %v2586, %v2602
      %v2653 = vunpack.c.l.s4 1934713408
      %v2654 = vunpack.c.0.s8 %v2653
      %v2655 = vlaneseq
      %v2656 = vshrl.u32 %v2655, 7
      %v2657 = vsub.s32 %v2654, %v2656
      %v2658 = vrot.slane %v2650, %v2657
      %v2660 = vunpack.c.l.s4 1934713408
      %v2661 = vunpack.c.0.s8 %v2660
      %v2662 = vlaneseq
      %v2663 = vshrl.u32 %v2662, 7
      %v2664 = vsub.s32 %v2661, %v2663
      %v2665 = vrot.slane %v2651, %v2664
      %v2666 = vcombine.low %v2611, %v2626
      %v2667 = vcombine.high %v2611, %v2626
      %v2669 = vunpack.c.l.s4 1934713408
      %v2670 = vunpack.c.0.s8 %v2669
      %v2671 = vlaneseq
      %v2672 = vshrl.u32 %v2671, 7
      %v2673 = vsub.s32 %v2670, %v2672
      %v2674 = vrot.slane %v2666, %v2673
      %v2676 = vunpack.c.l.s4 1934713408
      %v2677 = vunpack.c.0.s8 %v2676
      %v2678 = vlaneseq
      %v2679 = vshrl.u32 %v2678, 7
      %v2680 = vsub.s32 %v2677, %v2679
      %v2681 = vrot.slane %v2667, %v2680
      %v2682 = vcombine.low %v2618, %v2633
      %v2683 = vcombine.high %v2618, %v2633
      %v2685 = vunpack.c.l.s4 1934713408
      %v2686 = vunpack.c.0.s8 %v2685
      %v2687 = vlaneseq
      %v2688 = vshrl.u32 %v2687, 7
      %v2689 = vsub.s32 %v2686, %v2688
      %v2690 = vrot.slane %v2682, %v2689
      %v2692 = vunpack.c.l.s4 1934713408
      %v2693 = vunpack.c.0.s8 %v2692
      %v2694 = vlaneseq
      %v2695 = vshrl.u32 %v2694, 7
      %v2696 = vsub.s32 %v2693, %v2695
      %v2697 = vrot.slane %v2683, %v2696
      %v2698 = vcombine.low %v2642, %v2674
      %v2699 = vcombine.high %v2642, %v2674
      %v2700 = vcombine.low %v2649, %v2681
      %v2701 = vcombine.high %v2649, %v2681
      %v2702 = vcombine.low %v2658, %v2690
      %v2703 = vcombine.high %v2658, %v2690
      %v2704 = vcombine.low %v2665, %v2697
      %v2705 = vcombine.high %v2665, %v2697
      %v2706 = vcombine.low %v278, %v412
      %v2707 = vcombine.high %v278, %v412
      %v2709 = vunpack.c.l.s4 1983009808
      %v2710 = vunpack.c.0.s8 %v2709
      %v2711 = vlaneseq
      %v2712 = vshrl.u32 %v2711, 7
      %v2713 = vsub.s32 %v2710, %v2712
      %v2714 = vrot.slane %v2706, %v2713
      %v2716 = vunpack.c.l.s4 1983009808
      %v2717 = vunpack.c.0.s8 %v2716
      %v2718 = vlaneseq
      %v2719 = vshrl.u32 %v2718, 7
      %v2720 = vsub.s32 %v2717, %v2719
      %v2721 = vrot.slane %v2707, %v2720
      %v2722 = vcombine.low %v345, %v479
      %v2723 = vcombine.high %v345, %v479
      %v2725 = vunpack.c.l.s4 1983009808
      %v2726 = vunpack.c.0.s8 %v2725
      %v2727 = vlaneseq
      %v2728 = vshrl.u32 %v2727, 7
      %v2729 = vsub.s32 %v2726, %v2728
      %v2730 = vrot.slane %v2722, %v2729
      %v2732 = vunpack.c.l.s4 1983009808
      %v2733 = vunpack.c.0.s8 %v2732
      %v2734 = vlaneseq
      %v2735 = vshrl.u32 %v2734, 7
      %v2736 = vsub.s32 %v2733, %v2735
      %v2737 = vrot.slane %v2723, %v2736
      %v2738 = vcombine.low %v546, %v680
      %v2739 = vcombine.high %v546, %v680
      %v2741 = vunpack.c.l.s4 1983009808
      %v2742 = vunpack.c.0.s8 %v2741
      %v2743 = vlaneseq
      %v2744 = vshrl.u32 %v2743, 7
      %v2745 = vsub.s32 %v2742, %v2744
      %v2746 = vrot.slane %v2738, %v2745
      %v2748 = vunpack.c.l.s4 1983009808
      %v2749 = vunpack.c.0.s8 %v2748
      %v2750 = vlaneseq
      %v2751 = vshrl.u32 %v2750, 7
      %v2752 = vsub.s32 %v2749, %v2751
      %v2753 = vrot.slane %v2739, %v2752
      %v2754 = vcombine.high %v613, 0.0
      %v2756 = vunpack.c.l.s4 1983009808
      %v2757 = vunpack.c.0.s8 %v2756
      %v2758 = vlaneseq
      %v2759 = vshrl.u32 %v2758, 7
      %v2760 = vsub.s32 %v2757, %v2759
      %v2761 = vrot.slane %v613, %v2760
      %v2763 = vunpack.c.l.s4 1983009808
      %v2764 = vunpack.c.0.s8 %v2763
      %v2765 = vlaneseq
      %v2766 = vshrl.u32 %v2765, 7
      %v2767 = vsub.s32 %v2764, %v2766
      %v2768 = vrot.slane %v2754, %v2767
      %v2769 = vcombine.low %v2714, %v2730
      %v2770 = vcombine.high %v2714, %v2730
      %v2772 = vunpack.c.l.s4 1934713408
      %v2773 = vunpack.c.0.s8 %v2772
      %v2774 = vlaneseq
      %v2775 = vshrl.u32 %v2774, 7
      %v2776 = vsub.s32 %v2773, %v2775
      %v2777 = vrot.slane %v2769, %v2776
      %v2779 = vunpack.c.l.s4 1934713408
      %v2780 = vunpack.c.0.s8 %v2779
      %v2781 = vlaneseq
      %v2782 = vshrl.u32 %v2781, 7
      %v2783 = vsub.s32 %v2780, %v2782
      %v2784 = vrot.slane %v2770, %v2783
      %v2785 = vcombine.low %v2721, %v2737
      %v2786 = vcombine.high %v2721, %v2737
      %v2788 = vunpack.c.l.s4 1934713408
      %v2789 = vunpack.c.0.s8 %v2788
      %v2790 = vlaneseq
      %v2791 = vshrl.u32 %v2790, 7
      %v2792 = vsub.s32 %v2789, %v2791
      %v2793 = vrot.slane %v2785, %v2792
      %v2795 = vunpack.c.l.s4 1934713408
      %v2796 = vunpack.c.0.s8 %v2795
      %v2797 = vlaneseq
      %v2798 = vshrl.u32 %v2797, 7
      %v2799 = vsub.s32 %v2796, %v2798
      %v2800 = vrot.slane %v2786, %v2799
      %v2801 = vcombine.low %v2746, %v2761
      %v2802 = vcombine.high %v2746, %v2761
      %v2804 = vunpack.c.l.s4 1934713408
      %v2805 = vunpack.c.0.s8 %v2804
      %v2806 = vlaneseq
      %v2807 = vshrl.u32 %v2806, 7
      %v2808 = vsub.s32 %v2805, %v2807
      %v2809 = vrot.slane %v2801, %v2808
      %v2811 = vunpack.c.l.s4 1934713408
      %v2812 = vunpack.c.0.s8 %v2811
      %v2813 = vlaneseq
      %v2814 = vshrl.u32 %v2813, 7
      %v2815 = vsub.s32 %v2812, %v2814
      %v2816 = vrot.slane %v2802, %v2815
      %v2817 = vcombine.low %v2753, %v2768
      %v2818 = vcombine.high %v2753, %v2768
      %v2820 = vunpack.c.l.s4 1934713408
      %v2821 = vunpack.c.0.s8 %v2820
      %v2822 = vlaneseq
      %v2823 = vshrl.u32 %v2822, 7
      %v2824 = vsub.s32 %v2821, %v2823
      %v2825 = vrot.slane %v2817, %v2824
      %v2827 = vunpack.c.l.s4 1934713408
      %v2828 = vunpack.c.0.s8 %v2827
      %v2829 = vlaneseq
      %v2830 = vshrl.u32 %v2829, 7
      %v2831 = vsub.s32 %v2828, %v2830
      %v2832 = vrot.slane %v2818, %v2831
      %v2833 = vcombine.low %v2777, %v2809
      %v2834 = vcombine.high %v2777, %v2809
      %v2835 = vcombine.low %v2784, %v2816
      %v2836 = vcombine.high %v2784, %v2816
      %v2837 = vcombine.low %v2793, %v2825
      %v2838 = vcombine.high %v2793, %v2825
      %v2839 = vcombine.low %v2800, %v2832
      %v2840 = vcombine.high %v2800, %v2832
      %2842 = vrot.lane.b32.xlu0 %v809, 49
      %v2843 = vpop.permute.xlu0 %2842
      %2846 = vrot.lane.b32.xlu0 %v810, 98
      %v2847 = vpop.permute.xlu0 %2846
      %2850 = vrot.lane.b32.xlu0 %v811, 19
      %v2851 = vpop.permute.xlu0 %2850
      %2854 = vrot.lane.b32.xlu0 %v812, 68
      %v2855 = vpop.permute.xlu0 %2854
      %2858 = vrot.lane.b32.xlu0 %v813, 117
      %v2859 = vpop.permute.xlu0 %2858
      %2862 = vrot.lane.b32.xlu0 %v814, 38
      %v2863 = vpop.permute.xlu0 %2862
      %2866 = vrot.lane.b32.xlu0 %v815, 87
      %v2867 = vpop.permute.xlu0 %2866
      %2870 = vrot.lane.b32.xlu0 %v943, 8
      %v2871 = vpop.permute.xlu0 %2870
      %2874 = vrot.lane.b32.xlu0 %v944, 57
      %v2875 = vpop.permute.xlu0 %2874
      %2878 = vrot.lane.b32.xlu0 %v945, 106
      %v2879 = vpop.permute.xlu0 %2878
      %2882 = vrot.lane.b32.xlu0 %v946, 27
      %v2883 = vpop.permute.xlu0 %2882
      %2886 = vrot.lane.b32.xlu0 %v947, 76
      %v2887 = vpop.permute.xlu0 %2886
      %2890 = vrot.lane.b32.xlu0 %v948, 125
      %v2891 = vpop.permute.xlu0 %2890
      %2894 = vrot.lane.b32.xlu0 %v949, 46
      %v2895 = vpop.permute.xlu0 %2894
      %2898 = vrot.lane.b32.xlu0 %v950, 95
      %v2899 = vpop.permute.xlu0 %2898
      %2902 = vrot.lane.b32.xlu0 %v1078, 16
      %v2903 = vpop.permute.xlu0 %2902
      %2906 = vrot.lane.b32.xlu0 %v1079, 65
      %v2907 = vpop.permute.xlu0 %2906
      %2910 = vrot.lane.b32.xlu0 %v1080, 114
      %v2911 = vpop.permute.xlu0 %2910
      %2914 = vrot.lane.b32.xlu0 %v1081, 35
      %v2915 = vpop.permute.xlu0 %2914
      %2918 = vrot.lane.b32.xlu0 %v1082, 84
      %v2919 = vpop.permute.xlu0 %2918
      %2922 = vrot.lane.b32.xlu0 %v1083, 5
      %v2923 = vpop.permute.xlu0 %2922
      %2926 = vrot.lane.b32.xlu0 %v1084, 54
      %v2927 = vpop.permute.xlu0 %2926
      %2930 = vrot.lane.b32.xlu0 %v1085, 103
      %v2931 = vpop.permute.xlu0 %2930
      %2934 = vrot.lane.b32.xlu0 %v1213, 24
      %v2935 = vpop.permute.xlu0 %2934
      %2938 = vrot.lane.b32.xlu0 %v1214, 73
      %v2939 = vpop.permute.xlu0 %2938
      %2942 = vrot.lane.b32.xlu0 %v1215, 122
      %v2943 = vpop.permute.xlu0 %2942
      %2946 = vrot.lane.b32.xlu0 %v1216, 43
      %v2947 = vpop.permute.xlu0 %2946
      %2950 = vrot.lane.b32.xlu0 %v1217, 92
      %v2951 = vpop.permute.xlu0 %2950
      %2954 = vrot.lane.b32.xlu0 %v1218, 13
      %v2955 = vpop.permute.xlu0 %2954
      %2958 = vrot.lane.b32.xlu0 %v1219, 62
      %v2959 = vpop.permute.xlu0 %2958
      %2962 = vrot.lane.b32.xlu0 %v1220, 111
      %v2963 = vpop.permute.xlu0 %2962
      %2966 = vrot.lane.b32.xlu0 %v1348, 32
      %v2967 = vpop.permute.xlu0 %2966
      %2970 = vrot.lane.b32.xlu0 %v1349, 81
      %v2971 = vpop.permute.xlu0 %2970
      %2974 = vrot.lane.b32.xlu0 %v1350, 2
      %v2975 = vpop.permute.xlu0 %2974
      %2978 = vrot.lane.b32.xlu0 %v1351, 51
      %v2979 = vpop.permute.xlu0 %2978
      %2982 = vrot.lane.b32.xlu0 %v1352, 100
      %v2983 = vpop.permute.xlu0 %2982
      %2986 = vrot.lane.b32.xlu0 %v1353, 21
      %v2987 = vpop.permute.xlu0 %2986
      %2990 = vrot.lane.b32.xlu0 %v1354, 70
      %v2991 = vpop.permute.xlu0 %2990
      %2994 = vrot.lane.b32.xlu0 %v1355, 119
      %v2995 = vpop.permute.xlu0 %2994
      %2998 = vrot.lane.b32.xlu0 %v1483, 40
      %v2999 = vpop.permute.xlu0 %2998
      %3002 = vrot.lane.b32.xlu0 %v1484, 89
      %v3003 = vpop.permute.xlu0 %3002
      %3006 = vrot.lane.b32.xlu0 %v1485, 10
      %v3007 = vpop.permute.xlu0 %3006
      %3010 = vrot.lane.b32.xlu0 %v1486, 59
      %v3011 = vpop.permute.xlu0 %3010
      %3014 = vrot.lane.b32.xlu0 %v1487, 108
      %v3015 = vpop.permute.xlu0 %3014
      %3018 = vrot.lane.b32.xlu0 %v1488, 29
      %v3019 = vpop.permute.xlu0 %3018
      %3022 = vrot.lane.b32.xlu0 %v1489, 78
      %v3023 = vpop.permute.xlu0 %3022
      %3026 = vrot.lane.b32.xlu0 %v1490, 127
      %v3027 = vpop.permute.xlu0 %3026
      %3030 = vrot.lane.b32.xlu0 %v1618, 48
      %v3031 = vpop.permute.xlu0 %3030
      %3034 = vrot.lane.b32.xlu0 %v1619, 97
      %v3035 = vpop.permute.xlu0 %3034
      %3038 = vrot.lane.b32.xlu0 %v1620, 18
      %v3039 = vpop.permute.xlu0 %3038
      %3042 = vrot.lane.b32.xlu0 %v1621, 67
      %v3043 = vpop.permute.xlu0 %3042
      %3046 = vrot.lane.b32.xlu0 %v1622, 116
      %v3047 = vpop.permute.xlu0 %3046
      %3050 = vrot.lane.b32.xlu0 %v1623, 37
      %v3051 = vpop.permute.xlu0 %3050
      %3054 = vrot.lane.b32.xlu0 %v1624, 86
      %v3055 = vpop.permute.xlu0 %3054
      %3058 = vrot.lane.b32.xlu0 %v1625, 7
      %v3059 = vpop.permute.xlu0 %3058
      %3062 = vrot.lane.b32.xlu0 %v1753, 56
      %v3063 = vpop.permute.xlu0 %3062
      %3066 = vrot.lane.b32.xlu0 %v1754, 105
      %v3067 = vpop.permute.xlu0 %3066
      %3070 = vrot.lane.b32.xlu0 %v1755, 26
      %v3071 = vpop.permute.xlu0 %3070
      %3074 = vrot.lane.b32.xlu0 %v1756, 75
      %v3075 = vpop.permute.xlu0 %3074
      %3078 = vrot.lane.b32.xlu0 %v1757, 124
      %v3079 = vpop.permute.xlu0 %3078
      %3082 = vrot.lane.b32.xlu0 %v1758, 45
      %v3083 = vpop.permute.xlu0 %3082
      %3086 = vrot.lane.b32.xlu0 %v1759, 94
      %v3087 = vpop.permute.xlu0 %3086
      %3090 = vrot.lane.b32.xlu0 %v1760, 15
      %v3091 = vpop.permute.xlu0 %3090
      %3094 = vrot.lane.b32.xlu0 %v1888, 64
      %v3095 = vpop.permute.xlu0 %3094
      %3098 = vrot.lane.b32.xlu0 %v1889, 113
      %v3099 = vpop.permute.xlu0 %3098
      %3102 = vrot.lane.b32.xlu0 %v1890, 34
      %v3103 = vpop.permute.xlu0 %3102
      %3106 = vrot.lane.b32.xlu0 %v1891, 83
      %v3107 = vpop.permute.xlu0 %3106
      %3110 = vrot.lane.b32.xlu0 %v1892, 4
      %v3111 = vpop.permute.xlu0 %3110
      %3114 = vrot.lane.b32.xlu0 %v1893, 53
      %v3115 = vpop.permute.xlu0 %3114
      %3118 = vrot.lane.b32.xlu0 %v1894, 102
      %v3119 = vpop.permute.xlu0 %3118
      %3122 = vrot.lane.b32.xlu0 %v1895, 23
      %v3123 = vpop.permute.xlu0 %3122
      %3126 = vrot.lane.b32.xlu0 %v2023, 72
      %v3127 = vpop.permute.xlu0 %3126
      %3130 = vrot.lane.b32.xlu0 %v2024, 121
      %v3131 = vpop.permute.xlu0 %3130
      %3134 = vrot.lane.b32.xlu0 %v2025, 42
      %v3135 = vpop.permute.xlu0 %3134
      %3138 = vrot.lane.b32.xlu0 %v2026, 91
      %v3139 = vpop.permute.xlu0 %3138
      %3142 = vrot.lane.b32.xlu0 %v2027, 12
      %v3143 = vpop.permute.xlu0 %3142
      %3146 = vrot.lane.b32.xlu0 %v2028, 61
      %v3147 = vpop.permute.xlu0 %3146
      %3150 = vrot.lane.b32.xlu0 %v2029, 110
      %v3151 = vpop.permute.xlu0 %3150
      %3154 = vrot.lane.b32.xlu0 %v2030, 31
      %v3155 = vpop.permute.xlu0 %3154
      %3158 = vrot.lane.b32.xlu0 %v2158, 80
      %v3159 = vpop.permute.xlu0 %3158
      %3162 = vrot.lane.b32.xlu0 %v2159, 1
      %v3163 = vpop.permute.xlu0 %3162
      %3166 = vrot.lane.b32.xlu0 %v2160, 50
      %v3167 = vpop.permute.xlu0 %3166
      %3170 = vrot.lane.b32.xlu0 %v2161, 99
      %v3171 = vpop.permute.xlu0 %3170
      %3174 = vrot.lane.b32.xlu0 %v2162, 20
      %v3175 = vpop.permute.xlu0 %3174
      %3178 = vrot.lane.b32.xlu0 %v2163, 69
      %v3179 = vpop.permute.xlu0 %3178
      %3182 = vrot.lane.b32.xlu0 %v2164, 118
      %v3183 = vpop.permute.xlu0 %3182
      %3186 = vrot.lane.b32.xlu0 %v2165, 39
      %v3187 = vpop.permute.xlu0 %3186
      %3190 = vrot.lane.b32.xlu0 %v2293, 88
      %v3191 = vpop.permute.xlu0 %3190
      %3194 = vrot.lane.b32.xlu0 %v2294, 9
      %v3195 = vpop.permute.xlu0 %3194
      %3198 = vrot.lane.b32.xlu0 %v2295, 58
      %v3199 = vpop.permute.xlu0 %3198
      %3202 = vrot.lane.b32.xlu0 %v2296, 107
      %v3203 = vpop.permute.xlu0 %3202
      %3206 = vrot.lane.b32.xlu0 %v2297, 28
      %v3207 = vpop.permute.xlu0 %3206
      %3210 = vrot.lane.b32.xlu0 %v2298, 77
      %v3211 = vpop.permute.xlu0 %3210
      %3214 = vrot.lane.b32.xlu0 %v2299, 126
      %v3215 = vpop.permute.xlu0 %3214
      %3218 = vrot.lane.b32.xlu0 %v2300, 47
      %v3219 = vpop.permute.xlu0 %3218
      %3222 = vrot.lane.b32.xlu0 %v2428, 96
      %v3223 = vpop.permute.xlu0 %3222
      %3226 = vrot.lane.b32.xlu0 %v2429, 17
      %v3227 = vpop.permute.xlu0 %3226
      %3230 = vrot.lane.b32.xlu0 %v2430, 66
      %v3231 = vpop.permute.xlu0 %3230
      %3234 = vrot.lane.b32.xlu0 %v2431, 115
      %v3235 = vpop.permute.xlu0 %3234
      %3238 = vrot.lane.b32.xlu0 %v2432, 36
      %v3239 = vpop.permute.xlu0 %3238
      %3242 = vrot.lane.b32.xlu0 %v2433, 85
      %v3243 = vpop.permute.xlu0 %3242
      %3246 = vrot.lane.b32.xlu0 %v2434, 6
      %v3247 = vpop.permute.xlu0 %3246
      %3250 = vrot.lane.b32.xlu0 %v2435, 55
      %v3251 = vpop.permute.xlu0 %3250
      %3254 = vrot.lane.b32.xlu0 %v2563, 104
      %v3255 = vpop.permute.xlu0 %3254
      %3258 = vrot.lane.b32.xlu0 %v2564, 25
      %v3259 = vpop.permute.xlu0 %3258
      %3262 = vrot.lane.b32.xlu0 %v2565, 74
      %v3263 = vpop.permute.xlu0 %3262
      %3266 = vrot.lane.b32.xlu0 %v2566, 123
      %v3267 = vpop.permute.xlu0 %3266
      %3270 = vrot.lane.b32.xlu0 %v2567, 44
      %v3271 = vpop.permute.xlu0 %3270
      %3274 = vrot.lane.b32.xlu0 %v2568, 93
      %v3275 = vpop.permute.xlu0 %3274
      %3278 = vrot.lane.b32.xlu0 %v2569, 14
      %v3279 = vpop.permute.xlu0 %3278
      %3282 = vrot.lane.b32.xlu0 %v2570, 63
      %v3283 = vpop.permute.xlu0 %3282
      %3286 = vrot.lane.b32.xlu0 %v2698, 112
      %v3287 = vpop.permute.xlu0 %3286
      %3290 = vrot.lane.b32.xlu0 %v2699, 33
      %v3291 = vpop.permute.xlu0 %3290
      %3294 = vrot.lane.b32.xlu0 %v2700, 82
      %v3295 = vpop.permute.xlu0 %3294
      %3298 = vrot.lane.b32.xlu0 %v2701, 3
      %v3299 = vpop.permute.xlu0 %3298
      %3302 = vrot.lane.b32.xlu0 %v2702, 52
      %v3303 = vpop.permute.xlu0 %3302
      %3306 = vrot.lane.b32.xlu0 %v2703, 101
      %v3307 = vpop.permute.xlu0 %3306
      %3310 = vrot.lane.b32.xlu0 %v2704, 22
      %v3311 = vpop.permute.xlu0 %3310
      %3314 = vrot.lane.b32.xlu0 %v2705, 71
      %v3315 = vpop.permute.xlu0 %3314
      %3318 = vrot.lane.b32.xlu0 %v2833, 120
      %v3319 = vpop.permute.xlu0 %3318
      %3322 = vrot.lane.b32.xlu0 %v2834, 41
      %v3323 = vpop.permute.xlu0 %3322
      %3326 = vrot.lane.b32.xlu0 %v2835, 90
      %v3327 = vpop.permute.xlu0 %3326
      %3330 = vrot.lane.b32.xlu0 %v2836, 11
      %v3331 = vpop.permute.xlu0 %3330
      %3334 = vrot.lane.b32.xlu0 %v2837, 60
      %v3335 = vpop.permute.xlu0 %3334
      %3338 = vrot.lane.b32.xlu0 %v2838, 109
      %v3339 = vpop.permute.xlu0 %3338
      %3342 = vrot.lane.b32.xlu0 %v2839, 30
      %v3343 = vpop.permute.xlu0 %3342
      %3346 = vrot.lane.b32.xlu0 %v2840, 79
      %v3347 = vpop.permute.xlu0 %3346
      %vm3349 = vcmask 400384
      %v3350 = vsel %vm3349, %v808, %v2843
      %vm3351 = vcmask 801792
      %v3352 = vsel %vm3351, %v3350, %v2847
      %vm3353 = vcmask 154624
      %v3354 = vsel %vm3353, %v2847, %v2851
      %vm3355 = vcmask 556032
      %v3356 = vsel %vm3355, %v3354, %v2855
      %vm3357 = vcmask 957440
      %v3358 = vsel %vm3357, %v3356, %v2859
      %vm3359 = vcmask 310272
      %v3360 = vsel %vm3359, %v2859, %v2863
      %vm3361 = vcmask 711680
      %v3362 = vsel %vm3361, %v3360, %v2867
      %vm3363 = vcmask 64512
      %v3364 = vsel %vm3363, %v2867, %v2871
      %vm3365 = vcmask 465920
      %v3366 = vsel %vm3365, %v3364, %v2875
      %vm3367 = vcmask 867328
      %v3368 = vsel %vm3367, %v3366, %v2879
      %vm3369 = vcmask 220160
      %v3370 = vsel %vm3369, %v2879, %v2883
      %vm3371 = vcmask 621568
      %v3372 = vsel %vm3371, %v3370, %v2887
      %vm3373 = vcmask 1022976
      %v3374 = vsel %vm3373, %v3372, %v2891
      %vm3375 = vcmask 375808
      %v3376 = vsel %vm3375, %v2891, %v2895
      %vm3377 = vcmask 777216
      %v3378 = vsel %vm3377, %v3376, %v2899
      %vm3379 = vcmask 130048
      %v3380 = vsel %vm3379, %v2899, %v2903
      %vm3381 = vcmask 531456
      %v3382 = vsel %vm3381, %v3380, %v2907
      %vm3383 = vcmask 932864
      %v3384 = vsel %vm3383, %v3382, %v2911
      %vm3385 = vcmask 285696
      %v3386 = vsel %vm3385, %v2911, %v2915
      %vm3387 = vcmask 687104
      %v3388 = vsel %vm3387, %v3386, %v2919
      %vm3389 = vcmask 39936
      %v3390 = vsel %vm3389, %v2919, %v2923
      %vm3391 = vcmask 441344
      %v3392 = vsel %vm3391, %v3390, %v2927
      %vm3393 = vcmask 842752
      %v3394 = vsel %vm3393, %v3392, %v2931
      %vm3395 = vcmask 195584
      %v3396 = vsel %vm3395, %v2931, %v2935
      %vm3397 = vcmask 596992
      %v3398 = vsel %vm3397, %v3396, %v2939
      %vm3399 = vcmask 998400
      %v3400 = vsel %vm3399, %v3398, %v2943
      %vm3401 = vcmask 351232
      %v3402 = vsel %vm3401, %v2943, %v2947
      %vm3403 = vcmask 752640
      %v3404 = vsel %vm3403, %v3402, %v2951
      %vm3405 = vcmask 105472
      %v3406 = vsel %vm3405, %v2951, %v2955
      %vm3407 = vcmask 506880
      %v3408 = vsel %vm3407, %v3406, %v2959
      %vm3409 = vcmask 908288
      %v3410 = vsel %vm3409, %v3408, %v2963
      %vm3411 = vcmask 261120
      %v3412 = vsel %vm3411, %v2963, %v2967
      %vm3413 = vcmask 662528
      %v3414 = vsel %vm3413, %v3412, %v2971
      %vm3415 = vcmask 15360
      %v3416 = vsel %vm3415, %v2971, %v2975
      %vm3417 = vcmask 416768
      %v3418 = vsel %vm3417, %v3416, %v2979
      %vm3419 = vcmask 818176
      %v3420 = vsel %vm3419, %v3418, %v2983
      %vm3421 = vcmask 171008
      %v3422 = vsel %vm3421, %v2983, %v2987
      %vm3423 = vcmask 572416
      %v3424 = vsel %vm3423, %v3422, %v2991
      %vm3425 = vcmask 973824
      %v3426 = vsel %vm3425, %v3424, %v2995
      %vm3427 = vcmask 326656
      %v3428 = vsel %vm3427, %v2995, %v2999
      %vm3429 = vcmask 728064
      %v3430 = vsel %vm3429, %v3428, %v3003
      %vm3431 = vcmask 80896
      %v3432 = vsel %vm3431, %v3003, %v3007
      %vm3433 = vcmask 482304
      %v3434 = vsel %vm3433, %v3432, %v3011
      %vm3435 = vcmask 883712
      %v3436 = vsel %vm3435, %v3434, %v3015
      %vm3437 = vcmask 236544
      %v3438 = vsel %vm3437, %v3015, %v3019
      %vm3439 = vcmask 637952
      %v3440 = vsel %vm3439, %v3438, %v3023
      %vm3441 = vcmask 1039360
      %v3442 = vsel %vm3441, %v3440, %v3027
      %vm3443 = vcmask 392192
      %v3444 = vsel %vm3443, %v3027, %v3031
      %vm3445 = vcmask 793600
      %v3446 = vsel %vm3445, %v3444, %v3035
      %vm3447 = vcmask 146432
      %v3448 = vsel %vm3447, %v3035, %v3039
      %vm3449 = vcmask 547840
      %v3450 = vsel %vm3449, %v3448, %v3043
      %vm3451 = vcmask 949248
      %v3452 = vsel %vm3451, %v3450, %v3047
      %vm3453 = vcmask 302080
      %v3454 = vsel %vm3453, %v3047, %v3051
      %vm3455 = vcmask 703488
      %v3456 = vsel %vm3455, %v3454, %v3055
      %vm3457 = vcmask 56320
      %v3458 = vsel %vm3457, %v3055, %v3059
      %vm3459 = vcmask 457728
      %v3460 = vsel %vm3459, %v3458, %v3063
      %vm3461 = vcmask 859136
      %v3462 = vsel %vm3461, %v3460, %v3067
      %vm3463 = vcmask 211968
      %v3464 = vsel %vm3463, %v3067, %v3071
      %vm3465 = vcmask 613376
      %v3466 = vsel %vm3465, %v3464, %v3075
      %vm3467 = vcmask 1014784
      %v3468 = vsel %vm3467, %v3466, %v3079
      %vm3469 = vcmask 367616
      %v3470 = vsel %vm3469, %v3079, %v3083
      %vm3471 = vcmask 769024
      %v3472 = vsel %vm3471, %v3470, %v3087
      %vm3473 = vcmask 121856
      %v3474 = vsel %vm3473, %v3087, %v3091
      %vm3475 = vcmask 523264
      %v3476 = vsel %vm3475, %v3474, %v3095
      %vm3477 = vcmask 924672
      %v3478 = vsel %vm3477, %v3476, %v3099
      %vm3479 = vcmask 277504
      %v3480 = vsel %vm3479, %v3099, %v3103
      %vm3481 = vcmask 678912
      %v3482 = vsel %vm3481, %v3480, %v3107
      %vm3483 = vcmask 31744
      %v3484 = vsel %vm3483, %v3107, %v3111
      %vm3485 = vcmask 433152
      %v3486 = vsel %vm3485, %v3484, %v3115
      %vm3487 = vcmask 834560
      %v3488 = vsel %vm3487, %v3486, %v3119
      %vm3489 = vcmask 187392
      %v3490 = vsel %vm3489, %v3119, %v3123
      %vm3491 = vcmask 588800
      %v3492 = vsel %vm3491, %v3490, %v3127
      %vm3493 = vcmask 990208
      %v3494 = vsel %vm3493, %v3492, %v3131
      %vm3495 = vcmask 343040
      %v3496 = vsel %vm3495, %v3131, %v3135
      %vm3497 = vcmask 744448
      %v3498 = vsel %vm3497, %v3496, %v3139
      %vm3499 = vcmask 97280
      %v3500 = vsel %vm3499, %v3139, %v3143
      %vm3501 = vcmask 498688
      %v3502 = vsel %vm3501, %v3500, %v3147
      %vm3503 = vcmask 900096
      %v3504 = vsel %vm3503, %v3502, %v3151
      %vm3505 = vcmask 252928
      %v3506 = vsel %vm3505, %v3151, %v3155
      %vm3507 = vcmask 654336
      %v3508 = vsel %vm3507, %v3506, %v3159
      %vm3509 = vcmask 7168
      %v3510 = vsel %vm3509, %v3159, %v3163
      %vm3511 = vcmask 408576
      %v3512 = vsel %vm3511, %v3510, %v3167
      %vm3513 = vcmask 809984
      %v3514 = vsel %vm3513, %v3512, %v3171
      %vm3515 = vcmask 162816
      %v3516 = vsel %vm3515, %v3171, %v3175
      %vm3517 = vcmask 564224
      %v3518 = vsel %vm3517, %v3516, %v3179
      %vm3519 = vcmask 965632
      %v3520 = vsel %vm3519, %v3518, %v3183
      %vm3521 = vcmask 318464
      %v3522 = vsel %vm3521, %v3183, %v3187
      %vm3523 = vcmask 719872
      %v3524 = vsel %vm3523, %v3522, %v3191
      %vm3525 = vcmask 72704
      %v3526 = vsel %vm3525, %v3191, %v3195
      %vm3527 = vcmask 474112
      %v3528 = vsel %vm3527, %v3526, %v3199
      %vm3529 = vcmask 875520
      %v3530 = vsel %vm3529, %v3528, %v3203
      %vm3531 = vcmask 228352
      %v3532 = vsel %vm3531, %v3203, %v3207
      %vm3533 = vcmask 629760
      %v3534 = vsel %vm3533, %v3532, %v3211
      %vm3535 = vcmask 1031168
      %v3536 = vsel %vm3535, %v3534, %v3215
      %vm3537 = vcmask 384000
      %v3538 = vsel %vm3537, %v3215, %v3219
      %vm3539 = vcmask 785408
      %v3540 = vsel %vm3539, %v3538, %v3223
      %vm3541 = vcmask 138240
      %v3542 = vsel %vm3541, %v3223, %v3227
      %vm3543 = vcmask 539648
      %v3544 = vsel %vm3543, %v3542, %v3231
      %vm3545 = vcmask 941056
      %v3546 = vsel %vm3545, %v3544, %v3235
      %vm3547 = vcmask 293888
      %v3548 = vsel %vm3547, %v3235, %v3239
      %vm3549 = vcmask 695296
      %v3550 = vsel %vm3549, %v3548, %v3243
      %vm3551 = vcmask 48128
      %v3552 = vsel %vm3551, %v3243, %v3247
      %vm3553 = vcmask 449536
      %v3554 = vsel %vm3553, %v3552, %v3251
      %vm3555 = vcmask 850944
      %v3556 = vsel %vm3555, %v3554, %v3255
      %vm3557 = vcmask 203776
      %v3558 = vsel %vm3557, %v3255, %v3259
      %vm3559 = vcmask 605184
      %v3560 = vsel %vm3559, %v3558, %v3263
      %vm3561 = vcmask 1006592
      %v3562 = vsel %vm3561, %v3560, %v3267
      %vm3563 = vcmask 359424
      %v3564 = vsel %vm3563, %v3267, %v3271
      %vm3565 = vcmask 760832
      %v3566 = vsel %vm3565, %v3564, %v3275
      %vm3567 = vcmask 113664
      %v3568 = vsel %vm3567, %v3275, %v3279
      %vm3569 = vcmask 515072
      %v3570 = vsel %vm3569, %v3568, %v3283
      %vm3571 = vcmask 916480
      %v3572 = vsel %vm3571, %v3570, %v3287
      %vm3573 = vcmask 269312
      %v3574 = vsel %vm3573, %v3287, %v3291
      %vm3575 = vcmask 670720
      %v3576 = vsel %vm3575, %v3574, %v3295
      %vm3577 = vcmask 23552
      %v3578 = vsel %vm3577, %v3295, %v3299
      %vm3579 = vcmask 424960
      %v3580 = vsel %vm3579, %v3578, %v3303
      %vm3581 = vcmask 826368
      %v3582 = vsel %vm3581, %v3580, %v3307
      %vm3583 = vcmask 179200
      %v3584 = vsel %vm3583, %v3307, %v3311
      %vm3585 = vcmask 580608
      %v3586 = vsel %vm3585, %v3584, %v3315
      %vm3587 = vcmask 982016
      %v3588 = vsel %vm3587, %v3586, %v3319
      %vm3589 = vcmask 334848
      %v3590 = vsel %vm3589, %v3319, %v3323
      %vm3591 = vcmask 736256
      %v3592 = vsel %vm3591, %v3590, %v3327
      %vm3593 = vcmask 89088
      %v3594 = vsel %vm3593, %v3327, %v3331
      %vm3595 = vcmask 490496
      %v3596 = vsel %vm3595, %v3594, %v3335
      %vm3597 = vcmask 891904
      %v3598 = vsel %vm3597, %v3596, %v3339
      %vm3599 = vcmask 244736
      %v3600 = vsel %vm3599, %v3339, %v3343
      %vm3601 = vcmask 646144
      %v3602 = vsel %vm3601, %v3600, %v3347
      %v3603 = vld [vmem:[%s193] sm:$0x7f]
      %v3604 = vld [vmem:[%s193 + $0x8] sm:$0x7f]
      %v3605 = vld [vmem:[%s193 + $0x10] sm:$0x7f]
      %v3606 = vld [vmem:[%s193 + $0x18] sm:$0x7f]
      %v3607 = vld [vmem:[%s193 + $0x20] sm:$0x7f]
      %v3608 = vld [vmem:[%s193 + $0x28] sm:$0x7f]
      %v3609 = vld [vmem:[%s193 + $0x30] sm:$0x7f]
      %v3610 = vld [vmem:[%s193 + $0x38] sm:$0x7f]
      %v3611 = vld [vmem:[%s193 + $0x40] sm:$0x7f]
      %v3612 = vld [vmem:[%s193 + $0x48] sm:$0x7f]
      %v3613 = vld [vmem:[%s193 + $0x50] sm:$0x7f]
      %v3614 = vld [vmem:[%s193 + $0x58] sm:$0x7f]
      %v3615 = vld [vmem:[%s193 + $0x60] sm:$0x7f]
      %v3616 = vld [vmem:[%s193 + $0x68] sm:$0x7f]
      %v3617 = vld [vmem:[%s193 + $0x70] sm:$0x7f]
      %v3618 = vld [vmem:[%s193 + $0x78] sm:$0x7f]
      %v3619 = vld [vmem:[%s193 + $0x80] sm:$0x7f]
      %v3620 = vld [vmem:[%s193 + $0x88] sm:$0x7f]
      %v3621 = vld [vmem:[%s193 + $0x90] sm:$0x7f]
      %v3622 = vld [vmem:[%s193 + $0x98] sm:$0x7f]
      %v3623 = vld [vmem:[%s193 + $0xa0] sm:$0x7f]
      %v3624 = vld [vmem:[%s193 + $0xa8] sm:$0x7f]
      %v3625 = vld [vmem:[%s193 + $0xb0] sm:$0x7f]
      %v3626 = vld [vmem:[%s193 + $0xb8] sm:$0x7f]
      %v3627 = vld [vmem:[%s193 + $0xc0] sm:$0x7f]
      %v3628 = vld [vmem:[%s193 + $0xc8] sm:$0x7f]
      %v3629 = vld [vmem:[%s193 + $0xd0] sm:$0x7f]
      %v3630 = vld [vmem:[%s193 + $0xd8] sm:$0x7f]
      %v3631 = vld [vmem:[%s193 + $0xe0] sm:$0x7f]
      %v3632 = vld [vmem:[%s193 + $0xe8] sm:$0x7f]
      %v3633 = vld [vmem:[%s193 + $0xf0] sm:$0x7f]
      %v3634 = vld [vmem:[%s193 + $0xf8] sm:$0x7f]
      %v3635 = vld [vmem:[%s193 + $0x100] sm:$0x7f]
      %v3636 = vld [vmem:[%s193 + $0x108] sm:$0x7f]
      %v3637 = vld [vmem:[%s193 + $0x110] sm:$0x7f]
      %v3638 = vld [vmem:[%s193 + $0x118] sm:$0x7f]
      %v3639 = vld [vmem:[%s193 + $0x120] sm:$0x7f]
      %v3640 = vld [vmem:[%s193 + $0x128] sm:$0x7f]
      %v3641 = vld [vmem:[%s193 + $0x130] sm:$0x7f]
      %v3642 = vld [vmem:[%s193 + $0x138] sm:$0x7f]
      %v3643 = vld [vmem:[%s193 + $0x140] sm:$0x7f]
      %v3644 = vld [vmem:[%s193 + $0x148] sm:$0x7f]
      %v3645 = vld [vmem:[%s193 + $0x150] sm:$0x7f]
      %v3646 = vld [vmem:[%s193 + $0x158] sm:$0x7f]
      %v3647 = vld [vmem:[%s193 + $0x160] sm:$0x7f]
      %v3648 = vld [vmem:[%s193 + $0x168] sm:$0x7f]
      %v3649 = vld [vmem:[%s193 + $0x170] sm:$0x7f]
      %v3650 = vld [vmem:[%s193 + $0x178] sm:$0x7f]
      %v3651 = vld [vmem:[%s193 + $0x180] sm:$0x7f]
      %v3652 = vmul.f32 %v3603, %v3352
      %v3653 = vmul.f32 %v3604, %v3358
      %v3654 = vmul.f32 %v3605, %v3362
      %v3655 = vmul.f32 %v3606, %v3368
      %v3656 = vmul.f32 %v3607, %v3374
      %v3657 = vmul.f32 %v3608, %v3378
      %v3658 = vmul.f32 %v3609, %v3384
      %v3659 = vmul.f32 %v3610, %v3388
      %v3660 = vmul.f32 %v3611, %v3394
      %v3661 = vmul.f32 %v3612, %v3400
      %v3662 = vmul.f32 %v3613, %v3404
      %v3663 = vmul.f32 %v3614, %v3410
      %v3664 = vmul.f32 %v3615, %v3414
      %v3665 = vmul.f32 %v3616, %v3420
      %v3666 = vmul.f32 %v3617, %v3426
      %v3667 = vmul.f32 %v3618, %v3430
      %v3668 = vmul.f32 %v3619, %v3436
      %v3669 = vmul.f32 %v3620, %v3442
      %v3670 = vmul.f32 %v3621, %v3446
      %v3671 = vmul.f32 %v3622, %v3452
      %v3672 = vmul.f32 %v3623, %v3456
      %v3673 = vmul.f32 %v3624, %v3462
      %v3674 = vmul.f32 %v3625, %v3468
      %v3675 = vmul.f32 %v3626, %v3472
      %v3676 = vmul.f32 %v3627, %v3478
      %v3677 = vmul.f32 %v3628, %v3482
      %v3678 = vmul.f32 %v3629, %v3488
      %v3679 = vmul.f32 %v3630, %v3494
      %v3680 = vmul.f32 %v3631, %v3498
      %v3681 = vmul.f32 %v3632, %v3504
      %v3682 = vmul.f32 %v3633, %v3508
      %v3683 = vmul.f32 %v3634, %v3514
      %v3684 = vmul.f32 %v3635, %v3520
      %v3685 = vmul.f32 %v3636, %v3524
      %v3686 = vmul.f32 %v3637, %v3530
      %v3687 = vmul.f32 %v3638, %v3536
      %v3688 = vmul.f32 %v3639, %v3540
      %v3689 = vmul.f32 %v3640, %v3546
      %v3690 = vmul.f32 %v3641, %v3550
      %v3691 = vmul.f32 %v3642, %v3556
      %v3692 = vmul.f32 %v3643, %v3562
      %v3693 = vmul.f32 %v3644, %v3566
      %v3694 = vmul.f32 %v3645, %v3572
      %v3695 = vmul.f32 %v3646, %v3576
      %v3696 = vmul.f32 %v3647, %v3582
      %v3697 = vmul.f32 %v3648, %v3588
      %v3698 = vmul.f32 %v3649, %v3592
      %v3699 = vmul.f32 %v3650, %v3598
      %v3700 = vmul.f32 %v3651, %v3602
      %3701 = vst [vmem:[%s210] sm:$0x7f] %v3652
      %3702 = vst [vmem:[%s210 + $0x8] sm:$0x7f] %v3653
      %3703 = vst [vmem:[%s210 + $0x10] sm:$0x7f] %v3654
      %3704 = vst [vmem:[%s210 + $0x18] sm:$0x7f] %v3655
      %3705 = vst [vmem:[%s210 + $0x20] sm:$0x7f] %v3656
      %3706 = vst [vmem:[%s210 + $0x28] sm:$0x7f] %v3657
      %3707 = vst [vmem:[%s210 + $0x30] sm:$0x7f] %v3658
      %3708 = vst [vmem:[%s210 + $0x38] sm:$0x7f] %v3659
      %3709 = vst [vmem:[%s210 + $0x40] sm:$0x7f] %v3660
      %3710 = vst [vmem:[%s210 + $0x48] sm:$0x7f] %v3661
      %3711 = vst [vmem:[%s210 + $0x50] sm:$0x7f] %v3662
      %3712 = vst [vmem:[%s210 + $0x58] sm:$0x7f] %v3663
      %3713 = vst [vmem:[%s210 + $0x60] sm:$0x7f] %v3664
      %3714 = vst [vmem:[%s210 + $0x68] sm:$0x7f] %v3665
      %3715 = vst [vmem:[%s210 + $0x70] sm:$0x7f] %v3666
      %3716 = vst [vmem:[%s210 + $0x78] sm:$0x7f] %v3667
      %3717 = vst [vmem:[%s210 + $0x80] sm:$0x7f] %v3668
      %3718 = vst [vmem:[%s210 + $0x88] sm:$0x7f] %v3669
      %3719 = vst [vmem:[%s210 + $0x90] sm:$0x7f] %v3670
      %3720 = vst [vmem:[%s210 + $0x98] sm:$0x7f] %v3671
      %3721 = vst [vmem:[%s210 + $0xa0] sm:$0x7f] %v3672
      %3722 = vst [vmem:[%s210 + $0xa8] sm:$0x7f] %v3673
      %3723 = vst [vmem:[%s210 + $0xb0] sm:$0x7f] %v3674
      %3724 = vst [vmem:[%s210 + $0xb8] sm:$0x7f] %v3675
      %3725 = vst [vmem:[%s210 + $0xc0] sm:$0x7f] %v3676
      %3726 = vst [vmem:[%s210 + $0xc8] sm:$0x7f] %v3677
      %3727 = vst [vmem:[%s210 + $0xd0] sm:$0x7f] %v3678
      %3728 = vst [vmem:[%s210 + $0xd8] sm:$0x7f] %v3679
      %3729 = vst [vmem:[%s210 + $0xe0] sm:$0x7f] %v3680
      %3730 = vst [vmem:[%s210 + $0xe8] sm:$0x7f] %v3681
      %3731 = vst [vmem:[%s210 + $0xf0] sm:$0x7f] %v3682
      %3732 = vst [vmem:[%s210 + $0xf8] sm:$0x7f] %v3683
      %3733 = vst [vmem:[%s210 + $0x100] sm:$0x7f] %v3684
      %3734 = vst [vmem:[%s210 + $0x108] sm:$0x7f] %v3685
      %3735 = vst [vmem:[%s210 + $0x110] sm:$0x7f] %v3686
      %3736 = vst [vmem:[%s210 + $0x118] sm:$0x7f] %v3687
      %3737 = vst [vmem:[%s210 + $0x120] sm:$0x7f] %v3688
      %3738 = vst [vmem:[%s210 + $0x128] sm:$0x7f] %v3689
      %3739 = vst [vmem:[%s210 + $0x130] sm:$0x7f] %v3690
      %3740 = vst [vmem:[%s210 + $0x138] sm:$0x7f] %v3691
      %3741 = vst [vmem:[%s210 + $0x140] sm:$0x7f] %v3692
      %3742 = vst [vmem:[%s210 + $0x148] sm:$0x7f] %v3693
      %3743 = vst [vmem:[%s210 + $0x150] sm:$0x7f] %v3694
      %3744 = vst [vmem:[%s210 + $0x158] sm:$0x7f] %v3695
      %3745 = vst [vmem:[%s210 + $0x160] sm:$0x7f] %v3696
      %3746 = vst [vmem:[%s210 + $0x168] sm:$0x7f] %v3697
      %3747 = vst [vmem:[%s210 + $0x170] sm:$0x7f] %v3698
      %3748 = vst [vmem:[%s210 + $0x178] sm:$0x7f] %v3699
      %3749 = vst [vmem:[%s210 + $0x180] sm:$0x7f] %v3700
      %p3750 = scmp.lt.s32.totalorder %s17, 0
      %s3751 = scalar_select %p3750, %s17, 0
      %p3752 = scmp.lt.s32.totalorder %s18, 2
      %s3753 = scalar_select %p3752, %s18, 2
      %s3754 = smul.addr %s3753, 49
      %s3755 = smul.addr %s3751, 147
      %s3756 = sadd.s32 %s3754, %s3755
      %s3757 = smul.addr %s3756, 8
      %s3758 = scalar_lea.vmem %s2, %s3757
      // Predicated region
      $region29: #{tpu_custom_call.1} parent=27 // pred_check
        %p3759 = pneg %p101
      $region30: #{tpu_custom_call.1} parent=27 // pred_check_branch
        %3761 = sbr.rel (%p3759) target = $region32
      $region31: #{tpu_custom_call.1} parent=27 // pred_region
        _
      $region32: #{tpu_custom_call.1} parent=27 // pred_fallthru
        _
    $region28: #{tpu_custom_call.1} parent=5 // pred_fallthru
      _
    %p3762 = scmp.le.s32.totalorder 2, %s8
    // Predicated region
    $region33: #{tpu_custom_call.1} parent=5 // pred_check
      %p3763 = pneg %p3762
    $region34: #{tpu_custom_call.1} parent=5 // pred_check_branch
      %3765 = sbr.rel (%p3763) target = $region36
    $region35: #{tpu_custom_call.1} parent=5 // pred_region
      %s3766 = ssub.s32 %s8, 2
      // Predicated region
      $region37: #{tpu_custom_call.1} parent=35 // pred_check
        %p3767 = pneg %p107
      $region38: #{tpu_custom_call.1} parent=35 // pred_check_branch
        %3769 = sbr.rel (%p3767) target = $region40
      $region39: #{tpu_custom_call.1} parent=35 // pred_region
        %p3770 = scmp.lt.s32.totalorder %s19, 0
        %s3771 = scalar_select %p3770, %s19, 0
        %p3772 = scmp.lt.s32.totalorder %s20, 2
        %s3773 = scalar_select %p3772, %s20, 2
        %s3774 = smul.addr %s3773, 49
        %s3775 = smul.addr %s3771, 147
        %s3776 = sadd.s32 %s3774, %s3775
        %s3777 = smul.addr %s3776, 8
        %s3778 = scalar_lea.vmem %s2, %s3777
      $region40: #{tpu_custom_call.1} parent=35 // pred_fallthru
        _
    $region36: #{tpu_custom_call.1} parent=5 // pred_fallthru
      _
  $region6: #{tpu_custom_call.1} parent=0 // loop_footer
    %s12 = sadd.s32 1, %s8
  $region7: #{tpu_custom_call.1} parent=0 // loop_footer_branch
    %7 = sbr.rel target = $region3
  $region8: #{tpu_custom_call.1} parent=0 // loop_exit
    _

// kernel: tpu_custom_call.1
$region0: #{tpu_custom_call.1}
  #allocation0 [shape = 'u32[]', space=smem, size = 0x4, offset = 0x4, fixed_abs, tag = 'smem constant byte address 0x4 - core index']
  #allocation1 [shape = 'u32[144,128]{1,0:T(1,128)}', space=vmem, size = 0x12000, scoped, tag = 'internal scratch']
  %s0 = inlined_call_operand.vmem [shape: f32[1,2688,49], index: 0, kind: input, shape index: {}]
  %s1 = inlined_call_operand.vmem [shape: f32[1,2688,1], index: 1, kind: input, shape index: {}]
  %s2 = inlined_call_operand.vmem [shape: f32[1,2688,49], index: 2, kind: output, shape index: {}]
  %s3 = sld [smem:[#allocation0]]
  $region41: #{tpu_custom_call.1} parent=0
    _
  %s5 = ssub.s32 1, %s3
  %s6 = scalar_select 0, %s5, %s3
  loop: start=0, step=1, limit=4
  $region2: #{tpu_custom_call.1} parent=0 // loop_pre_header
    _
  $region3: #{tpu_custom_call.1} parent=0 // loop_header
    %s8 = sphi 0, %s12
    %p9 = scmp.ge.s32.totalorder %s8, 4
    %s15 = sphi 0, %s27
    %s16 = sphi 0, %s23
    %s17 = sphi 0, %s15
    %s18 = sphi 0, %s16
    %s19 = sphi 0, %s17
    %s20 = sphi 0, %s18
    %s32 = sphi 0, %s34
    %s35 = sphi 0, %s32
    %s36 = sphi 0, %s35
    %s52 = sphi 0, %s36
    %s60 = sphi 0, %s62
    %s63 = sphi 0, %s60
    %s64 = sphi 0, %s63
    %s80 = sphi 0, %s64
    %s88 = sphi 0, %s90
    %s91 = sphi 0, %s88
    %s92 = sphi 0, %s91
    %s108 = sphi 0, %s92
  $region4: #{tpu_custom_call.1} parent=0 // loop_header_branch
    %11 = sbr.rel (%p9) target = $region8
  $region5: #{tpu_custom_call.1} parent=0 // loop_body
    %s13 = ssub.s32 %s8, 1
    %s14 = ssub.s32 %s8, 2
    %s21 = sadd.s32 1, %s16
    %p22 = scmp.ge.s32.totalorder %s21, 2
    %s23 = scalar_select %p22, 0, %s21
    %s24 = sadd.s32 1, %s15
    %s25 = scalar_select %p22, %s24, %s15
    %p26 = scmp.ge.s32.totalorder %s25, 1
    %s27 = scalar_select %p26, 0, %s25
    %s28 = ssub.s32 %s15, %s27
    %s29 = ssub.s32 %s16, %s23
    %s30 = sor.u32 %s28, %s29
    %p31 = scmp.eq.s32.totalorder %s30, 0
    %s33 = sadd.s32 %s32, 1
    %s34 = scalar_select %p31, %s32, %s33
    %p37 = pneg %p31
    %p38 = scmp.eq.s32.totalorder %s8, 1
    %p39 = por %p37, %p38
    %p40 = scmp.ne.s32.totalorder %s32, %s35
    %p41 = scmp.eq.s32.totalorder %s8, 0
    %p42 = por %p40, %p41
    %p43 = scmp.ne.s32.totalorder %s32, %s35
    %p44 = scmp.eq.s32.totalorder %s13, 1
    %p45 = por %p43, %p44
    %p46 = scmp.ne.s32.totalorder %s35, %s36
    %p47 = scmp.eq.s32.totalorder %s13, 0
    %p48 = por %p46, %p47
    %p49 = scmp.ne.s32.totalorder %s35, %s36
    %p50 = scmp.eq.s32.totalorder %s14, 1
    %p51 = por %p49, %p50
    %p53 = scmp.ne.s32.totalorder %s36, %s52
    %p54 = scmp.eq.s32.totalorder %s14, 0
    %p55 = por %p53, %p54
    %s56 = ssub.s32 %s15, %s27
    %s57 = ssub.s32 %s16, %s23
    %s58 = sor.u32 %s56, %s57
    %p59 = scmp.eq.s32.totalorder %s58, 0
    %s61 = sadd.s32 %s60, 1
    %s62 = scalar_select %p59, %s60, %s61
    %p65 = pneg %p59
    %p66 = scmp.eq.s32.totalorder %s8, 1
    %p67 = por %p65, %p66
    %p68 = scmp.ne.s32.totalorder %s60, %s63
    %p69 = scmp.eq.s32.totalorder %s8, 0
    %p70 = por %p68, %p69
    %p71 = scmp.ne.s32.totalorder %s60, %s63
    %p72 = scmp.eq.s32.totalorder %s13, 1
    %p73 = por %p71, %p72
    %p74 = scmp.ne.s32.totalorder %s63, %s64
    %p75 = scmp.eq.s32.totalorder %s13, 0
    %p76 = por %p74, %p75
    %p77 = scmp.ne.s32.totalorder %s63, %s64
    %p78 = scmp.eq.s32.totalorder %s14, 1
    %p79 = por %p77, %p78
    %p81 = scmp.ne.s32.totalorder %s64, %s80
    %p82 = scmp.eq.s32.totalorder %s14, 0
    %p83 = por %p81, %p82
    %s84 = ssub.s32 %s15, %s27
    %s85 = ssub.s32 %s16, %s23
    %s86 = sor.u32 %s84, %s85
    %p87 = scmp.eq.s32.totalorder %s86, 0
    %s89 = sadd.s32 %s88, 1
    %s90 = scalar_select %p87, %s88, %s89
    %p93 = pneg %p87
    %p94 = scmp.eq.s32.totalorder %s8, 1
    %p95 = por %p93, %p94
    %p96 = scmp.ne.s32.totalorder %s88, %s91
    %p97 = scmp.eq.s32.totalorder %s8, 0
    %p98 = por %p96, %p97
    %p99 = scmp.ne.s32.totalorder %s88, %s91
    %p100 = scmp.eq.s32.totalorder %s13, 1
    %p101 = por %p99, %p100
    %p102 = scmp.ne.s32.totalorder %s91, %s92
    %p103 = scmp.eq.s32.totalorder %s13, 0
    %p104 = por %p102, %p103
    %p105 = scmp.ne.s32.totalorder %s91, %s92
    %p106 = scmp.eq.s32.totalorder %s14, 1
    %p107 = por %p105, %p106
    %p109 = scmp.ne.s32.totalorder %s92, %s108
    %p110 = scmp.eq.s32.totalorder %s14, 0
    %p111 = por %p109, %p110
    %p112 = scmp.le.s32.totalorder 1, %s8
    %p113 = scmp.lt.s32.totalorder %s8, 3
    %p114 = pnand %p112, %p113
    %p115 = pneg %p114
    // Predicated region
    $region9: #{tpu_custom_call.1} parent=5 // pred_check
      _
    $region10: #{tpu_custom_call.1} parent=5 // pred_check_branch
      %117 = sbr.rel (%p114) target = $region12
    $region11: #{tpu_custom_call.1} parent=5 // pred_region
      %s118 = ssub.s32 %s8, 1
    $region12: #{tpu_custom_call.1} parent=5 // pred_fallthru
      _
    %p119 = scmp.lt.s32.totalorder %s8, 2
    // Predicated region
    $region13: #{tpu_custom_call.1} parent=5 // pred_check
      %p120 = pneg %p119
    $region14: #{tpu_custom_call.1} parent=5 // pred_check_branch
      %122 = sbr.rel (%p120) target = $region16
    $region15: #{tpu_custom_call.1} parent=5 // pred_region
      // Predicated region
      $region17: #{tpu_custom_call.1} parent=15 // pred_check
        %p123 = pneg %p42
      $region18: #{tpu_custom_call.1} parent=15 // pred_check_branch
        %125 = sbr.rel (%p123) target = $region20
      $region19: #{tpu_custom_call.1} parent=15 // pred_region
        %s126 = smul.u32 168, %s16
        %p127 = scmp.lt.s32.totalorder %s15, 0
        %s128 = scalar_select %p127, %s15, 0
        %p129 = scmp.lt.s32.totalorder %s126, 335
        %s130 = scalar_select %p129, %s126, 335
        %s131 = smul.addr %s128, 336
        %s132 = sadd.s32 %s130, %s131
        %s133 = smul.addr %s132, 8
        %s134 = scalar_lea.vmem %s0, %s133
        %s135 = smul.u32 168, %s16
      $region20: #{tpu_custom_call.1} parent=15 // pred_fallthru
        _
      // Predicated region
      $region21: #{tpu_custom_call.1} parent=15 // pred_check
        %p136 = pneg %p70
      $region22: #{tpu_custom_call.1} parent=15 // pred_check_branch
        %138 = sbr.rel (%p136) target = $region24
      $region23: #{tpu_custom_call.1} parent=15 // pred_region
        %s139 = smul.u32 168, %s16
        %p140 = scmp.lt.s32.totalorder %s15, 0
        %s141 = scalar_select %p140, %s15, 0
        %p142 = scmp.lt.s32.totalorder %s139, 335
        %s143 = scalar_select %p142, %s139, 335
        %s144 = smul.addr %s141, 336
        %s145 = sadd.s32 %s143, %s144
        %s146 = smul.addr %s145, 8
        %s147 = scalar_lea.vmem %s1, %s146
        %s148 = smul.u32 168, %s16
      $region24: #{tpu_custom_call.1} parent=15 // pred_fallthru
        _
    $region16: #{tpu_custom_call.1} parent=5 // pred_fallthru
      _
    %p149 = scmp.le.s32.totalorder 1, %s8
    %p150 = scmp.lt.s32.totalorder %s8, 3
    %p151 = pnand %p149, %p150
    %p152 = pneg %p151
    // Predicated region
    $region25: #{tpu_custom_call.1} parent=5 // pred_check
      _
    $region26: #{tpu_custom_call.1} parent=5 // pred_check_branch
      %154 = sbr.rel (%p151) target = $region28
    $region27: #{tpu_custom_call.1} parent=5 // pred_region
      %s155 = ssub.s32 %s8, 1
      %s156 = smul.u32 168, %s18
      %p157 = scmp.lt.s32.totalorder %s17, 0
      %s158 = scalar_select %p157, %s17, 0
      %p159 = scmp.lt.s32.totalorder %s156, 335
      %s160 = scalar_select %p159, %s156, 335
      %s161 = smul.addr %s158, 336
      %s162 = sadd.s32 %s160, %s161
      %s163 = smul.addr %s162, 8
      %s164 = scalar_lea.vmem %s0, %s163
      %p165 = pneg %p48
      %p166 = pneg %p45
      %s167 = smul.u32 168, %s18
      %p168 = scmp.lt.s32.totalorder %s17, 0
      %s169 = scalar_select %p168, %s17, 0
      %p170 = scmp.lt.s32.totalorder %s167, 335
      %s171 = scalar_select %p170, %s167, 335
      %s172 = smul.addr %s169, 336
      %s173 = sadd.s32 %s171, %s172
      %s174 = smul.addr %s173, 8
      %s175 = scalar_lea.vmem %s1, %s174
      %p176 = pneg %p76
      %p177 = pneg %p73
      %p178 = pneg %p104
      %p179 = pneg %p101
      %s180 = smul.u32 168, %s18
      %p181 = scmp.lt.s32.totalorder %s17, 0
      %s182 = scalar_select %p181, %s17, 0
      %p183 = scmp.lt.s32.totalorder %s180, 335
      %s184 = scalar_select %p183, %s180, 335
      %s185 = smul.addr %s182, 336
      %s186 = sadd.s32 %s184, %s185
      %s187 = smul.addr %s186, 8
      %s188 = scalar_lea.vmem %s2, %s187
      %s189 = smul.u32 168, %s18
      %p190 = scmp.lt.s32.totalorder %s17, 0
      %s191 = scalar_select %p190, %s17, 0
      %p192 = scmp.lt.s32.totalorder %s189, 335
      %s193 = scalar_select %p192, %s189, 335
      %s194 = smul.addr %s191, 336
      %s195 = sadd.s32 %s193, %s194
      %s196 = smul.addr %s195, 8
      %s197 = scalar_lea.vmem %s0, %s196
      %s198 = smul.u32 168, %s18
      %s199 = smul.u32 168, %s18
      %p200 = scmp.lt.s32.totalorder %s17, 0
      %s201 = scalar_select %p200, %s17, 0
      %p202 = scmp.lt.s32.totalorder %s199, 335
      %s203 = scalar_select %p202, %s199, 335
      %s204 = smul.addr %s201, 336
      %s205 = sadd.s32 %s203, %s204
      %s206 = smul.addr %s205, 8
      %s207 = scalar_lea.vmem %s1, %s206
      %s208 = smul.u32 168, %s18
      %s209 = smul.u32 168, %s18
      %p210 = scmp.lt.s32.totalorder %s17, 0
      %s211 = scalar_select %p210, %s17, 0
      %p212 = scmp.lt.s32.totalorder %s209, 335
      %s213 = scalar_select %p212, %s209, 335
      %s214 = smul.addr %s211, 336
      %s215 = sadd.s32 %s213, %s214
      %s216 = smul.addr %s215, 8
      %s217 = scalar_lea.vmem %s2, %s216
      %s218 = smul.u32 168, %s18
      %v219 = vld [vmem:[%s197] sm:$0xff]
      %v220 = vld [vmem:[%s197 + $0x8] sm:$0xff]
      %v221 = vld [vmem:[%s197 + $0x10] sm:$0xff]
      %v222 = vld [vmem:[%s197 + $0x18] sm:$0xff]
      %v223 = vld [vmem:[%s197 + $0x20] sm:$0xff]
      %v224 = vld [vmem:[%s197 + $0x28] sm:$0xff]
      %v225 = vld [vmem:[%s197 + $0x30] sm:$0xff]
      %v226 = vld [vmem:[%s197 + $0x38] sm:$0xff]
      %v227 = vld [vmem:[%s197 + $0x40] sm:$0xff]
      %v228 = vld [vmem:[%s197 + $0x48] sm:$0xff]
      %v229 = vld [vmem:[%s197 + $0x50] sm:$0xff]
      %v230 = vld [vmem:[%s197 + $0x58] sm:$0xff]
      %v231 = vld [vmem:[%s197 + $0x60] sm:$0xff]
      %v232 = vld [vmem:[%s197 + $0x68] sm:$0xff]
      %v233 = vld [vmem:[%s197 + $0x70] sm:$0xff]
      %v234 = vld [vmem:[%s197 + $0x78] sm:$0xff]
      %v235 = vld [vmem:[%s197 + $0x80] sm:$0xff]
      %v236 = vld [vmem:[%s197 + $0x88] sm:$0xff]
      %v237 = vld [vmem:[%s197 + $0x90] sm:$0xff]
      %v238 = vld [vmem:[%s197 + $0x98] sm:$0xff]
      %v239 = vld [vmem:[%s197 + $0xa0] sm:$0xff]
      %v240 = vld [vmem:[%s197 + $0xa8] sm:$0xff]
      %v241 = vld [vmem:[%s197 + $0xb0] sm:$0xff]
      %v242 = vld [vmem:[%s197 + $0xb8] sm:$0xff]
      %v243 = vld [vmem:[%s197 + $0xc0] sm:$0xff]
      %v244 = vld [vmem:[%s197 + $0xc8] sm:$0xff]
      %v245 = vld [vmem:[%s197 + $0xd0] sm:$0xff]
      %v246 = vld [vmem:[%s197 + $0xd8] sm:$0xff]
      %v247 = vld [vmem:[%s197 + $0xe0] sm:$0xff]
      %v248 = vld [vmem:[%s197 + $0xe8] sm:$0xff]
      %v249 = vld [vmem:[%s197 + $0xf0] sm:$0xff]
      %v250 = vld [vmem:[%s197 + $0xf8] sm:$0xff]
      %v251 = vld [vmem:[%s197 + $0x100] sm:$0xff]
      %v252 = vld [vmem:[%s197 + $0x108] sm:$0xff]
      %v253 = vld [vmem:[%s197 + $0x110] sm:$0xff]
      %v254 = vld [vmem:[%s197 + $0x118] sm:$0xff]
      %v255 = vld [vmem:[%s197 + $0x120] sm:$0xff]
      %v256 = vld [vmem:[%s197 + $0x128] sm:$0xff]
      %v257 = vld [vmem:[%s197 + $0x130] sm:$0xff]
      %v258 = vld [vmem:[%s197 + $0x138] sm:$0xff]
      %v259 = vld [vmem:[%s197 + $0x140] sm:$0xff]
      %v260 = vld [vmem:[%s197 + $0x148] sm:$0xff]
      %v261 = vld [vmem:[%s197 + $0x150] sm:$0xff]
      %v262 = vld [vmem:[%s197 + $0x158] sm:$0xff]
      %v263 = vld [vmem:[%s197 + $0x160] sm:$0xff]
      %v264 = vld [vmem:[%s197 + $0x168] sm:$0xff]
      %v265 = vld [vmem:[%s197 + $0x170] sm:$0xff]
      %v266 = vld [vmem:[%s197 + $0x178] sm:$0xff]
      %v267 = vld [vmem:[%s197 + $0x180] sm:$0xff]
      %v268 = vld [vmem:[%s197 + $0x188] sm:$0xff]
      %v269 = vld [vmem:[%s197 + $0x190] sm:$0xff]
      %v270 = vld [vmem:[%s197 + $0x198] sm:$0xff]
      %v271 = vld [vmem:[%s197 + $0x1a0] sm:$0xff]
      %v272 = vld [vmem:[%s197 + $0x1a8] sm:$0xff]
      %v273 = vld [vmem:[%s197 + $0x1b0] sm:$0xff]
      %v274 = vld [vmem:[%s197 + $0x1b8] sm:$0xff]
      %v275 = vld [vmem:[%s197 + $0x1c0] sm:$0xff]
      %v276 = vld [vmem:[%s197 + $0x1c8] sm:$0xff]
      %v277 = vld [vmem:[%s197 + $0x1d0] sm:$0xff]
      %v278 = vld [vmem:[%s197 + $0x1d8] sm:$0xff]
      %v279 = vld [vmem:[%s197 + $0x1e0] sm:$0xff]
      %v280 = vld [vmem:[%s197 + $0x1e8] sm:$0xff]
      %v281 = vld [vmem:[%s197 + $0x1f0] sm:$0xff]
      %v282 = vld [vmem:[%s197 + $0x1f8] sm:$0xff]
      %v283 = vld [vmem:[%s197 + $0x200] sm:$0xff]
      %v284 = vld [vmem:[%s197 + $0x208] sm:$0xff]
      %v285 = vld [vmem:[%s197 + $0x210] sm:$0xff]
      %v286 = vld [vmem:[%s197 + $0x218] sm:$0xff]
      %v287 = vld [vmem:[%s197 + $0x220] sm:$0xff]
      %v288 = vld [vmem:[%s197 + $0x228] sm:$0xff]
      %v289 = vld [vmem:[%s197 + $0x230] sm:$0xff]
      %v290 = vld [vmem:[%s197 + $0x238] sm:$0xff]
      %v291 = vld [vmem:[%s197 + $0x240] sm:$0xff]
      %v292 = vld [vmem:[%s197 + $0x248] sm:$0xff]
      %v293 = vld [vmem:[%s197 + $0x250] sm:$0xff]
      %v294 = vld [vmem:[%s197 + $0x258] sm:$0xff]
      %v295 = vld [vmem:[%s197 + $0x260] sm:$0xff]
      %v296 = vld [vmem:[%s197 + $0x268] sm:$0xff]
      %v297 = vld [vmem:[%s197 + $0x270] sm:$0xff]
      %v298 = vld [vmem:[%s197 + $0x278] sm:$0xff]
      %v299 = vld [vmem:[%s197 + $0x280] sm:$0xff]
      %v300 = vld [vmem:[%s197 + $0x288] sm:$0xff]
      %v301 = vld [vmem:[%s197 + $0x290] sm:$0xff]
      %v302 = vld [vmem:[%s197 + $0x298] sm:$0xff]
      %v303 = vld [vmem:[%s197 + $0x2a0] sm:$0xff]
      %v304 = vld [vmem:[%s197 + $0x2a8] sm:$0xff]
      %v305 = vld [vmem:[%s197 + $0x2b0] sm:$0xff]
      %v306 = vld [vmem:[%s197 + $0x2b8] sm:$0xff]
      %v307 = vld [vmem:[%s197 + $0x2c0] sm:$0xff]
      %v308 = vld [vmem:[%s197 + $0x2c8] sm:$0xff]
      %v309 = vld [vmem:[%s197 + $0x2d0] sm:$0xff]
      %v310 = vld [vmem:[%s197 + $0x2d8] sm:$0xff]
      %v311 = vld [vmem:[%s197 + $0x2e0] sm:$0xff]
      %v312 = vld [vmem:[%s197 + $0x2e8] sm:$0xff]
      %v313 = vld [vmem:[%s197 + $0x2f0] sm:$0xff]
      %v314 = vld [vmem:[%s197 + $0x2f8] sm:$0xff]
      %v315 = vld [vmem:[%s197 + $0x300] sm:$0xff]
      %v316 = vld [vmem:[%s197 + $0x308] sm:$0xff]
      %v317 = vld [vmem:[%s197 + $0x310] sm:$0xff]
      %v318 = vld [vmem:[%s197 + $0x318] sm:$0xff]
      %v319 = vld [vmem:[%s197 + $0x320] sm:$0xff]
      %v320 = vld [vmem:[%s197 + $0x328] sm:$0xff]
      %v321 = vld [vmem:[%s197 + $0x330] sm:$0xff]
      %v322 = vld [vmem:[%s197 + $0x338] sm:$0xff]
      %v323 = vld [vmem:[%s197 + $0x340] sm:$0xff]
      %v324 = vld [vmem:[%s197 + $0x348] sm:$0xff]
      %v325 = vld [vmem:[%s197 + $0x350] sm:$0xff]
      %v326 = vld [vmem:[%s197 + $0x358] sm:$0xff]
      %v327 = vld [vmem:[%s197 + $0x360] sm:$0xff]
      %v328 = vld [vmem:[%s197 + $0x368] sm:$0xff]
      %v329 = vld [vmem:[%s197 + $0x370] sm:$0xff]
      %v330 = vld [vmem:[%s197 + $0x378] sm:$0xff]
      %v331 = vld [vmem:[%s197 + $0x380] sm:$0xff]
      %v332 = vld [vmem:[%s197 + $0x388] sm:$0xff]
      %v333 = vld [vmem:[%s197 + $0x390] sm:$0xff]
      %v334 = vld [vmem:[%s197 + $0x398] sm:$0xff]
      %v335 = vld [vmem:[%s197 + $0x3a0] sm:$0xff]
      %v336 = vld [vmem:[%s197 + $0x3a8] sm:$0xff]
      %v337 = vld [vmem:[%s197 + $0x3b0] sm:$0xff]
      %v338 = vld [vmem:[%s197 + $0x3b8] sm:$0xff]
      %v339 = vld [vmem:[%s197 + $0x3c0] sm:$0xff]
      %v340 = vld [vmem:[%s197 + $0x3c8] sm:$0xff]
      %v341 = vld [vmem:[%s197 + $0x3d0] sm:$0xff]
      %v342 = vld [vmem:[%s197 + $0x3d8] sm:$0xff]
      %v343 = vld [vmem:[%s197 + $0x3e0] sm:$0xff]
      %v344 = vld [vmem:[%s197 + $0x3e8] sm:$0xff]
      %v345 = vld [vmem:[%s197 + $0x3f0] sm:$0xff]
      %v346 = vld [vmem:[%s197 + $0x3f8] sm:$0xff]
      %v347 = vld [vmem:[%s197 + $0x400] sm:$0xff]
      %v348 = vld [vmem:[%s197 + $0x408] sm:$0xff]
      %v349 = vld [vmem:[%s197 + $0x410] sm:$0xff]
      %v350 = vld [vmem:[%s197 + $0x418] sm:$0xff]
      %v351 = vld [vmem:[%s197 + $0x420] sm:$0xff]
      %v352 = vld [vmem:[%s197 + $0x428] sm:$0xff]
      %v353 = vld [vmem:[%s197 + $0x430] sm:$0xff]
      %v354 = vld [vmem:[%s197 + $0x438] sm:$0xff]
      %v355 = vld [vmem:[%s197 + $0x440] sm:$0xff]
      %v356 = vld [vmem:[%s197 + $0x448] sm:$0xff]
      %v357 = vld [vmem:[%s197 + $0x450] sm:$0xff]
      %v358 = vld [vmem:[%s197 + $0x458] sm:$0xff]
      %v359 = vld [vmem:[%s197 + $0x460] sm:$0xff]
      %v360 = vld [vmem:[%s197 + $0x468] sm:$0xff]
      %v361 = vld [vmem:[%s197 + $0x470] sm:$0xff]
      %v362 = vld [vmem:[%s197 + $0x478] sm:$0xff]
      %v363 = vld [vmem:[%s197 + $0x480] sm:$0xff]
      %v364 = vld [vmem:[%s197 + $0x488] sm:$0xff]
      %v365 = vld [vmem:[%s197 + $0x490] sm:$0xff]
      %v366 = vld [vmem:[%s197 + $0x498] sm:$0xff]
      %v367 = vld [vmem:[%s197 + $0x4a0] sm:$0xff]
      %v368 = vld [vmem:[%s197 + $0x4a8] sm:$0xff]
      %v369 = vld [vmem:[%s197 + $0x4b0] sm:$0xff]
      %v370 = vld [vmem:[%s197 + $0x4b8] sm:$0xff]
      %v371 = vld [vmem:[%s197 + $0x4c0] sm:$0xff]
      %v372 = vld [vmem:[%s197 + $0x4c8] sm:$0xff]
      %v373 = vld [vmem:[%s197 + $0x4d0] sm:$0xff]
      %v374 = vld [vmem:[%s197 + $0x4d8] sm:$0xff]
      %v375 = vld [vmem:[%s197 + $0x4e0] sm:$0xff]
      %v376 = vld [vmem:[%s197 + $0x4e8] sm:$0xff]
      %v377 = vld [vmem:[%s197 + $0x4f0] sm:$0xff]
      %v378 = vld [vmem:[%s197 + $0x4f8] sm:$0xff]
      %v379 = vld [vmem:[%s197 + $0x500] sm:$0xff]
      %v380 = vld [vmem:[%s197 + $0x508] sm:$0xff]
      %v381 = vld [vmem:[%s197 + $0x510] sm:$0xff]
      %v382 = vld [vmem:[%s197 + $0x518] sm:$0xff]
      %v383 = vld [vmem:[%s197 + $0x520] sm:$0xff]
      %v384 = vld [vmem:[%s197 + $0x528] sm:$0xff]
      %v385 = vld [vmem:[%s197 + $0x530] sm:$0xff]
      %v386 = vld [vmem:[%s197 + $0x538] sm:$0xff]
      %v387 = vld [vmem:[%s207] sm:$0xff]
      %v388 = vld [vmem:[%s207 + $0x8] sm:$0xff]
      %v389 = vld [vmem:[%s207 + $0x10] sm:$0xff]
      %v390 = vld [vmem:[%s207 + $0x18] sm:$0xff]
      %v391 = vld [vmem:[%s207 + $0x20] sm:$0xff]
      %v392 = vld [vmem:[%s207 + $0x28] sm:$0xff]
      %v393 = vld [vmem:[%s207 + $0x30] sm:$0xff]
      %v394 = vld [vmem:[%s207 + $0x38] sm:$0xff]
      %v395 = vld [vmem:[%s207 + $0x40] sm:$0xff]
      %v396 = vld [vmem:[%s207 + $0x48] sm:$0xff]
      %v397 = vld [vmem:[%s207 + $0x50] sm:$0xff]
      %v398 = vld [vmem:[%s207 + $0x58] sm:$0xff]
      %v399 = vld [vmem:[%s207 + $0x60] sm:$0xff]
      %v400 = vld [vmem:[%s207 + $0x68] sm:$0xff]
      %v401 = vld [vmem:[%s207 + $0x70] sm:$0xff]
      %v402 = vld [vmem:[%s207 + $0x78] sm:$0xff]
      %v403 = vld [vmem:[%s207 + $0x80] sm:$0xff]
      %v404 = vld [vmem:[%s207 + $0x88] sm:$0xff]
      %v405 = vld [vmem:[%s207 + $0x90] sm:$0xff]
      %v406 = vld [vmem:[%s207 + $0x98] sm:$0xff]
      %v407 = vld [vmem:[%s207 + $0xa0] sm:$0xff]
      %v408 = vld [vmem:[%s207 + $0xa8] sm:$0xff]
      %v409 = vld [vmem:[%s207 + $0xb0] sm:$0xff]
      %v410 = vld [vmem:[%s207 + $0xb8] sm:$0xff]
      %v411 = vld [vmem:[%s207 + $0xc0] sm:$0xff]
      %v412 = vld [vmem:[%s207 + $0xc8] sm:$0xff]
      %v413 = vld [vmem:[%s207 + $0xd0] sm:$0xff]
      %v414 = vld [vmem:[%s207 + $0xd8] sm:$0xff]
      %v415 = vld [vmem:[%s207 + $0xe0] sm:$0xff]
      %v416 = vld [vmem:[%s207 + $0xe8] sm:$0xff]
      %v417 = vld [vmem:[%s207 + $0xf0] sm:$0xff]
      %v418 = vld [vmem:[%s207 + $0xf8] sm:$0xff]
      %v419 = vld [vmem:[%s207 + $0x100] sm:$0xff]
      %v420 = vld [vmem:[%s207 + $0x108] sm:$0xff]
      %v421 = vld [vmem:[%s207 + $0x110] sm:$0xff]
      %v422 = vld [vmem:[%s207 + $0x118] sm:$0xff]
      %v423 = vld [vmem:[%s207 + $0x120] sm:$0xff]
      %v424 = vld [vmem:[%s207 + $0x128] sm:$0xff]
      %v425 = vld [vmem:[%s207 + $0x130] sm:$0xff]
      %v426 = vld [vmem:[%s207 + $0x138] sm:$0xff]
      %v427 = vld [vmem:[%s207 + $0x140] sm:$0xff]
      %v428 = vld [vmem:[%s207 + $0x148] sm:$0xff]
      %v429 = vld [vmem:[%s207 + $0x150] sm:$0xff]
      %v430 = vld [vmem:[%s207 + $0x158] sm:$0xff]
      %v431 = vld [vmem:[%s207 + $0x160] sm:$0xff]
      %v432 = vld [vmem:[%s207 + $0x168] sm:$0xff]
      %v433 = vld [vmem:[%s207 + $0x170] sm:$0xff]
      %v434 = vld [vmem:[%s207 + $0x178] sm:$0xff]
      %v435 = vld [vmem:[%s207 + $0x180] sm:$0xff]
      %v436 = vld [vmem:[%s207 + $0x188] sm:$0xff]
      %v437 = vld [vmem:[%s207 + $0x190] sm:$0xff]
      %v438 = vld [vmem:[%s207 + $0x198] sm:$0xff]
      %v439 = vld [vmem:[%s207 + $0x1a0] sm:$0xff]
      %v440 = vld [vmem:[%s207 + $0x1a8] sm:$0xff]
      %v441 = vld [vmem:[%s207 + $0x1b0] sm:$0xff]
      %v442 = vld [vmem:[%s207 + $0x1b8] sm:$0xff]
      %v443 = vld [vmem:[%s207 + $0x1c0] sm:$0xff]
      %v444 = vld [vmem:[%s207 + $0x1c8] sm:$0xff]
      %v445 = vld [vmem:[%s207 + $0x1d0] sm:$0xff]
      %v446 = vld [vmem:[%s207 + $0x1d8] sm:$0xff]
      %v447 = vld [vmem:[%s207 + $0x1e0] sm:$0xff]
      %v448 = vld [vmem:[%s207 + $0x1e8] sm:$0xff]
      %v449 = vld [vmem:[%s207 + $0x1f0] sm:$0xff]
      %v450 = vld [vmem:[%s207 + $0x1f8] sm:$0xff]
      %v451 = vld [vmem:[%s207 + $0x200] sm:$0xff]
      %v452 = vld [vmem:[%s207 + $0x208] sm:$0xff]
      %v453 = vld [vmem:[%s207 + $0x210] sm:$0xff]
      %v454 = vld [vmem:[%s207 + $0x218] sm:$0xff]
      %v455 = vld [vmem:[%s207 + $0x220] sm:$0xff]
      %v456 = vld [vmem:[%s207 + $0x228] sm:$0xff]
      %v457 = vld [vmem:[%s207 + $0x230] sm:$0xff]
      %v458 = vld [vmem:[%s207 + $0x238] sm:$0xff]
      %v459 = vld [vmem:[%s207 + $0x240] sm:$0xff]
      %v460 = vld [vmem:[%s207 + $0x248] sm:$0xff]
      %v461 = vld [vmem:[%s207 + $0x250] sm:$0xff]
      %v462 = vld [vmem:[%s207 + $0x258] sm:$0xff]
      %v463 = vld [vmem:[%s207 + $0x260] sm:$0xff]
      %v464 = vld [vmem:[%s207 + $0x268] sm:$0xff]
      %v465 = vld [vmem:[%s207 + $0x270] sm:$0xff]
      %v466 = vld [vmem:[%s207 + $0x278] sm:$0xff]
      %v467 = vld [vmem:[%s207 + $0x280] sm:$0xff]
      %v468 = vld [vmem:[%s207 + $0x288] sm:$0xff]
      %v469 = vld [vmem:[%s207 + $0x290] sm:$0xff]
      %v470 = vld [vmem:[%s207 + $0x298] sm:$0xff]
      %v471 = vld [vmem:[%s207 + $0x2a0] sm:$0xff]
      %v472 = vld [vmem:[%s207 + $0x2a8] sm:$0xff]
      %v473 = vld [vmem:[%s207 + $0x2b0] sm:$0xff]
      %v474 = vld [vmem:[%s207 + $0x2b8] sm:$0xff]
      %v475 = vld [vmem:[%s207 + $0x2c0] sm:$0xff]
      %v476 = vld [vmem:[%s207 + $0x2c8] sm:$0xff]
      %v477 = vld [vmem:[%s207 + $0x2d0] sm:$0xff]
      %v478 = vld [vmem:[%s207 + $0x2d8] sm:$0xff]
      %v479 = vld [vmem:[%s207 + $0x2e0] sm:$0xff]
      %v480 = vld [vmem:[%s207 + $0x2e8] sm:$0xff]
      %v481 = vld [vmem:[%s207 + $0x2f0] sm:$0xff]
      %v482 = vld [vmem:[%s207 + $0x2f8] sm:$0xff]
      %v483 = vld [vmem:[%s207 + $0x300] sm:$0xff]
      %v484 = vld [vmem:[%s207 + $0x308] sm:$0xff]
      %v485 = vld [vmem:[%s207 + $0x310] sm:$0xff]
      %v486 = vld [vmem:[%s207 + $0x318] sm:$0xff]
      %v487 = vld [vmem:[%s207 + $0x320] sm:$0xff]
      %v488 = vld [vmem:[%s207 + $0x328] sm:$0xff]
      %v489 = vld [vmem:[%s207 + $0x330] sm:$0xff]
      %v490 = vld [vmem:[%s207 + $0x338] sm:$0xff]
      %v491 = vld [vmem:[%s207 + $0x340] sm:$0xff]
      %v492 = vld [vmem:[%s207 + $0x348] sm:$0xff]
      %v493 = vld [vmem:[%s207 + $0x350] sm:$0xff]
      %v494 = vld [vmem:[%s207 + $0x358] sm:$0xff]
      %v495 = vld [vmem:[%s207 + $0x360] sm:$0xff]
      %v496 = vld [vmem:[%s207 + $0x368] sm:$0xff]
      %v497 = vld [vmem:[%s207 + $0x370] sm:$0xff]
      %v498 = vld [vmem:[%s207 + $0x378] sm:$0xff]
      %v499 = vld [vmem:[%s207 + $0x380] sm:$0xff]
      %v500 = vld [vmem:[%s207 + $0x388] sm:$0xff]
      %v501 = vld [vmem:[%s207 + $0x390] sm:$0xff]
      %v502 = vld [vmem:[%s207 + $0x398] sm:$0xff]
      %v503 = vld [vmem:[%s207 + $0x3a0] sm:$0xff]
      %v504 = vld [vmem:[%s207 + $0x3a8] sm:$0xff]
      %v505 = vld [vmem:[%s207 + $0x3b0] sm:$0xff]
      %v506 = vld [vmem:[%s207 + $0x3b8] sm:$0xff]
      %v507 = vld [vmem:[%s207 + $0x3c0] sm:$0xff]
      %v508 = vld [vmem:[%s207 + $0x3c8] sm:$0xff]
      %v509 = vld [vmem:[%s207 + $0x3d0] sm:$0xff]
      %v510 = vld [vmem:[%s207 + $0x3d8] sm:$0xff]
      %v511 = vld [vmem:[%s207 + $0x3e0] sm:$0xff]
      %v512 = vld [vmem:[%s207 + $0x3e8] sm:$0xff]
      %v513 = vld [vmem:[%s207 + $0x3f0] sm:$0xff]
      %v514 = vld [vmem:[%s207 + $0x3f8] sm:$0xff]
      %v515 = vld [vmem:[%s207 + $0x400] sm:$0xff]
      %v516 = vld [vmem:[%s207 + $0x408] sm:$0xff]
      %v517 = vld [vmem:[%s207 + $0x410] sm:$0xff]
      %v518 = vld [vmem:[%s207 + $0x418] sm:$0xff]
      %v519 = vld [vmem:[%s207 + $0x420] sm:$0xff]
      %v520 = vld [vmem:[%s207 + $0x428] sm:$0xff]
      %v521 = vld [vmem:[%s207 + $0x430] sm:$0xff]
      %v522 = vld [vmem:[%s207 + $0x438] sm:$0xff]
      %v523 = vld [vmem:[%s207 + $0x440] sm:$0xff]
      %v524 = vld [vmem:[%s207 + $0x448] sm:$0xff]
      %v525 = vld [vmem:[%s207 + $0x450] sm:$0xff]
      %v526 = vld [vmem:[%s207 + $0x458] sm:$0xff]
      %v527 = vld [vmem:[%s207 + $0x460] sm:$0xff]
      %v528 = vld [vmem:[%s207 + $0x468] sm:$0xff]
      %v529 = vld [vmem:[%s207 + $0x470] sm:$0xff]
      %v530 = vld [vmem:[%s207 + $0x478] sm:$0xff]
      %v531 = vld [vmem:[%s207 + $0x480] sm:$0xff]
      %v532 = vld [vmem:[%s207 + $0x488] sm:$0xff]
      %v533 = vld [vmem:[%s207 + $0x490] sm:$0xff]
      %v534 = vld [vmem:[%s207 + $0x498] sm:$0xff]
      %v535 = vld [vmem:[%s207 + $0x4a0] sm:$0xff]
      %v536 = vld [vmem:[%s207 + $0x4a8] sm:$0xff]
      %v537 = vld [vmem:[%s207 + $0x4b0] sm:$0xff]
      %v538 = vld [vmem:[%s207 + $0x4b8] sm:$0xff]
      %v539 = vld [vmem:[%s207 + $0x4c0] sm:$0xff]
      %v540 = vld [vmem:[%s207 + $0x4c8] sm:$0xff]
      %v541 = vld [vmem:[%s207 + $0x4d0] sm:$0xff]
      %v542 = vld [vmem:[%s207 + $0x4d8] sm:$0xff]
      %v543 = vld [vmem:[%s207 + $0x4e0] sm:$0xff]
      %v544 = vld [vmem:[%s207 + $0x4e8] sm:$0xff]
      %v545 = vld [vmem:[%s207 + $0x4f0] sm:$0xff]
      %v546 = vld [vmem:[%s207 + $0x4f8] sm:$0xff]
      %v547 = vld [vmem:[%s207 + $0x500] sm:$0xff]
      %v548 = vld [vmem:[%s207 + $0x508] sm:$0xff]
      %v549 = vld [vmem:[%s207 + $0x510] sm:$0xff]
      %v550 = vld [vmem:[%s207 + $0x518] sm:$0xff]
      %v551 = vld [vmem:[%s207 + $0x520] sm:$0xff]
      %v552 = vld [vmem:[%s207 + $0x528] sm:$0xff]
      %v553 = vld [vmem:[%s207 + $0x530] sm:$0xff]
      %v554 = vld [vmem:[%s207 + $0x538] sm:$0xff]
      %556 = vset.pattern.permute.xlu0 0
      %557 = vperm.xlu0 %556, %v387
      %v558 = vpop.permute.xlu0 %557
      %561 = vset.pattern.permute.xlu0 0
      %562 = vperm.xlu0 %561, %v388
      %v563 = vpop.permute.xlu0 %562
      %566 = vset.pattern.permute.xlu0 0
      %567 = vperm.xlu0 %566, %v389
      %v568 = vpop.permute.xlu0 %567
      %571 = vset.pattern.permute.xlu0 0
      %572 = vperm.xlu0 %571, %v390
      %v573 = vpop.permute.xlu0 %572
      %576 = vset.pattern.permute.xlu0 0
      %577 = vperm.xlu0 %576, %v391
      %v578 = vpop.permute.xlu0 %577
      %581 = vset.pattern.permute.xlu0 0
      %582 = vperm.xlu0 %581, %v392
      %v583 = vpop.permute.xlu0 %582
      %586 = vset.pattern.permute.xlu0 0
      %587 = vperm.xlu0 %586, %v393
      %v588 = vpop.permute.xlu0 %587
      %591 = vset.pattern.permute.xlu0 0
      %592 = vperm.xlu0 %591, %v394
      %v593 = vpop.permute.xlu0 %592
      %596 = vset.pattern.permute.xlu0 0
      %597 = vperm.xlu0 %596, %v395
      %v598 = vpop.permute.xlu0 %597
      %601 = vset.pattern.permute.xlu0 0
      %602 = vperm.xlu0 %601, %v396
      %v603 = vpop.permute.xlu0 %602
      %606 = vset.pattern.permute.xlu0 0
      %607 = vperm.xlu0 %606, %v397
      %v608 = vpop.permute.xlu0 %607
      %611 = vset.pattern.permute.xlu0 0
      %612 = vperm.xlu0 %611, %v398
      %v613 = vpop.permute.xlu0 %612
      %616 = vset.pattern.permute.xlu0 0
      %617 = vperm.xlu0 %616, %v399
      %v618 = vpop.permute.xlu0 %617
      %621 = vset.pattern.permute.xlu0 0
      %622 = vperm.xlu0 %621, %v400
      %v623 = vpop.permute.xlu0 %622
      %626 = vset.pattern.permute.xlu0 0
      %627 = vperm.xlu0 %626, %v401
      %v628 = vpop.permute.xlu0 %627
      %631 = vset.pattern.permute.xlu0 0
      %632 = vperm.xlu0 %631, %v402
      %v633 = vpop.permute.xlu0 %632
      %636 = vset.pattern.permute.xlu0 0
      %637 = vperm.xlu0 %636, %v403
      %v638 = vpop.permute.xlu0 %637
      %641 = vset.pattern.permute.xlu0 0
      %642 = vperm.xlu0 %641, %v404
      %v643 = vpop.permute.xlu0 %642
      %646 = vset.pattern.permute.xlu0 0
      %647 = vperm.xlu0 %646, %v405
      %v648 = vpop.permute.xlu0 %647
      %651 = vset.pattern.permute.xlu0 0
      %652 = vperm.xlu0 %651, %v406
      %v653 = vpop.permute.xlu0 %652
      %656 = vset.pattern.permute.xlu0 0
      %657 = vperm.xlu0 %656, %v407
      %v658 = vpop.permute.xlu0 %657
      %661 = vset.pattern.permute.xlu0 0
      %662 = vperm.xlu0 %661, %v408
      %v663 = vpop.permute.xlu0 %662
      %666 = vset.pattern.permute.xlu0 0
      %667 = vperm.xlu0 %666, %v409
      %v668 = vpop.permute.xlu0 %667
      %671 = vset.pattern.permute.xlu0 0
      %672 = vperm.xlu0 %671, %v410
      %v673 = vpop.permute.xlu0 %672
      %676 = vset.pattern.permute.xlu0 0
      %677 = vperm.xlu0 %676, %v411
      %v678 = vpop.permute.xlu0 %677
      %681 = vset.pattern.permute.xlu0 0
      %682 = vperm.xlu0 %681, %v412
      %v683 = vpop.permute.xlu0 %682
      %686 = vset.pattern.permute.xlu0 0
      %687 = vperm.xlu0 %686, %v413
      %v688 = vpop.permute.xlu0 %687
      %691 = vset.pattern.permute.xlu0 0
      %692 = vperm.xlu0 %691, %v414
      %v693 = vpop.permute.xlu0 %692
      %696 = vset.pattern.permute.xlu0 0
      %697 = vperm.xlu0 %696, %v415
      %v698 = vpop.permute.xlu0 %697
      %701 = vset.pattern.permute.xlu0 0
      %702 = vperm.xlu0 %701, %v416
      %v703 = vpop.permute.xlu0 %702
      %706 = vset.pattern.permute.xlu0 0
      %707 = vperm.xlu0 %706, %v417
      %v708 = vpop.permute.xlu0 %707
      %711 = vset.pattern.permute.xlu0 0
      %712 = vperm.xlu0 %711, %v418
      %v713 = vpop.permute.xlu0 %712
      %716 = vset.pattern.permute.xlu0 0
      %717 = vperm.xlu0 %716, %v419
      %v718 = vpop.permute.xlu0 %717
      %721 = vset.pattern.permute.xlu0 0
      %722 = vperm.xlu0 %721, %v420
      %v723 = vpop.permute.xlu0 %722
      %726 = vset.pattern.permute.xlu0 0
      %727 = vperm.xlu0 %726, %v421
      %v728 = vpop.permute.xlu0 %727
      %731 = vset.pattern.permute.xlu0 0
      %732 = vperm.xlu0 %731, %v422
      %v733 = vpop.permute.xlu0 %732
      %736 = vset.pattern.permute.xlu0 0
      %737 = vperm.xlu0 %736, %v423
      %v738 = vpop.permute.xlu0 %737
      %741 = vset.pattern.permute.xlu0 0
      %742 = vperm.xlu0 %741, %v424
      %v743 = vpop.permute.xlu0 %742
      %746 = vset.pattern.permute.xlu0 0
      %747 = vperm.xlu0 %746, %v425
      %v748 = vpop.permute.xlu0 %747
      %751 = vset.pattern.permute.xlu0 0
      %752 = vperm.xlu0 %751, %v426
      %v753 = vpop.permute.xlu0 %752
      %756 = vset.pattern.permute.xlu0 0
      %757 = vperm.xlu0 %756, %v427
      %v758 = vpop.permute.xlu0 %757
      %761 = vset.pattern.permute.xlu0 0
      %762 = vperm.xlu0 %761, %v428
      %v763 = vpop.permute.xlu0 %762
      %766 = vset.pattern.permute.xlu0 0
      %767 = vperm.xlu0 %766, %v429
      %v768 = vpop.permute.xlu0 %767
      %771 = vset.pattern.permute.xlu0 0
      %772 = vperm.xlu0 %771, %v430
      %v773 = vpop.permute.xlu0 %772
      %776 = vset.pattern.permute.xlu0 0
      %777 = vperm.xlu0 %776, %v431
      %v778 = vpop.permute.xlu0 %777
      %781 = vset.pattern.permute.xlu0 0
      %782 = vperm.xlu0 %781, %v432
      %v783 = vpop.permute.xlu0 %782
      %786 = vset.pattern.permute.xlu0 0
      %787 = vperm.xlu0 %786, %v433
      %v788 = vpop.permute.xlu0 %787
      %791 = vset.pattern.permute.xlu0 0
      %792 = vperm.xlu0 %791, %v434
      %v793 = vpop.permute.xlu0 %792
      %796 = vset.pattern.permute.xlu0 0
      %797 = vperm.xlu0 %796, %v435
      %v798 = vpop.permute.xlu0 %797
      %801 = vset.pattern.permute.xlu0 0
      %802 = vperm.xlu0 %801, %v436
      %v803 = vpop.permute.xlu0 %802
      %806 = vset.pattern.permute.xlu0 0
      %807 = vperm.xlu0 %806, %v437
      %v808 = vpop.permute.xlu0 %807
      %811 = vset.pattern.permute.xlu0 0
      %812 = vperm.xlu0 %811, %v438
      %v813 = vpop.permute.xlu0 %812
      %816 = vset.pattern.permute.xlu0 0
      %817 = vperm.xlu0 %816, %v439
      %v818 = vpop.permute.xlu0 %817
      %821 = vset.pattern.permute.xlu0 0
      %822 = vperm.xlu0 %821, %v440
      %v823 = vpop.permute.xlu0 %822
      %826 = vset.pattern.permute.xlu0 0
      %827 = vperm.xlu0 %826, %v441
      %v828 = vpop.permute.xlu0 %827
      %831 = vset.pattern.permute.xlu0 0
      %832 = vperm.xlu0 %831, %v442
      %v833 = vpop.permute.xlu0 %832
      %836 = vset.pattern.permute.xlu0 0
      %837 = vperm.xlu0 %836, %v443
      %v838 = vpop.permute.xlu0 %837
      %841 = vset.pattern.permute.xlu0 0
      %842 = vperm.xlu0 %841, %v444
      %v843 = vpop.permute.xlu0 %842
      %846 = vset.pattern.permute.xlu0 0
      %847 = vperm.xlu0 %846, %v445
      %v848 = vpop.permute.xlu0 %847
      %851 = vset.pattern.permute.xlu0 0
      %852 = vperm.xlu0 %851, %v446
      %v853 = vpop.permute.xlu0 %852
      %856 = vset.pattern.permute.xlu0 0
      %857 = vperm.xlu0 %856, %v447
      %v858 = vpop.permute.xlu0 %857
      %861 = vset.pattern.permute.xlu0 0
      %862 = vperm.xlu0 %861, %v448
      %v863 = vpop.permute.xlu0 %862
      %866 = vset.pattern.permute.xlu0 0
      %867 = vperm.xlu0 %866, %v449
      %v868 = vpop.permute.xlu0 %867
      %871 = vset.pattern.permute.xlu0 0
      %872 = vperm.xlu0 %871, %v450
      %v873 = vpop.permute.xlu0 %872
      %876 = vset.pattern.permute.xlu0 0
      %877 = vperm.xlu0 %876, %v451
      %v878 = vpop.permute.xlu0 %877
      %881 = vset.pattern.permute.xlu0 0
      %882 = vperm.xlu0 %881, %v452
      %v883 = vpop.permute.xlu0 %882
      %886 = vset.pattern.permute.xlu0 0
      %887 = vperm.xlu0 %886, %v453
      %v888 = vpop.permute.xlu0 %887
      %891 = vset.pattern.permute.xlu0 0
      %892 = vperm.xlu0 %891, %v454
      %v893 = vpop.permute.xlu0 %892
      %896 = vset.pattern.permute.xlu0 0
      %897 = vperm.xlu0 %896, %v455
      %v898 = vpop.permute.xlu0 %897
      %901 = vset.pattern.permute.xlu0 0
      %902 = vperm.xlu0 %901, %v456
      %v903 = vpop.permute.xlu0 %902
      %906 = vset.pattern.permute.xlu0 0
      %907 = vperm.xlu0 %906, %v457
      %v908 = vpop.permute.xlu0 %907
      %911 = vset.pattern.permute.xlu0 0
      %912 = vperm.xlu0 %911, %v458
      %v913 = vpop.permute.xlu0 %912
      %916 = vset.pattern.permute.xlu0 0
      %917 = vperm.xlu0 %916, %v459
      %v918 = vpop.permute.xlu0 %917
      %921 = vset.pattern.permute.xlu0 0
      %922 = vperm.xlu0 %921, %v460
      %v923 = vpop.permute.xlu0 %922
      %926 = vset.pattern.permute.xlu0 0
      %927 = vperm.xlu0 %926, %v461
      %v928 = vpop.permute.xlu0 %927
      %931 = vset.pattern.permute.xlu0 0
      %932 = vperm.xlu0 %931, %v462
      %v933 = vpop.permute.xlu0 %932
      %936 = vset.pattern.permute.xlu0 0
      %937 = vperm.xlu0 %936, %v463
      %v938 = vpop.permute.xlu0 %937
      %941 = vset.pattern.permute.xlu0 0
      %942 = vperm.xlu0 %941, %v464
      %v943 = vpop.permute.xlu0 %942
      %946 = vset.pattern.permute.xlu0 0
      %947 = vperm.xlu0 %946, %v465
      %v948 = vpop.permute.xlu0 %947
      %951 = vset.pattern.permute.xlu0 0
      %952 = vperm.xlu0 %951, %v466
      %v953 = vpop.permute.xlu0 %952
      %956 = vset.pattern.permute.xlu0 0
      %957 = vperm.xlu0 %956, %v467
      %v958 = vpop.permute.xlu0 %957
      %961 = vset.pattern.permute.xlu0 0
      %962 = vperm.xlu0 %961, %v468
      %v963 = vpop.permute.xlu0 %962
      %966 = vset.pattern.permute.xlu0 0
      %967 = vperm.xlu0 %966, %v469
      %v968 = vpop.permute.xlu0 %967
      %971 = vset.pattern.permute.xlu0 0
      %972 = vperm.xlu0 %971, %v470
      %v973 = vpop.permute.xlu0 %972
      %976 = vset.pattern.permute.xlu0 0
      %977 = vperm.xlu0 %976, %v471
      %v978 = vpop.permute.xlu0 %977
      %981 = vset.pattern.permute.xlu0 0
      %982 = vperm.xlu0 %981, %v472
      %v983 = vpop.permute.xlu0 %982
      %986 = vset.pattern.permute.xlu0 0
      %987 = vperm.xlu0 %986, %v473
      %v988 = vpop.permute.xlu0 %987
      %991 = vset.pattern.permute.xlu0 0
      %992 = vperm.xlu0 %991, %v474
      %v993 = vpop.permute.xlu0 %992
      %996 = vset.pattern.permute.xlu0 0
      %997 = vperm.xlu0 %996, %v475
      %v998 = vpop.permute.xlu0 %997
      %1001 = vset.pattern.permute.xlu0 0
      %1002 = vperm.xlu0 %1001, %v476
      %v1003 = vpop.permute.xlu0 %1002
      %1006 = vset.pattern.permute.xlu0 0
      %1007 = vperm.xlu0 %1006, %v477
      %v1008 = vpop.permute.xlu0 %1007
      %1011 = vset.pattern.permute.xlu0 0
      %1012 = vperm.xlu0 %1011, %v478
      %v1013 = vpop.permute.xlu0 %1012
      %1016 = vset.pattern.permute.xlu0 0
      %1017 = vperm.xlu0 %1016, %v479
      %v1018 = vpop.permute.xlu0 %1017
      %1021 = vset.pattern.permute.xlu0 0
      %1022 = vperm.xlu0 %1021, %v480
      %v1023 = vpop.permute.xlu0 %1022
      %1026 = vset.pattern.permute.xlu0 0
      %1027 = vperm.xlu0 %1026, %v481
      %v1028 = vpop.permute.xlu0 %1027
      %1031 = vset.pattern.permute.xlu0 0
      %1032 = vperm.xlu0 %1031, %v482
      %v1033 = vpop.permute.xlu0 %1032
      %1036 = vset.pattern.permute.xlu0 0
      %1037 = vperm.xlu0 %1036, %v483
      %v1038 = vpop.permute.xlu0 %1037
      %1041 = vset.pattern.permute.xlu0 0
      %1042 = vperm.xlu0 %1041, %v484
      %v1043 = vpop.permute.xlu0 %1042
      %1046 = vset.pattern.permute.xlu0 0
      %1047 = vperm.xlu0 %1046, %v485
      %v1048 = vpop.permute.xlu0 %1047
      %1051 = vset.pattern.permute.xlu0 0
      %1052 = vperm.xlu0 %1051, %v486
      %v1053 = vpop.permute.xlu0 %1052
      %1056 = vset.pattern.permute.xlu0 0
      %1057 = vperm.xlu0 %1056, %v487
      %v1058 = vpop.permute.xlu0 %1057
      %1061 = vset.pattern.permute.xlu0 0
      %1062 = vperm.xlu0 %1061, %v488
      %v1063 = vpop.permute.xlu0 %1062
      %1066 = vset.pattern.permute.xlu0 0
      %1067 = vperm.xlu0 %1066, %v489
      %v1068 = vpop.permute.xlu0 %1067
      %1071 = vset.pattern.permute.xlu0 0
      %1072 = vperm.xlu0 %1071, %v490
      %v1073 = vpop.permute.xlu0 %1072
      %1076 = vset.pattern.permute.xlu0 0
      %1077 = vperm.xlu0 %1076, %v491
      %v1078 = vpop.permute.xlu0 %1077
      %1081 = vset.pattern.permute.xlu0 0
      %1082 = vperm.xlu0 %1081, %v492
      %v1083 = vpop.permute.xlu0 %1082
      %1086 = vset.pattern.permute.xlu0 0
      %1087 = vperm.xlu0 %1086, %v493
      %v1088 = vpop.permute.xlu0 %1087
      %1091 = vset.pattern.permute.xlu0 0
      %1092 = vperm.xlu0 %1091, %v494
      %v1093 = vpop.permute.xlu0 %1092
      %1096 = vset.pattern.permute.xlu0 0
      %1097 = vperm.xlu0 %1096, %v495
      %v1098 = vpop.permute.xlu0 %1097
      %1101 = vset.pattern.permute.xlu0 0
      %1102 = vperm.xlu0 %1101, %v496
      %v1103 = vpop.permute.xlu0 %1102
      %1106 = vset.pattern.permute.xlu0 0
      %1107 = vperm.xlu0 %1106, %v497
      %v1108 = vpop.permute.xlu0 %1107
      %1111 = vset.pattern.permute.xlu0 0
      %1112 = vperm.xlu0 %1111, %v498
      %v1113 = vpop.permute.xlu0 %1112
      %1116 = vset.pattern.permute.xlu0 0
      %1117 = vperm.xlu0 %1116, %v499
      %v1118 = vpop.permute.xlu0 %1117
      %1121 = vset.pattern.permute.xlu0 0
      %1122 = vperm.xlu0 %1121, %v500
      %v1123 = vpop.permute.xlu0 %1122
      %1126 = vset.pattern.permute.xlu0 0
      %1127 = vperm.xlu0 %1126, %v501
      %v1128 = vpop.permute.xlu0 %1127
      %1131 = vset.pattern.permute.xlu0 0
      %1132 = vperm.xlu0 %1131, %v502
      %v1133 = vpop.permute.xlu0 %1132
      %1136 = vset.pattern.permute.xlu0 0
      %1137 = vperm.xlu0 %1136, %v503
      %v1138 = vpop.permute.xlu0 %1137
      %1141 = vset.pattern.permute.xlu0 0
      %1142 = vperm.xlu0 %1141, %v504
      %v1143 = vpop.permute.xlu0 %1142
      %1146 = vset.pattern.permute.xlu0 0
      %1147 = vperm.xlu0 %1146, %v505
      %v1148 = vpop.permute.xlu0 %1147
      %1151 = vset.pattern.permute.xlu0 0
      %1152 = vperm.xlu0 %1151, %v506
      %v1153 = vpop.permute.xlu0 %1152
      %1156 = vset.pattern.permute.xlu0 0
      %1157 = vperm.xlu0 %1156, %v507
      %v1158 = vpop.permute.xlu0 %1157
      %1161 = vset.pattern.permute.xlu0 0
      %1162 = vperm.xlu0 %1161, %v508
      %v1163 = vpop.permute.xlu0 %1162
      %1166 = vset.pattern.permute.xlu0 0
      %1167 = vperm.xlu0 %1166, %v509
      %v1168 = vpop.permute.xlu0 %1167
      %1171 = vset.pattern.permute.xlu0 0
      %1172 = vperm.xlu0 %1171, %v510
      %v1173 = vpop.permute.xlu0 %1172
      %1176 = vset.pattern.permute.xlu0 0
      %1177 = vperm.xlu0 %1176, %v511
      %v1178 = vpop.permute.xlu0 %1177
      %1181 = vset.pattern.permute.xlu0 0
      %1182 = vperm.xlu0 %1181, %v512
      %v1183 = vpop.permute.xlu0 %1182
      %1186 = vset.pattern.permute.xlu0 0
      %1187 = vperm.xlu0 %1186, %v513
      %v1188 = vpop.permute.xlu0 %1187
      %1191 = vset.pattern.permute.xlu0 0
      %1192 = vperm.xlu0 %1191, %v514
      %v1193 = vpop.permute.xlu0 %1192
      %1196 = vset.pattern.permute.xlu0 0
      %1197 = vperm.xlu0 %1196, %v515
      %v1198 = vpop.permute.xlu0 %1197
      %1201 = vset.pattern.permute.xlu0 0
      %1202 = vperm.xlu0 %1201, %v516
      %v1203 = vpop.permute.xlu0 %1202
      %1206 = vset.pattern.permute.xlu0 0
      %1207 = vperm.xlu0 %1206, %v517
      %v1208 = vpop.permute.xlu0 %1207
      %1211 = vset.pattern.permute.xlu0 0
      %1212 = vperm.xlu0 %1211, %v518
      %v1213 = vpop.permute.xlu0 %1212
      %1216 = vset.pattern.permute.xlu0 0
      %1217 = vperm.xlu0 %1216, %v519
      %v1218 = vpop.permute.xlu0 %1217
      %1221 = vset.pattern.permute.xlu0 0
      %1222 = vperm.xlu0 %1221, %v520
      %v1223 = vpop.permute.xlu0 %1222
      %1226 = vset.pattern.permute.xlu0 0
      %1227 = vperm.xlu0 %1226, %v521
      %v1228 = vpop.permute.xlu0 %1227
      %1231 = vset.pattern.permute.xlu0 0
      %1232 = vperm.xlu0 %1231, %v522
      %v1233 = vpop.permute.xlu0 %1232
      %1236 = vset.pattern.permute.xlu0 0
      %1237 = vperm.xlu0 %1236, %v523
      %v1238 = vpop.permute.xlu0 %1237
      %1241 = vset.pattern.permute.xlu0 0
      %1242 = vperm.xlu0 %1241, %v524
      %v1243 = vpop.permute.xlu0 %1242
      %1246 = vset.pattern.permute.xlu0 0
      %1247 = vperm.xlu0 %1246, %v525
      %v1248 = vpop.permute.xlu0 %1247
      %1251 = vset.pattern.permute.xlu0 0
      %1252 = vperm.xlu0 %1251, %v526
      %v1253 = vpop.permute.xlu0 %1252
      %1256 = vset.pattern.permute.xlu0 0
      %1257 = vperm.xlu0 %1256, %v527
      %v1258 = vpop.permute.xlu0 %1257
      %1261 = vset.pattern.permute.xlu0 0
      %1262 = vperm.xlu0 %1261, %v528
      %v1263 = vpop.permute.xlu0 %1262
      %1266 = vset.pattern.permute.xlu0 0
      %1267 = vperm.xlu0 %1266, %v529
      %v1268 = vpop.permute.xlu0 %1267
      %1271 = vset.pattern.permute.xlu0 0
      %1272 = vperm.xlu0 %1271, %v530
      %v1273 = vpop.permute.xlu0 %1272
      %1276 = vset.pattern.permute.xlu0 0
      %1277 = vperm.xlu0 %1276, %v531
      %v1278 = vpop.permute.xlu0 %1277
      %1281 = vset.pattern.permute.xlu0 0
      %1282 = vperm.xlu0 %1281, %v532
      %v1283 = vpop.permute.xlu0 %1282
      %1286 = vset.pattern.permute.xlu0 0
      %1287 = vperm.xlu0 %1286, %v533
      %v1288 = vpop.permute.xlu0 %1287
      %1291 = vset.pattern.permute.xlu0 0
      %1292 = vperm.xlu0 %1291, %v534
      %v1293 = vpop.permute.xlu0 %1292
      %1296 = vset.pattern.permute.xlu0 0
      %1297 = vperm.xlu0 %1296, %v535
      %v1298 = vpop.permute.xlu0 %1297
      %1301 = vset.pattern.permute.xlu0 0
      %1302 = vperm.xlu0 %1301, %v536
      %v1303 = vpop.permute.xlu0 %1302
      %1306 = vset.pattern.permute.xlu0 0
      %1307 = vperm.xlu0 %1306, %v537
      %v1308 = vpop.permute.xlu0 %1307
      %1311 = vset.pattern.permute.xlu0 0
      %1312 = vperm.xlu0 %1311, %v538
      %v1313 = vpop.permute.xlu0 %1312
      %1316 = vset.pattern.permute.xlu0 0
      %1317 = vperm.xlu0 %1316, %v539
      %v1318 = vpop.permute.xlu0 %1317
      %1321 = vset.pattern.permute.xlu0 0
      %1322 = vperm.xlu0 %1321, %v540
      %v1323 = vpop.permute.xlu0 %1322
      %1326 = vset.pattern.permute.xlu0 0
      %1327 = vperm.xlu0 %1326, %v541
      %v1328 = vpop.permute.xlu0 %1327
      %1331 = vset.pattern.permute.xlu0 0
      %1332 = vperm.xlu0 %1331, %v542
      %v1333 = vpop.permute.xlu0 %1332
      %1336 = vset.pattern.permute.xlu0 0
      %1337 = vperm.xlu0 %1336, %v543
      %v1338 = vpop.permute.xlu0 %1337
      %1341 = vset.pattern.permute.xlu0 0
      %1342 = vperm.xlu0 %1341, %v544
      %v1343 = vpop.permute.xlu0 %1342
      %1346 = vset.pattern.permute.xlu0 0
      %1347 = vperm.xlu0 %1346, %v545
      %v1348 = vpop.permute.xlu0 %1347
      %1351 = vset.pattern.permute.xlu0 0
      %1352 = vperm.xlu0 %1351, %v546
      %v1353 = vpop.permute.xlu0 %1352
      %1356 = vset.pattern.permute.xlu0 0
      %1357 = vperm.xlu0 %1356, %v547
      %v1358 = vpop.permute.xlu0 %1357
      %1361 = vset.pattern.permute.xlu0 0
      %1362 = vperm.xlu0 %1361, %v548
      %v1363 = vpop.permute.xlu0 %1362
      %1366 = vset.pattern.permute.xlu0 0
      %1367 = vperm.xlu0 %1366, %v549
      %v1368 = vpop.permute.xlu0 %1367
      %1371 = vset.pattern.permute.xlu0 0
      %1372 = vperm.xlu0 %1371, %v550
      %v1373 = vpop.permute.xlu0 %1372
      %1376 = vset.pattern.permute.xlu0 0
      %1377 = vperm.xlu0 %1376, %v551
      %v1378 = vpop.permute.xlu0 %1377
      %1381 = vset.pattern.permute.xlu0 0
      %1382 = vperm.xlu0 %1381, %v552
      %v1383 = vpop.permute.xlu0 %1382
      %1386 = vset.pattern.permute.xlu0 0
      %1387 = vperm.xlu0 %1386, %v553
      %v1388 = vpop.permute.xlu0 %1387
      %1391 = vset.pattern.permute.xlu0 0
      %1392 = vperm.xlu0 %1391, %v554
      %v1393 = vpop.permute.xlu0 %1392
      %v1395 = vmul.f32 %v219, %v558
      %v1396 = vmul.f32 %v220, %v563
      %v1397 = vmul.f32 %v221, %v568
      %v1398 = vmul.f32 %v222, %v573
      %v1399 = vmul.f32 %v223, %v578
      %v1400 = vmul.f32 %v224, %v583
      %v1401 = vmul.f32 %v225, %v588
      %v1402 = vmul.f32 %v226, %v593
      %v1403 = vmul.f32 %v227, %v598
      %v1404 = vmul.f32 %v228, %v603
      %v1405 = vmul.f32 %v229, %v608
      %v1406 = vmul.f32 %v230, %v613
      %v1407 = vmul.f32 %v231, %v618
      %v1408 = vmul.f32 %v232, %v623
      %v1409 = vmul.f32 %v233, %v628
      %v1410 = vmul.f32 %v234, %v633
      %v1411 = vmul.f32 %v235, %v638
      %v1412 = vmul.f32 %v236, %v643
      %v1413 = vmul.f32 %v237, %v648
      %v1414 = vmul.f32 %v238, %v653
      %v1415 = vmul.f32 %v239, %v658
      %v1416 = vmul.f32 %v240, %v663
      %v1417 = vmul.f32 %v241, %v668
      %v1418 = vmul.f32 %v242, %v673
      %v1419 = vmul.f32 %v243, %v678
      %v1420 = vmul.f32 %v244, %v683
      %v1421 = vmul.f32 %v245, %v688
      %v1422 = vmul.f32 %v246, %v693
      %v1423 = vmul.f32 %v247, %v698
      %v1424 = vmul.f32 %v248, %v703
      %v1425 = vmul.f32 %v249, %v708
      %v1426 = vmul.f32 %v250, %v713
      %v1427 = vmul.f32 %v251, %v718
      %v1428 = vmul.f32 %v252, %v723
      %v1429 = vmul.f32 %v253, %v728
      %v1430 = vmul.f32 %v254, %v733
      %v1431 = vmul.f32 %v255, %v738
      %v1432 = vmul.f32 %v256, %v743
      %v1433 = vmul.f32 %v257, %v748
      %v1434 = vmul.f32 %v258, %v753
      %v1435 = vmul.f32 %v259, %v758
      %v1436 = vmul.f32 %v260, %v763
      %v1437 = vmul.f32 %v261, %v768
      %v1438 = vmul.f32 %v262, %v773
      %v1439 = vmul.f32 %v263, %v778
      %v1440 = vmul.f32 %v264, %v783
      %v1441 = vmul.f32 %v265, %v788
      %v1442 = vmul.f32 %v266, %v793
      %v1443 = vmul.f32 %v267, %v798
      %v1444 = vmul.f32 %v268, %v803
      %v1445 = vmul.f32 %v269, %v808
      %v1446 = vmul.f32 %v270, %v813
      %v1447 = vmul.f32 %v271, %v818
      %v1448 = vmul.f32 %v272, %v823
      %v1449 = vmul.f32 %v273, %v828
      %v1450 = vmul.f32 %v274, %v833
      %v1451 = vmul.f32 %v275, %v838
      %v1452 = vmul.f32 %v276, %v843
      %v1453 = vmul.f32 %v277, %v848
      %v1454 = vmul.f32 %v278, %v853
      %v1455 = vmul.f32 %v279, %v858
      %v1456 = vmul.f32 %v280, %v863
      %v1457 = vmul.f32 %v281, %v868
      %v1458 = vmul.f32 %v282, %v873
      %v1459 = vmul.f32 %v283, %v878
      %v1460 = vmul.f32 %v284, %v883
      %v1461 = vmul.f32 %v285, %v888
      %v1462 = vmul.f32 %v286, %v893
      %v1463 = vmul.f32 %v287, %v898
      %v1464 = vmul.f32 %v288, %v903
      %v1465 = vmul.f32 %v289, %v908
      %v1466 = vmul.f32 %v290, %v913
      %v1467 = vmul.f32 %v291, %v918
      %v1468 = vmul.f32 %v292, %v923
      %v1469 = vmul.f32 %v293, %v928
      %v1470 = vmul.f32 %v294, %v933
      %v1471 = vmul.f32 %v295, %v938
      %v1472 = vmul.f32 %v296, %v943
      %v1473 = vmul.f32 %v297, %v948
      %v1474 = vmul.f32 %v298, %v953
      %v1475 = vmul.f32 %v299, %v958
      %v1476 = vmul.f32 %v300, %v963
      %v1477 = vmul.f32 %v301, %v968
      %v1478 = vmul.f32 %v302, %v973
      %v1479 = vmul.f32 %v303, %v978
      %v1480 = vmul.f32 %v304, %v983
      %v1481 = vmul.f32 %v305, %v988
      %v1482 = vmul.f32 %v306, %v993
      %v1483 = vmul.f32 %v307, %v998
      %v1484 = vmul.f32 %v308, %v1003
      %v1485 = vmul.f32 %v309, %v1008
      %v1486 = vmul.f32 %v310, %v1013
      %v1487 = vmul.f32 %v311, %v1018
      %v1488 = vmul.f32 %v312, %v1023
      %v1489 = vmul.f32 %v313, %v1028
      %v1490 = vmul.f32 %v314, %v1033
      %v1491 = vmul.f32 %v315, %v1038
      %v1492 = vmul.f32 %v316, %v1043
      %v1493 = vmul.f32 %v317, %v1048
      %v1494 = vmul.f32 %v318, %v1053
      %v1495 = vmul.f32 %v319, %v1058
      %v1496 = vmul.f32 %v320, %v1063
      %v1497 = vmul.f32 %v321, %v1068
      %v1498 = vmul.f32 %v322, %v1073
      %v1499 = vmul.f32 %v323, %v1078
      %v1500 = vmul.f32 %v324, %v1083
      %v1501 = vmul.f32 %v325, %v1088
      %v1502 = vmul.f32 %v326, %v1093
      %v1503 = vmul.f32 %v327, %v1098
      %v1504 = vmul.f32 %v328, %v1103
      %v1505 = vmul.f32 %v329, %v1108
      %v1506 = vmul.f32 %v330, %v1113
      %v1507 = vmul.f32 %v331, %v1118
      %v1508 = vmul.f32 %v332, %v1123
      %v1509 = vmul.f32 %v333, %v1128
      %v1510 = vmul.f32 %v334, %v1133
      %v1511 = vmul.f32 %v335, %v1138
      %v1512 = vmul.f32 %v336, %v1143
      %v1513 = vmul.f32 %v337, %v1148
      %v1514 = vmul.f32 %v338, %v1153
      %v1515 = vmul.f32 %v339, %v1158
      %v1516 = vmul.f32 %v340, %v1163
      %v1517 = vmul.f32 %v341, %v1168
      %v1518 = vmul.f32 %v342, %v1173
      %v1519 = vmul.f32 %v343, %v1178
      %v1520 = vmul.f32 %v344, %v1183
      %v1521 = vmul.f32 %v345, %v1188
      %v1522 = vmul.f32 %v346, %v1193
      %v1523 = vmul.f32 %v347, %v1198
      %v1524 = vmul.f32 %v348, %v1203
      %v1525 = vmul.f32 %v349, %v1208
      %v1526 = vmul.f32 %v350, %v1213
      %v1527 = vmul.f32 %v351, %v1218
      %v1528 = vmul.f32 %v352, %v1223
      %v1529 = vmul.f32 %v353, %v1228
      %v1530 = vmul.f32 %v354, %v1233
      %v1531 = vmul.f32 %v355, %v1238
      %v1532 = vmul.f32 %v356, %v1243
      %v1533 = vmul.f32 %v357, %v1248
      %v1534 = vmul.f32 %v358, %v1253
      %v1535 = vmul.f32 %v359, %v1258
      %v1536 = vmul.f32 %v360, %v1263
      %v1537 = vmul.f32 %v361, %v1268
      %v1538 = vmul.f32 %v362, %v1273
      %v1539 = vmul.f32 %v363, %v1278
      %v1540 = vmul.f32 %v364, %v1283
      %v1541 = vmul.f32 %v365, %v1288
      %v1542 = vmul.f32 %v366, %v1293
      %v1543 = vmul.f32 %v367, %v1298
      %v1544 = vmul.f32 %v368, %v1303
      %v1545 = vmul.f32 %v369, %v1308
      %v1546 = vmul.f32 %v370, %v1313
      %v1547 = vmul.f32 %v371, %v1318
      %v1548 = vmul.f32 %v372, %v1323
      %v1549 = vmul.f32 %v373, %v1328
      %v1550 = vmul.f32 %v374, %v1333
      %v1551 = vmul.f32 %v375, %v1338
      %v1552 = vmul.f32 %v376, %v1343
      %v1553 = vmul.f32 %v377, %v1348
      %v1554 = vmul.f32 %v378, %v1353
      %v1555 = vmul.f32 %v379, %v1358
      %v1556 = vmul.f32 %v380, %v1363
      %v1557 = vmul.f32 %v381, %v1368
      %v1558 = vmul.f32 %v382, %v1373
      %v1559 = vmul.f32 %v383, %v1378
      %v1560 = vmul.f32 %v384, %v1383
      %v1561 = vmul.f32 %v385, %v1388
      %v1562 = vmul.f32 %v386, %v1393
      %vm1563 = vcmask 400384
      %1564 = vst.msk [vmem:[%s217] sm:$0xff] %vm1563, %v1395
      %1565 = vst.msk [vmem:[%s217 + $0x8] sm:$0xff] %vm1563, %v1396
      %1566 = vst.msk [vmem:[%s217 + $0x10] sm:$0xff] %vm1563, %v1397
      %1567 = vst.msk [vmem:[%s217 + $0x18] sm:$0xff] %vm1563, %v1398
      %1568 = vst.msk [vmem:[%s217 + $0x20] sm:$0xff] %vm1563, %v1399
      %1569 = vst.msk [vmem:[%s217 + $0x28] sm:$0xff] %vm1563, %v1400
      %1570 = vst.msk [vmem:[%s217 + $0x30] sm:$0xff] %vm1563, %v1401
      %1571 = vst.msk [vmem:[%s217 + $0x38] sm:$0xff] %vm1563, %v1402
      %1572 = vst.msk [vmem:[%s217 + $0x40] sm:$0xff] %vm1563, %v1403
      %1573 = vst.msk [vmem:[%s217 + $0x48] sm:$0xff] %vm1563, %v1404
      %1574 = vst.msk [vmem:[%s217 + $0x50] sm:$0xff] %vm1563, %v1405
      %1575 = vst.msk [vmem:[%s217 + $0x58] sm:$0xff] %vm1563, %v1406
      %1576 = vst.msk [vmem:[%s217 + $0x60] sm:$0xff] %vm1563, %v1407
      %1577 = vst.msk [vmem:[%s217 + $0x68] sm:$0xff] %vm1563, %v1408
      %1578 = vst.msk [vmem:[%s217 + $0x70] sm:$0xff] %vm1563, %v1409
      %1579 = vst.msk [vmem:[%s217 + $0x78] sm:$0xff] %vm1563, %v1410
      %1580 = vst.msk [vmem:[%s217 + $0x80] sm:$0xff] %vm1563, %v1411
      %1581 = vst.msk [vmem:[%s217 + $0x88] sm:$0xff] %vm1563, %v1412
      %1582 = vst.msk [vmem:[%s217 + $0x90] sm:$0xff] %vm1563, %v1413
      %1583 = vst.msk [vmem:[%s217 + $0x98] sm:$0xff] %vm1563, %v1414
      %1584 = vst.msk [vmem:[%s217 + $0xa0] sm:$0xff] %vm1563, %v1415
      %1585 = vst.msk [vmem:[%s217 + $0xa8] sm:$0xff] %vm1563, %v1416
      %1586 = vst.msk [vmem:[%s217 + $0xb0] sm:$0xff] %vm1563, %v1417
      %1587 = vst.msk [vmem:[%s217 + $0xb8] sm:$0xff] %vm1563, %v1418
      %1588 = vst.msk [vmem:[%s217 + $0xc0] sm:$0xff] %vm1563, %v1419
      %1589 = vst.msk [vmem:[%s217 + $0xc8] sm:$0xff] %vm1563, %v1420
      %1590 = vst.msk [vmem:[%s217 + $0xd0] sm:$0xff] %vm1563, %v1421
      %1591 = vst.msk [vmem:[%s217 + $0xd8] sm:$0xff] %vm1563, %v1422
      %1592 = vst.msk [vmem:[%s217 + $0xe0] sm:$0xff] %vm1563, %v1423
      %1593 = vst.msk [vmem:[%s217 + $0xe8] sm:$0xff] %vm1563, %v1424
      %1594 = vst.msk [vmem:[%s217 + $0xf0] sm:$0xff] %vm1563, %v1425
      %1595 = vst.msk [vmem:[%s217 + $0xf8] sm:$0xff] %vm1563, %v1426
      %1596 = vst.msk [vmem:[%s217 + $0x100] sm:$0xff] %vm1563, %v1427
      %1597 = vst.msk [vmem:[%s217 + $0x108] sm:$0xff] %vm1563, %v1428
      %1598 = vst.msk [vmem:[%s217 + $0x110] sm:$0xff] %vm1563, %v1429
      %1599 = vst.msk [vmem:[%s217 + $0x118] sm:$0xff] %vm1563, %v1430
      %1600 = vst.msk [vmem:[%s217 + $0x120] sm:$0xff] %vm1563, %v1431
      %1601 = vst.msk [vmem:[%s217 + $0x128] sm:$0xff] %vm1563, %v1432
      %1602 = vst.msk [vmem:[%s217 + $0x130] sm:$0xff] %vm1563, %v1433
      %1603 = vst.msk [vmem:[%s217 + $0x138] sm:$0xff] %vm1563, %v1434
      %1604 = vst.msk [vmem:[%s217 + $0x140] sm:$0xff] %vm1563, %v1435
      %1605 = vst.msk [vmem:[%s217 + $0x148] sm:$0xff] %vm1563, %v1436
      %1606 = vst.msk [vmem:[%s217 + $0x150] sm:$0xff] %vm1563, %v1437
      %1607 = vst.msk [vmem:[%s217 + $0x158] sm:$0xff] %vm1563, %v1438
      %1608 = vst.msk [vmem:[%s217 + $0x160] sm:$0xff] %vm1563, %v1439
      %1609 = vst.msk [vmem:[%s217 + $0x168] sm:$0xff] %vm1563, %v1440
      %1610 = vst.msk [vmem:[%s217 + $0x170] sm:$0xff] %vm1563, %v1441
      %1611 = vst.msk [vmem:[%s217 + $0x178] sm:$0xff] %vm1563, %v1442
      %1612 = vst.msk [vmem:[%s217 + $0x180] sm:$0xff] %vm1563, %v1443
      %1613 = vst.msk [vmem:[%s217 + $0x188] sm:$0xff] %vm1563, %v1444
      %1614 = vst.msk [vmem:[%s217 + $0x190] sm:$0xff] %vm1563, %v1445
      %1615 = vst.msk [vmem:[%s217 + $0x198] sm:$0xff] %vm1563, %v1446
      %1616 = vst.msk [vmem:[%s217 + $0x1a0] sm:$0xff] %vm1563, %v1447
      %1617 = vst.msk [vmem:[%s217 + $0x1a8] sm:$0xff] %vm1563, %v1448
      %1618 = vst.msk [vmem:[%s217 + $0x1b0] sm:$0xff] %vm1563, %v1449
      %1619 = vst.msk [vmem:[%s217 + $0x1b8] sm:$0xff] %vm1563, %v1450
      %1620 = vst.msk [vmem:[%s217 + $0x1c0] sm:$0xff] %vm1563, %v1451
      %1621 = vst.msk [vmem:[%s217 + $0x1c8] sm:$0xff] %vm1563, %v1452
      %1622 = vst.msk [vmem:[%s217 + $0x1d0] sm:$0xff] %vm1563, %v1453
      %1623 = vst.msk [vmem:[%s217 + $0x1d8] sm:$0xff] %vm1563, %v1454
      %1624 = vst.msk [vmem:[%s217 + $0x1e0] sm:$0xff] %vm1563, %v1455
      %1625 = vst.msk [vmem:[%s217 + $0x1e8] sm:$0xff] %vm1563, %v1456
      %1626 = vst.msk [vmem:[%s217 + $0x1f0] sm:$0xff] %vm1563, %v1457
      %1627 = vst.msk [vmem:[%s217 + $0x1f8] sm:$0xff] %vm1563, %v1458
      %1628 = vst.msk [vmem:[%s217 + $0x200] sm:$0xff] %vm1563, %v1459
      %1629 = vst.msk [vmem:[%s217 + $0x208] sm:$0xff] %vm1563, %v1460
      %1630 = vst.msk [vmem:[%s217 + $0x210] sm:$0xff] %vm1563, %v1461
      %1631 = vst.msk [vmem:[%s217 + $0x218] sm:$0xff] %vm1563, %v1462
      %1632 = vst.msk [vmem:[%s217 + $0x220] sm:$0xff] %vm1563, %v1463
      %1633 = vst.msk [vmem:[%s217 + $0x228] sm:$0xff] %vm1563, %v1464
      %1634 = vst.msk [vmem:[%s217 + $0x230] sm:$0xff] %vm1563, %v1465
      %1635 = vst.msk [vmem:[%s217 + $0x238] sm:$0xff] %vm1563, %v1466
      %1636 = vst.msk [vmem:[%s217 + $0x240] sm:$0xff] %vm1563, %v1467
      %1637 = vst.msk [vmem:[%s217 + $0x248] sm:$0xff] %vm1563, %v1468
      %1638 = vst.msk [vmem:[%s217 + $0x250] sm:$0xff] %vm1563, %v1469
      %1639 = vst.msk [vmem:[%s217 + $0x258] sm:$0xff] %vm1563, %v1470
      %1640 = vst.msk [vmem:[%s217 + $0x260] sm:$0xff] %vm1563, %v1471
      %1641 = vst.msk [vmem:[%s217 + $0x268] sm:$0xff] %vm1563, %v1472
      %1642 = vst.msk [vmem:[%s217 + $0x270] sm:$0xff] %vm1563, %v1473
      %1643 = vst.msk [vmem:[%s217 + $0x278] sm:$0xff] %vm1563, %v1474
      %1644 = vst.msk [vmem:[%s217 + $0x280] sm:$0xff] %vm1563, %v1475
      %1645 = vst.msk [vmem:[%s217 + $0x288] sm:$0xff] %vm1563, %v1476
      %1646 = vst.msk [vmem:[%s217 + $0x290] sm:$0xff] %vm1563, %v1477
      %1647 = vst.msk [vmem:[%s217 + $0x298] sm:$0xff] %vm1563, %v1478
      %1648 = vst.msk [vmem:[%s217 + $0x2a0] sm:$0xff] %vm1563, %v1479
      %1649 = vst.msk [vmem:[%s217 + $0x2a8] sm:$0xff] %vm1563, %v1480
      %1650 = vst.msk [vmem:[%s217 + $0x2b0] sm:$0xff] %vm1563, %v1481
      %1651 = vst.msk [vmem:[%s217 + $0x2b8] sm:$0xff] %vm1563, %v1482
      %1652 = vst.msk [vmem:[%s217 + $0x2c0] sm:$0xff] %vm1563, %v1483
      %1653 = vst.msk [vmem:[%s217 + $0x2c8] sm:$0xff] %vm1563, %v1484
      %1654 = vst.msk [vmem:[%s217 + $0x2d0] sm:$0xff] %vm1563, %v1485
      %1655 = vst.msk [vmem:[%s217 + $0x2d8] sm:$0xff] %vm1563, %v1486
      %1656 = vst.msk [vmem:[%s217 + $0x2e0] sm:$0xff] %vm1563, %v1487
      %1657 = vst.msk [vmem:[%s217 + $0x2e8] sm:$0xff] %vm1563, %v1488
      %1658 = vst.msk [vmem:[%s217 + $0x2f0] sm:$0xff] %vm1563, %v1489
      %1659 = vst.msk [vmem:[%s217 + $0x2f8] sm:$0xff] %vm1563, %v1490
      %1660 = vst.msk [vmem:[%s217 + $0x300] sm:$0xff] %vm1563, %v1491
      %1661 = vst.msk [vmem:[%s217 + $0x308] sm:$0xff] %vm1563, %v1492
      %1662 = vst.msk [vmem:[%s217 + $0x310] sm:$0xff] %vm1563, %v1493
      %1663 = vst.msk [vmem:[%s217 + $0x318] sm:$0xff] %vm1563, %v1494
      %1664 = vst.msk [vmem:[%s217 + $0x320] sm:$0xff] %vm1563, %v1495
      %1665 = vst.msk [vmem:[%s217 + $0x328] sm:$0xff] %vm1563, %v1496
      %1666 = vst.msk [vmem:[%s217 + $0x330] sm:$0xff] %vm1563, %v1497
      %1667 = vst.msk [vmem:[%s217 + $0x338] sm:$0xff] %vm1563, %v1498
      %1668 = vst.msk [vmem:[%s217 + $0x340] sm:$0xff] %vm1563, %v1499
      %1669 = vst.msk [vmem:[%s217 + $0x348] sm:$0xff] %vm1563, %v1500
      %1670 = vst.msk [vmem:[%s217 + $0x350] sm:$0xff] %vm1563, %v1501
      %1671 = vst.msk [vmem:[%s217 + $0x358] sm:$0xff] %vm1563, %v1502
      %1672 = vst.msk [vmem:[%s217 + $0x360] sm:$0xff] %vm1563, %v1503
      %1673 = vst.msk [vmem:[%s217 + $0x368] sm:$0xff] %vm1563, %v1504
      %1674 = vst.msk [vmem:[%s217 + $0x370] sm:$0xff] %vm1563, %v1505
      %1675 = vst.msk [vmem:[%s217 + $0x378] sm:$0xff] %vm1563, %v1506
      %1676 = vst.msk [vmem:[%s217 + $0x380] sm:$0xff] %vm1563, %v1507
      %1677 = vst.msk [vmem:[%s217 + $0x388] sm:$0xff] %vm1563, %v1508
      %1678 = vst.msk [vmem:[%s217 + $0x390] sm:$0xff] %vm1563, %v1509
      %1679 = vst.msk [vmem:[%s217 + $0x398] sm:$0xff] %vm1563, %v1510
      %1680 = vst.msk [vmem:[%s217 + $0x3a0] sm:$0xff] %vm1563, %v1511
      %1681 = vst.msk [vmem:[%s217 + $0x3a8] sm:$0xff] %vm1563, %v1512
      %1682 = vst.msk [vmem:[%s217 + $0x3b0] sm:$0xff] %vm1563, %v1513
      %1683 = vst.msk [vmem:[%s217 + $0x3b8] sm:$0xff] %vm1563, %v1514
      %1684 = vst.msk [vmem:[%s217 + $0x3c0] sm:$0xff] %vm1563, %v1515
      %1685 = vst.msk [vmem:[%s217 + $0x3c8] sm:$0xff] %vm1563, %v1516
      %1686 = vst.msk [vmem:[%s217 + $0x3d0] sm:$0xff] %vm1563, %v1517
      %1687 = vst.msk [vmem:[%s217 + $0x3d8] sm:$0xff] %vm1563, %v1518
      %1688 = vst.msk [vmem:[%s217 + $0x3e0] sm:$0xff] %vm1563, %v1519
      %1689 = vst.msk [vmem:[%s217 + $0x3e8] sm:$0xff] %vm1563, %v1520
      %1690 = vst.msk [vmem:[%s217 + $0x3f0] sm:$0xff] %vm1563, %v1521
      %1691 = vst.msk [vmem:[%s217 + $0x3f8] sm:$0xff] %vm1563, %v1522
      %1692 = vst.msk [vmem:[%s217 + $0x400] sm:$0xff] %vm1563, %v1523
      %1693 = vst.msk [vmem:[%s217 + $0x408] sm:$0xff] %vm1563, %v1524
      %1694 = vst.msk [vmem:[%s217 + $0x410] sm:$0xff] %vm1563, %v1525
      %1695 = vst.msk [vmem:[%s217 + $0x418] sm:$0xff] %vm1563, %v1526
      %1696 = vst.msk [vmem:[%s217 + $0x420] sm:$0xff] %vm1563, %v1527
      %1697 = vst.msk [vmem:[%s217 + $0x428] sm:$0xff] %vm1563, %v1528
      %1698 = vst.msk [vmem:[%s217 + $0x430] sm:$0xff] %vm1563, %v1529
      %1699 = vst.msk [vmem:[%s217 + $0x438] sm:$0xff] %vm1563, %v1530
      %1700 = vst.msk [vmem:[%s217 + $0x440] sm:$0xff] %vm1563, %v1531
      %1701 = vst.msk [vmem:[%s217 + $0x448] sm:$0xff] %vm1563, %v1532
      %1702 = vst.msk [vmem:[%s217 + $0x450] sm:$0xff] %vm1563, %v1533
      %1703 = vst.msk [vmem:[%s217 + $0x458] sm:$0xff] %vm1563, %v1534
      %1704 = vst.msk [vmem:[%s217 + $0x460] sm:$0xff] %vm1563, %v1535
      %1705 = vst.msk [vmem:[%s217 + $0x468] sm:$0xff] %vm1563, %v1536
      %1706 = vst.msk [vmem:[%s217 + $0x470] sm:$0xff] %vm1563, %v1537
      %1707 = vst.msk [vmem:[%s217 + $0x478] sm:$0xff] %vm1563, %v1538
      %1708 = vst.msk [vmem:[%s217 + $0x480] sm:$0xff] %vm1563, %v1539
      %1709 = vst.msk [vmem:[%s217 + $0x488] sm:$0xff] %vm1563, %v1540
      %1710 = vst.msk [vmem:[%s217 + $0x490] sm:$0xff] %vm1563, %v1541
      %1711 = vst.msk [vmem:[%s217 + $0x498] sm:$0xff] %vm1563, %v1542
      %1712 = vst.msk [vmem:[%s217 + $0x4a0] sm:$0xff] %vm1563, %v1543
      %1713 = vst.msk [vmem:[%s217 + $0x4a8] sm:$0xff] %vm1563, %v1544
      %1714 = vst.msk [vmem:[%s217 + $0x4b0] sm:$0xff] %vm1563, %v1545
      %1715 = vst.msk [vmem:[%s217 + $0x4b8] sm:$0xff] %vm1563, %v1546
      %1716 = vst.msk [vmem:[%s217 + $0x4c0] sm:$0xff] %vm1563, %v1547
      %1717 = vst.msk [vmem:[%s217 + $0x4c8] sm:$0xff] %vm1563, %v1548
      %1718 = vst.msk [vmem:[%s217 + $0x4d0] sm:$0xff] %vm1563, %v1549
      %1719 = vst.msk [vmem:[%s217 + $0x4d8] sm:$0xff] %vm1563, %v1550
      %1720 = vst.msk [vmem:[%s217 + $0x4e0] sm:$0xff] %vm1563, %v1551
      %1721 = vst.msk [vmem:[%s217 + $0x4e8] sm:$0xff] %vm1563, %v1552
      %1722 = vst.msk [vmem:[%s217 + $0x4f0] sm:$0xff] %vm1563, %v1553
      %1723 = vst.msk [vmem:[%s217 + $0x4f8] sm:$0xff] %vm1563, %v1554
      %1724 = vst.msk [vmem:[%s217 + $0x500] sm:$0xff] %vm1563, %v1555
      %1725 = vst.msk [vmem:[%s217 + $0x508] sm:$0xff] %vm1563, %v1556
      %1726 = vst.msk [vmem:[%s217 + $0x510] sm:$0xff] %vm1563, %v1557
      %1727 = vst.msk [vmem:[%s217 + $0x518] sm:$0xff] %vm1563, %v1558
      %1728 = vst.msk [vmem:[%s217 + $0x520] sm:$0xff] %vm1563, %v1559
      %1729 = vst.msk [vmem:[%s217 + $0x528] sm:$0xff] %vm1563, %v1560
      %1730 = vst.msk [vmem:[%s217 + $0x530] sm:$0xff] %vm1563, %v1561
      %1731 = vst.msk [vmem:[%s217 + $0x538] sm:$0xff] %vm1563, %v1562
      %s1732 = smul.u32 168, %s18
      %p1733 = scmp.lt.s32.totalorder %s17, 0
      %s1734 = scalar_select %p1733, %s17, 0
      %p1735 = scmp.lt.s32.totalorder %s1732, 335
      %s1736 = scalar_select %p1735, %s1732, 335
      %s1737 = smul.addr %s1734, 336
      %s1738 = sadd.s32 %s1736, %s1737
      %s1739 = smul.addr %s1738, 8
      %s1740 = scalar_lea.vmem %s2, %s1739
      // Predicated region
      $region29: #{tpu_custom_call.1} parent=27 // pred_check
        %p1741 = pneg %p101
      $region30: #{tpu_custom_call.1} parent=27 // pred_check_branch
        %1743 = sbr.rel (%p1741) target = $region32
      $region31: #{tpu_custom_call.1} parent=27 // pred_region
        %s1744 = smul.u32 168, %s18
      $region32: #{tpu_custom_call.1} parent=27 // pred_fallthru
        _
    $region28: #{tpu_custom_call.1} parent=5 // pred_fallthru
      _
    %p1745 = scmp.le.s32.totalorder 2, %s8
    // Predicated region
    $region33: #{tpu_custom_call.1} parent=5 // pred_check
      %p1746 = pneg %p1745
    $region34: #{tpu_custom_call.1} parent=5 // pred_check_branch
      %1748 = sbr.rel (%p1746) target = $region36
    $region35: #{tpu_custom_call.1} parent=5 // pred_region
      %s1749 = ssub.s32 %s8, 2
      // Predicated region
      $region37: #{tpu_custom_call.1} parent=35 // pred_check
        %p1750 = pneg %p107
      $region38: #{tpu_custom_call.1} parent=35 // pred_check_branch
        %1752 = sbr.rel (%p1750) target = $region40
      $region39: #{tpu_custom_call.1} parent=35 // pred_region
        %s1753 = smul.u32 168, %s20
        %p1754 = scmp.lt.s32.totalorder %s19, 0
        %s1755 = scalar_select %p1754, %s19, 0
        %p1756 = scmp.lt.s32.totalorder %s1753, 335
        %s1757 = scalar_select %p1756, %s1753, 335
        %s1758 = smul.addr %s1755, 336
        %s1759 = sadd.s32 %s1757, %s1758
        %s1760 = smul.addr %s1759, 8
        %s1761 = scalar_lea.vmem %s2, %s1760
      $region40: #{tpu_custom_call.1} parent=35 // pred_fallthru
        _
    $region36: #{tpu_custom_call.1} parent=5 // pred_fallthru
      _
  $region6: #{tpu_custom_call.1} parent=0 // loop_footer
    %s12 = sadd.s32 1, %s8
  $region7: #{tpu_custom_call.1} parent=0 // loop_footer_branch
    %7 = sbr.rel target = $region3
  $region8: #{tpu_custom_call.1} parent=0 // loop_exit
    _

</llo_original>
